<compile_context>
chip_gen: v7x
topology: tpu7x:2x2x1
jax: 0.10.0
libtpu: 0.0.40
codegen_flags: <defaults>
</compile_context>

<pallas_src>
import functools
from math import sqrt

import numpy as np
import jax
import jax.numpy as jnp
from jax.experimental import pallas as pl
from jax.experimental.pallas import tpu as pltpu

MATMUL_DTYPE = jnp.bfloat16   # MXU operand precision; accumulation stays f32
NEG_LOGIT = -1e30             # bias of padded (dummy) expert columns
BT_ALIGN = 16                 # bf16 sublane packing -> batch tiles multiple of 16


def _cdiv(a, b):
    return -(-a // b)


def _round_up(a, b):
    return _cdiv(a, b) * b


# ----------------------------------------------------------------------------
# Pallas kernel: all AdaTT extraction layers for one batch tile
# ----------------------------------------------------------------------------
def _adatt_fused_kernel(layer_cfgs, *refs):
    """Compute every extraction layer for one [Bt, D] batch tile in VMEM.

    layer_cfgs: tuple of (n_sub, M, E, E_pad, d_out, P_out) per layer.
    refs layout:
      x_ref                       [Bt, D]                      bf16
      per layer l:
        W_l_k (bf16), b_l_k (f32) for k = 0..n_sub-1
          W_l_0    : [K_in, E_pad*d_0]      (module->expert gather folded)
          W_l_k    : [E_pad*d_{k-1}, E_pad*d_k]   block-diagonal     (0<k<last)
          W_l_last : [..., E_pad*P_out]     expert output replicated per module
        Wg_l [K_in, M*E_pad] bf16 ; bg_l, R_l [1, M*E_pad] f32
        S_l  [M*E_pad, M*E_pad]   bf16  (per-module ones block: softmax denom)
        X_l  [M*E_pad, E_pad*P_out] bf16 (gate -> lane-group expansion)
      out_ref                     [Bt, P_last]                  f32
    """
    it = iter(refs)
    x_ref = next(it)
    per_layer = []
    for (n_sub, *_unused) in layer_cfgs:
        ws = [(next(it), next(it)) for _ in range(n_sub)]
        per_layer.append((ws, next(it), next(it), next(it), next(it), next(it)))
    out_ref = next(it)

    slab_mm = x_ref[...]          # bf16 [Bt, K_l]: layer input, module-major lanes
    fused = None
    for (n_sub, M, E, E_pad, d_out, P_out), (ws, wg_ref, bg_ref, r_ref,
                                             s_ref, xg_ref) in zip(layer_cfgs,
                                                                   per_layer):
        # ---- experts: one lane-dense MXU matmul per sub-layer.  The packed
        # last sub-layer weight already replicates each expert's output M times
        # (expert-major, module-inner) and zero-pads the module slab to P_out,
        # so z[:, e*P_out + m*d_out + j] == h_e[:, j].
        h_mm = slab_mm
        z = None
        for k, (w_ref, b_ref) in enumerate(ws):
            z = jnp.dot(h_mm, w_ref[...], preferred_element_type=jnp.float32)
            z = jnp.maximum(z + b_ref[...], 0.0)          # f32
            if k + 1 < n_sub:
                h_mm = z.astype(MATMUL_DTYPE)

        # ---- gates: every module in one matmul; padded expert columns carry
        # a -1e30 bias so their softmax weight is exactly 0.
        logits = jnp.dot(slab_mm, wg_ref[...],
                         preferred_element_type=jnp.float32) + bg_ref[...]
        u = jnp.exp(logits - jnp.max(logits, axis=-1, keepdims=True))
        # per-module denominator broadcast to every lane of the module via one
        # tiny block-diagonal ones matmul (no per-module Python loop).
        denom = jnp.dot(u.astype(MATMUL_DTYPE), s_ref[...],
                        preferred_element_type=jnp.float32)
        inv = pl.reciprocal(jnp.maximum(denom, 1e-30), approx=True)
        gates = u * inv + r_ref[...]                      # [Bt, M*E_pad] f32

        # ---- fusion epilogue, fully vectorized:
        #   broadcast each gate to its d_out-wide lane group (static 0/1 MXU
        #   matmul), one full-width VPU multiply against the replicated expert
        #   slab, then a segment-sum of contiguous 128-aligned P_out blocks.
        ge = jnp.dot(gates.astype(MATMUL_DTYPE), xg_ref[...],
                     preferred_element_type=jnp.float32)  # [Bt, E_pad*P_out]
        fe = ge[:, :E * P_out] * z[:, :E * P_out]
        blocks = [fe[:, e * P_out:(e + 1) * P_out] for e in range(E)]
        while len(blocks) > 1:                            # log2(E) tree of adds
            nxt = [blocks[i] + blocks[i + 1]
                   for i in range(0, len(blocks) - 1, 2)]
            if len(blocks) % 2:
                nxt.append(blocks[-1])
            blocks = nxt
        fused = blocks[0]                                 # [Bt, P_out] f32
        slab_mm = fused.astype(MATMUL_DTYPE)              # next layer's input

    out_ref[...] = fused          # lane-dense (multiple-of-128) f32 store


def _resident_spec(arr, single_buffer):
    """Full-array block with a constant index -> stays resident in VMEM."""
    zeros = (0,) * arr.ndim
    if single_buffer:
        return pl.BlockSpec(arr.shape, lambda i, z=zeros: z,
                            pipeline_mode=pl.Buffered(1))
    return pl.BlockSpec(arr.shape, lambda i, z=zeros: z)


# ----------------------------------------------------------------------------
# Wrapper: batch grid + lane-dense output
# ----------------------------------------------------------------------------
def adatt_forward(x, packed_layers, layer_cfgs, num_tasks,
                  block_b=1024, min_grid_blocks=1):
    B, D = x.shape
    x = x.astype(MATMUL_DTYPE)    # bf16 input stream: halves input HBM traffic

    # Big batch tiles amortize the ~0.35us per-grid-step overhead; keep them a
    # multiple of 16 for bf16 sublane packing.  On v7x pass min_grid_blocks=2
    # so the "parallel" batch axis actually spans both TensorCores.
    n_blocks = max(_cdiv(B, block_b), min_grid_blocks)
    bt = _round_up(_cdiv(B, n_blocks), BT_ALIGN)
    n_blocks = _cdiv(B, bt)
    Bp = n_blocks * bt
    if Bp != B:
        x = jnp.pad(x, ((0, Bp - B), (0, 0)))

    _, M_last, _, _, d_last, P_last = layer_cfgs[-1]

    flat_weights = [a for la in packed_layers for a in la]
    args = [x] + flat_weights

    # VMEM budget: resident weights (x2 covers the double-buffered fallback) +
    # pipelined I/O tiles + live f32 intermediates; clamp to 64 MiB so the
    # limit is also valid on v7x's 64 MiB-per-TC VMEM.
    weight_bytes = sum(int(a.size) * a.dtype.itemsize for a in flat_weights)
    max_slab = max(cfg[3] * cfg[5] for cfg in layer_cfgs)       # E_pad * P_out
    inter_bytes = bt * max_slab * 4 * 4
    io_bytes = 2 * bt * (D * 2 + P_last * 4)
    vmem_limit = int(min(max(2 * weight_bytes + inter_bytes + io_bytes
                             + (8 << 20), 32 << 20), 64 << 20))

    def build(single_buffer):
        in_specs = [pl.BlockSpec((bt, D), lambda i: (i, 0))]
        in_specs += [_resident_spec(a, single_buffer) for a in flat_weights]
        return pl.pallas_call(
            functools.partial(_adatt_fused_kernel, tuple(layer_cfgs)),
            out_shape=jax.ShapeDtypeStruct((Bp, P_last), jnp.float32),
            grid=(n_blocks,),
            in_specs=in_specs,
            out_specs=pl.BlockSpec((bt, P_last), lambda i: (i, 0)),
            compiler_params=pltpu.CompilerParams(
                dimension_semantics=("parallel",),
                vmem_limit_bytes=vmem_limit,
            ),
        )

    try:
        # Single-buffer the resident weights (constant index_map) to halve
        # their VMEM footprint.
        out = jax.block_until_ready(build(True)(*args))
    except Exception:
        # Fallback if this Pallas build rejects pipeline_mode=pl.Buffered(1).
        out = build(False)(*args)

    out = out[:B, :M_last * d_last].reshape(B, M_last, d_last)
    return [out[:, t, :] for t in range(num_tasks)]


# ----------------------------------------------------------------------------
# Host-side packing of per-expert / per-module weights into block matrices
# ----------------------------------------------------------------------------
def pack_params(layer_params, expert_input_idx, num_tasks):
    E = len(expert_input_idx)
    E_pad = _round_up(max(E, 1), 8)

    packed, cfgs = [], []
    in_idx = [0] * E              # layer 0: every expert/gate reads the raw x
    prev_P_out = None
    for li, lp in enumerate(layer_params):
        mlp_ws = [np.asarray(w, np.float32) for w in lp["mlp_ws"]]
        mlp_bs = [np.asarray(b, np.float32) for b in lp["mlp_bs"]]
        wg = np.asarray(lp["wg"], np.float32)           # [M, d_in, E]
        bg = np.asarray(lp["bg"], np.float32)           # [M, E]
        R = np.asarray(lp["R"], np.float32)             # [M, E]
        M, d_in = int(wg.shape[0]), int(wg.shape[1])
        n_sub = len(mlp_ws)
        d_out = int(mlp_ws[-1].shape[-1])
        P_out = _round_up(M * d_out, 128)               # lane-dense module slab
        in_width = d_in if li == 0 else prev_P_out      # K of this layer's matmuls

        arrs = []
        d_prev = None
        for k in range(n_sub):
            w, b = mlp_ws[k], mlp_bs[k]                 # [E, dk_in, dk_out], [E, dk_out]
            dk_in, dk_out = int(w.shape[1]), int(w.shape[2])
            first, last = (k == 0), (k == n_sub - 1)
            K = in_width if first else E_pad * d_prev
            N = E_pad * P_out if last else E_pad * dk_out
            Wk = np.zeros((K, N), np.float32)
            Bk = np.zeros((1, N), np.float32)
            for e in range(E):
                rows = (slice(in_idx[e] * dk_in, in_idx[e] * dk_in + dk_in)
                        if first else slice(e * d_prev, (e + 1) * d_prev))
                if last:
                    # replicate expert e's output once per module (expert-major,
                    # module-inner) so the fusion epilogue is pure slab math.
                    for m in range(M):
                        c0 = e * P_out + m * dk_out
                        Wk[rows, c0:c0 + dk_out] = w[e]
                        Bk[0, c0:c0 + dk_out] = b[e]
                else:
                    Wk[rows, e * dk_out:(e + 1) * dk_out] = w[e]
                    Bk[0, e * dk_out:(e + 1) * dk_out] = b[e]
            arrs += [jnp.asarray(Wk, MATMUL_DTYPE), jnp.asarray(Bk, jnp.float32)]
            d_prev = dk_out

        # gates: block-structured weight; padded expert columns get a -1e30
        # bias (softmax weight exactly 0) and a 0 residual.
        Wg = np.zeros((in_width, M * E_pad), np.float32)
        Bg = np.full((1, M * E_pad), NEG_LOGIT, np.float32)
        Rr = np.zeros((1, M * E_pad), np.float32)
        # static 0/1 helpers: S = per-module ones block (softmax denominator
        # broadcast); X = gate -> d_out-wide lane-group expansion matched to
        # the replicated expert slab layout.
        S = np.zeros((M * E_pad, M * E_pad), np.float32)
        X = np.zeros((M * E_pad, E_pad * P_out), np.float32)
        for m in range(M):
            r0 = 0 if li == 0 else m * d_in
            Wg[r0:r0 + d_in, m * E_pad:m * E_pad + E] = wg[m]
            Bg[0, m * E_pad:m * E_pad + E] = bg[m]
            Rr[0, m * E_pad:m * E_pad + E] = R[m]
            S[m * E_pad:(m + 1) * E_pad, m * E_pad:(m + 1) * E_pad] = 1.0
            for e in range(E):
                c0 = e * P_out + m * d_out
                X[m * E_pad + e, c0:c0 + d_out] = 1.0
        arrs += [jnp.asarray(Wg, MATMUL_DTYPE), jnp.asarray(Bg, jnp.float32),
                 jnp.asarray(Rr, jnp.float32), jnp.asarray(S, MATMUL_DTYPE),
                 jnp.asarray(X, MATMUL_DTYPE)]

        packed.append(arrs)
        cfgs.append((n_sub, M, E, E_pad, d_out, P_out))

        in_idx = list(expert_input_idx)
        prev_P_out = P_out
    return packed, cfgs


# ----------------------------------------------------------------------------
# Pure-JAX reference (module semantics, f32 matmuls)
# ----------------------------------------------------------------------------
def adatt_forward_ref(x, layer_params, expert_input_idx, num_tasks):
    B, D = x.shape
    inputs = jnp.broadcast_to(x[:, None, :].astype(jnp.float32),
                              (B, num_tasks + 1, D))
    for lp in layer_params:
        M, E = lp["R"].shape
        experts = []
        for e in range(E):
            h = inputs[:, expert_input_idx[e], :]
            for w, b in zip(lp["mlp_ws"], lp["mlp_bs"]):
                h = jnp.maximum(h @ w[e] + b[e], 0.0)
            experts.append(h)
        experts = jnp.stack(experts, axis=1)                   # [B, E, D_out]
        gates = []
        for m in range(M):
            g = jax.nn.softmax(inputs[:, m, :] @ lp["wg"][m] + lp["bg"][m], axis=-1)
            gates.append(g + lp["R"][m])
        gates = jnp.stack(gates, axis=1)                       # [B, M, E]
        inputs = jnp.einsum("bme,bed->bmd", gates, experts)
    return [inputs[:, i, :] for i in range(num_tasks)]


# ----------------------------------------------------------------------------
# Deterministic parameter construction (mirrors the module's __init__ shapes)
# ----------------------------------------------------------------------------
def _uniform(key, shape, scale):
    return jax.random.uniform(key, shape, jnp.float32, -scale, scale)


def build_params(key, conf):
    num_tasks = conf["num_tasks"]
    expert_out_dims = conf["output_units"]
    num_layers = len(expert_out_dims)
    input_dim = conf["input_units"]

    num_expert_list = [conf["num_task_experts"] for _ in range(num_tasks)]
    num_expert_list.append(conf["num_shared_experts"])
    E = sum(num_expert_list)

    expert_input_idx = []
    for i in range(num_tasks + 1):
        expert_input_idx.extend([i] * num_expert_list[i])

    # self-expert residual weights (res connect; not all num_experts == 1)
    self_exp_weights = []
    for i in range(num_tasks + 1):
        n_active_layers = num_layers - 1 if i == num_tasks else num_layers
        key, k = jax.random.split(key)
        s = sqrt(1.0 / num_expert_list[i])
        self_exp_weights.append(
            np.asarray(_uniform(k, (max(n_active_layers, 1), num_expert_list[i]), s)))

    layer_params = []
    layer_input_dim = input_dim
    for layer_i, dims in enumerate(expert_out_dims):
        mlp_ws, mlp_bs = [], []
        d_in = layer_input_dim
        for d_out in dims:
            key, k1, k2 = jax.random.split(key, 3)
            s = 1.0 / sqrt(d_in)
            mlp_ws.append(_uniform(k1, (E, d_in, d_out), s))
            mlp_bs.append(_uniform(k2, (E, d_out), s))
            d_in = d_out

        M = num_tasks if layer_i == num_layers - 1 else num_tasks + 1
        key, k1, k2 = jax.random.split(key, 3)
        s = 1.0 / sqrt(layer_input_dim)
        wg = _uniform(k1, (M, layer_input_dim, E), s)
        bg = _uniform(k2, (M, E), s)

        # scatter self-expert residual weights into a dense [M, E] matrix
        R = np.zeros((M, E), dtype=np.float32)
        prev = 0
        for mod_i in range(num_tasks + 1):
            nxt = prev + num_expert_list[mod_i]
            if mod_i < M:
                R[mod_i, prev:nxt] = self_exp_weights[mod_i][layer_i]
            prev = nxt

        layer_params.append(
            dict(mlp_ws=mlp_ws, mlp_bs=mlp_bs, wg=wg, bg=bg, R=jnp.asarray(R)))
        layer_input_dim = dims[-1]

    return layer_params, expert_input_idx


# ----------------------------------------------------------------------------
if __name__ == "__main__":
    conf = dict(
        num_tasks=3,
        num_task_experts=2,
        num_shared_experts=1,
        output_units=[[32, 32], [32]],   # 2 extraction layers
        exp_res_connect=True,
        input_units=32,
        tower_hidden_units=[16],
        dropout=0.0,
        use_bn=False,
        tower_units=1,
        num_task_expert_list=None,
    )

    key = jax.random.PRNGKey(0)
    key, pkey, xkey = jax.random.split(key, 3)
    layer_params, expert_input_idx = build_params(pkey, conf)
    packed_layers, layer_cfgs = pack_params(layer_params, expert_input_idx,
                                            conf["num_tasks"])

    B = 8
    x = jax.random.normal(xkey, (B, conf["input_units"]), dtype=jnp.float32)

    outs = adatt_forward(x, packed_layers, layer_cfgs, conf["num_tasks"])
    outs = [jax.block_until_ready(o) for o in outs]

    refs = adatt_forward_ref(x, layer_params, expert_input_idx, conf["num_tasks"])
    refs = [jax.block_until_ready(o) for o in refs]

    ok = True
    for o, r in zip(outs, refs):
        ok = ok and (o.shape == (B, conf["output_units"][-1][-1]))
        # tolerance accounts for bf16 MXU operands (experts, gates, 0/1
        # expansion matmuls) + approx EUP reciprocal
        ok = ok and np.allclose(np.asarray(o), np.asarray(r), atol=3e-2, rtol=3e-2)
        ok = ok and bool(np.all(np.isfinite(np.asarray(o))))

    if ok:
        print("KERNEL_OK")
    else:
        raise SystemExit("mismatch between Pallas kernel and JAX reference")
</pallas_src>

<mosaic_0001>
module attributes {stable_mosaic.version = 11 : i64} {
  func.func @_adatt_fused_kernel(%arg0: i32, %arg1: memref<16x32xbf16, #tpu.memory_space<vmem>>, %arg2: memref<32x256xbf16, #tpu.memory_space<vmem>>, %arg3: memref<1x256xf32, #tpu.memory_space<vmem>>, %arg4: memref<256x1024xbf16, #tpu.memory_space<vmem>>, %arg5: memref<1x1024xf32, #tpu.memory_space<vmem>>, %arg6: memref<32x32xbf16, #tpu.memory_space<vmem>>, %arg7: memref<1x32xf32, #tpu.memory_space<vmem>>, %arg8: memref<1x32xf32, #tpu.memory_space<vmem>>, %arg9: memref<32x32xbf16, #tpu.memory_space<vmem>>, %arg10: memref<32x1024xbf16, #tpu.memory_space<vmem>>, %arg11: memref<128x1024xbf16, #tpu.memory_space<vmem>>, %arg12: memref<1x1024xf32, #tpu.memory_space<vmem>>, %arg13: memref<128x24xbf16, #tpu.memory_space<vmem>>, %arg14: memref<1x24xf32, #tpu.memory_space<vmem>>, %arg15: memref<1x24xf32, #tpu.memory_space<vmem>>, %arg16: memref<24x24xbf16, #tpu.memory_space<vmem>>, %arg17: memref<24x1024xbf16, #tpu.memory_space<vmem>>, %arg18: memref<16x128xf32, #tpu.memory_space<vmem>>) attributes {dimension_semantics = [#tpu.dimension_semantics<parallel>], iteration_bounds = array<i64: 1>, scalar_prefetch = 0 : i64, scratch_operands = 0 : i64, tpu.core_type = #tpu.core_type<tc>, window_params = [{transform_indices = @transform_0, window_bounds = array<i64: 16, 32>}, {pipeline_mode = #tpu.pipeline_mode<synchronous>, transform_indices = @transform_1, window_bounds = array<i64: 32, 256>}, {pipeline_mode = #tpu.pipeline_mode<synchronous>, transform_indices = @transform_2, window_bounds = array<i64: 1, 256>}, {pipeline_mode = #tpu.pipeline_mode<synchronous>, transform_indices = @transform_3, window_bounds = array<i64: 256, 1024>}, {pipeline_mode = #tpu.pipeline_mode<synchronous>, transform_indices = @transform_4, window_bounds = array<i64: 1, 1024>}, {pipeline_mode = #tpu.pipeline_mode<synchronous>, transform_indices = @transform_5, window_bounds = array<i64: 32, 32>}, {pipeline_mode = #tpu.pipeline_mode<synchronous>, transform_indices = @transform_6, window_bounds = array<i64: 1, 32>}, {pipeline_mode = #tpu.pipeline_mode<synchronous>, transform_indices = @transform_7, window_bounds = array<i64: 1, 32>}, {pipeline_mode = #tpu.pipeline_mode<synchronous>, transform_indices = @transform_8, window_bounds = array<i64: 32, 32>}, {pipeline_mode = #tpu.pipeline_mode<synchronous>, transform_indices = @transform_9, window_bounds = array<i64: 32, 1024>}, {pipeline_mode = #tpu.pipeline_mode<synchronous>, transform_indices = @transform_10, window_bounds = array<i64: 128, 1024>}, {pipeline_mode = #tpu.pipeline_mode<synchronous>, transform_indices = @transform_11, window_bounds = array<i64: 1, 1024>}, {pipeline_mode = #tpu.pipeline_mode<synchronous>, transform_indices = @transform_12, window_bounds = array<i64: 128, 24>}, {pipeline_mode = #tpu.pipeline_mode<synchronous>, transform_indices = @transform_13, window_bounds = array<i64: 1, 24>}, {pipeline_mode = #tpu.pipeline_mode<synchronous>, transform_indices = @transform_14, window_bounds = array<i64: 1, 24>}, {pipeline_mode = #tpu.pipeline_mode<synchronous>, transform_indices = @transform_15, window_bounds = array<i64: 24, 24>}, {pipeline_mode = #tpu.pipeline_mode<synchronous>, transform_indices = @transform_16, window_bounds = array<i64: 24, 1024>}, {transform_indices = @transform_17, window_bounds = array<i64: 16, 128>}]} {
    %c0 = arith.constant 0 : index
    %c0_0 = arith.constant 0 : index
    %0 = vector.load %arg1[%c0, %c0_0] : memref<16x32xbf16, #tpu.memory_space<vmem>>, vector<16x32xbf16>
    %c0_1 = arith.constant 0 : index
    %c0_2 = arith.constant 0 : index
    %1 = vector.load %arg2[%c0_1, %c0_2] : memref<32x256xbf16, #tpu.memory_space<vmem>>, vector<32x256xbf16>
    %cst = arith.constant dense<0.000000e+00> : vector<16x256xf32>
    %2 = tpu.matmul %0, %1, %cst {dimension_numbers = #tpu.dot_dimension_numbers<[1], [0], [0], [1], [0, 0, 1, 1], [], []>} : vector<16x32xbf16>, vector<32x256xbf16>, vector<16x256xf32> -> vector<16x256xf32>
    %c0_3 = arith.constant 0 : index
    %c0_4 = arith.constant 0 : index
    %3 = vector.load %arg3[%c0_3, %c0_4] : memref<1x256xf32, #tpu.memory_space<vmem>>, vector<1x256xf32>
    %4 = vector.broadcast %3 : vector<1x256xf32> to vector<16x256xf32>
    %5 = arith.addf %2, %4 : vector<16x256xf32>
    %cst_5 = arith.constant 0.000000e+00 : f32
    %6 = vector.broadcast %cst_5 : f32 to vector<16x256xf32>
    %7 = arith.maximumf %5, %6 : vector<16x256xf32>
    %8 = arith.truncf %7 : vector<16x256xf32> to vector<16x256xbf16>
    %c0_6 = arith.constant 0 : index
    %c0_7 = arith.constant 0 : index
    %9 = vector.load %arg4[%c0_6, %c0_7] : memref<256x1024xbf16, #tpu.memory_space<vmem>>, vector<256x1024xbf16>
    %cst_8 = arith.constant dense<0.000000e+00> : vector<16x1024xf32>
    %10 = tpu.matmul %8, %9, %cst_8 {dimension_numbers = #tpu.dot_dimension_numbers<[1], [0], [0], [1], [0, 0, 1, 1], [], []>} : vector<16x256xbf16>, vector<256x1024xbf16>, vector<16x1024xf32> -> vector<16x1024xf32>
    %c0_9 = arith.constant 0 : index
    %c0_10 = arith.constant 0 : index
    %11 = vector.load %arg5[%c0_9, %c0_10] : memref<1x1024xf32, #tpu.memory_space<vmem>>, vector<1x1024xf32>
    %12 = vector.broadcast %11 : vector<1x1024xf32> to vector<16x1024xf32>
    %13 = arith.addf %10, %12 : vector<16x1024xf32>
    %cst_11 = arith.constant 0.000000e+00 : f32
    %14 = vector.broadcast %cst_11 : f32 to vector<16x1024xf32>
    %15 = arith.maximumf %13, %14 : vector<16x1024xf32>
    %c0_12 = arith.constant 0 : index
    %c0_13 = arith.constant 0 : index
    %16 = vector.load %arg6[%c0_12, %c0_13] : memref<32x32xbf16, #tpu.memory_space<vmem>>, vector<32x32xbf16>
    %cst_14 = arith.constant dense<0.000000e+00> : vector<16x32xf32>
    %17 = tpu.matmul %0, %16, %cst_14 {dimension_numbers = #tpu.dot_dimension_numbers<[1], [0], [0], [1], [0, 0, 1, 1], [], []>} : vector<16x32xbf16>, vector<32x32xbf16>, vector<16x32xf32> -> vector<16x32xf32>
    %c0_15 = arith.constant 0 : index
    %c0_16 = arith.constant 0 : index
    %18 = vector.load %arg7[%c0_15, %c0_16] : memref<1x32xf32, #tpu.memory_space<vmem>>, vector<1x32xf32>
    %19 = vector.broadcast %18 : vector<1x32xf32> to vector<16x32xf32>
    %20 = arith.addf %17, %19 : vector<16x32xf32>
    %cst_17 = arith.constant dense<0xFF800000> : vector<16xf32>
    %21 = vector.multi_reduction <maximumf>, %20, %cst_17 [1] : vector<16x32xf32> to vector<16xf32>
    %22 = vector.shape_cast %21 : vector<16xf32> to vector<16x1xf32>
    %23 = vector.broadcast %22 : vector<16x1xf32> to vector<16x32xf32>
    %24 = arith.subf %20, %23 : vector<16x32xf32>
    %25 = math.exp %24 : vector<16x32xf32>
    %26 = arith.truncf %25 : vector<16x32xf32> to vector<16x32xbf16>
    %c0_18 = arith.constant 0 : index
    %c0_19 = arith.constant 0 : index
    %27 = vector.load %arg9[%c0_18, %c0_19] : memref<32x32xbf16, #tpu.memory_space<vmem>>, vector<32x32xbf16>
    %cst_20 = arith.constant dense<0.000000e+00> : vector<16x32xf32>
    %28 = tpu.matmul %26, %27, %cst_20 {dimension_numbers = #tpu.dot_dimension_numbers<[1], [0], [0], [1], [0, 0, 1, 1], [], []>} : vector<16x32xbf16>, vector<32x32xbf16>, vector<16x32xf32> -> vector<16x32xf32>
    %cst_21 = arith.constant 1.000000e-30 : f32
    %29 = vector.broadcast %cst_21 : f32 to vector<16x32xf32>
    %30 = arith.maximumf %28, %29 : vector<16x32xf32>
    %31 = tpu.reciprocal %30 {approx = true} : vector<16x32xf32> -> vector<16x32xf32>
    %32 = arith.mulf %25, %31 : vector<16x32xf32>
    %c0_22 = arith.constant 0 : index
    %c0_23 = arith.constant 0 : index
    %33 = vector.load %arg8[%c0_22, %c0_23] : memref<1x32xf32, #tpu.memory_space<vmem>>, vector<1x32xf32>
    %34 = vector.broadcast %33 : vector<1x32xf32> to vector<16x32xf32>
    %35 = arith.addf %32, %34 : vector<16x32xf32>
    %36 = arith.truncf %35 : vector<16x32xf32> to vector<16x32xbf16>
    %c0_24 = arith.constant 0 : index
    %c0_25 = arith.constant 0 : index
    %37 = vector.load %arg10[%c0_24, %c0_25] : memref<32x1024xbf16, #tpu.memory_space<vmem>>, vector<32x1024xbf16>
    %cst_26 = arith.constant dense<0.000000e+00> : vector<16x1024xf32>
    %38 = tpu.matmul %36, %37, %cst_26 {dimension_numbers = #tpu.dot_dimension_numbers<[1], [0], [0], [1], [0, 0, 1, 1], [], []>} : vector<16x32xbf16>, vector<32x1024xbf16>, vector<16x1024xf32> -> vector<16x1024xf32>
    %39 = vector.extract_strided_slice %38 {offsets = [0, 0], sizes = [16, 896], strides = [1, 1]} : vector<16x1024xf32> to vector<16x896xf32>
    %40 = vector.extract_strided_slice %15 {offsets = [0, 0], sizes = [16, 896], strides = [1, 1]} : vector<16x1024xf32> to vector<16x896xf32>
    %41 = arith.mulf %39, %40 : vector<16x896xf32>
    %42 = vector.extract_strided_slice %41 {offsets = [0, 0], sizes = [16, 128], strides = [1, 1]} : vector<16x896xf32> to vector<16x128xf32>
    %43 = vector.extract_strided_slice %41 {offsets = [0, 128], sizes = [16, 128], strides = [1, 1]} : vector<16x896xf32> to vector<16x128xf32>
    %44 = vector.extract_strided_slice %41 {offsets = [0, 256], sizes = [16, 128], strides = [1, 1]} : vector<16x896xf32> to vector<16x128xf32>
    %45 = vector.extract_strided_slice %41 {offsets = [0, 384], sizes = [16, 128], strides = [1, 1]} : vector<16x896xf32> to vector<16x128xf32>
    %46 = vector.extract_strided_slice %41 {offsets = [0, 512], sizes = [16, 128], strides = [1, 1]} : vector<16x896xf32> to vector<16x128xf32>
    %47 = vector.extract_strided_slice %41 {offsets = [0, 640], sizes = [16, 128], strides = [1, 1]} : vector<16x896xf32> to vector<16x128xf32>
    %48 = vector.extract_strided_slice %41 {offsets = [0, 768], sizes = [16, 128], strides = [1, 1]} : vector<16x896xf32> to vector<16x128xf32>
    %49 = arith.addf %42, %43 : vector<16x128xf32>
    %50 = arith.addf %44, %45 : vector<16x128xf32>
    %51 = arith.addf %46, %47 : vector<16x128xf32>
    %52 = arith.addf %49, %50 : vector<16x128xf32>
    %53 = arith.addf %51, %48 : vector<16x128xf32>
    %54 = arith.addf %52, %53 : vector<16x128xf32>
    %55 = arith.truncf %54 : vector<16x128xf32> to vector<16x128xbf16>
    %c0_27 = arith.constant 0 : index
    %c0_28 = arith.constant 0 : index
    %56 = vector.load %arg11[%c0_27, %c0_28] : memref<128x1024xbf16, #tpu.memory_space<vmem>>, vector<128x1024xbf16>
    %cst_29 = arith.constant dense<0.000000e+00> : vector<16x1024xf32>
    %57 = tpu.matmul %55, %56, %cst_29 {dimension_numbers = #tpu.dot_dimension_numbers<[1], [0], [0], [1], [0, 0, 1, 1], [], []>} : vector<16x128xbf16>, vector<128x1024xbf16>, vector<16x1024xf32> -> vector<16x1024xf32>
    %c0_30 = arith.constant 0 : index
    %c0_31 = arith.constant 0 : index
    %58 = vector.load %arg12[%c0_30, %c0_31] : memref<1x1024xf32, #tpu.memory_space<vmem>>, vector<1x1024xf32>
    %59 = vector.broadcast %58 : vector<1x1024xf32> to vector<16x1024xf32>
    %60 = arith.addf %57, %59 : vector<16x1024xf32>
    %cst_32 = arith.constant 0.000000e+00 : f32
    %61 = vector.broadcast %cst_32 : f32 to vector<16x1024xf32>
    %62 = arith.maximumf %60, %61 : vector<16x1024xf32>
    %c0_33 = arith.constant 0 : index
    %c0_34 = arith.constant 0 : index
    %63 = vector.load %arg13[%c0_33, %c0_34] : memref<128x24xbf16, #tpu.memory_space<vmem>>, vector<128x24xbf16>
    %cst_35 = arith.constant dense<0.000000e+00> : vector<16x24xf32>
    %64 = tpu.matmul %55, %63, %cst_35 {dimension_numbers = #tpu.dot_dimension_numbers<[1], [0], [0], [1], [0, 0, 1, 1], [], []>} : vector<16x128xbf16>, vector<128x24xbf16>, vector<16x24xf32> -> vector<16x24xf32>
    %c0_36 = arith.constant 0 : index
    %c0_37 = arith.constant 0 : index
    %65 = vector.load %arg14[%c0_36, %c0_37] : memref<1x24xf32, #tpu.memory_space<vmem>>, vector<1x24xf32>
    %66 = vector.broadcast %65 : vector<1x24xf32> to vector<16x24xf32>
    %67 = arith.addf %64, %66 : vector<16x24xf32>
    %cst_38 = arith.constant dense<0xFF800000> : vector<16xf32>
    %68 = vector.multi_reduction <maximumf>, %67, %cst_38 [1] : vector<16x24xf32> to vector<16xf32>
    %69 = vector.shape_cast %68 : vector<16xf32> to vector<16x1xf32>
    %70 = vector.broadcast %69 : vector<16x1xf32> to vector<16x24xf32>
    %71 = arith.subf %67, %70 : vector<16x24xf32>
    %72 = math.exp %71 : vector<16x24xf32>
    %73 = arith.truncf %72 : vector<16x24xf32> to vector<16x24xbf16>
    %c0_39 = arith.constant 0 : index
    %c0_40 = arith.constant 0 : index
    %74 = vector.load %arg16[%c0_39, %c0_40] : memref<24x24xbf16, #tpu.memory_space<vmem>>, vector<24x24xbf16>
    %cst_41 = arith.constant dense<0.000000e+00> : vector<16x24xf32>
    %75 = tpu.matmul %73, %74, %cst_41 {dimension_numbers = #tpu.dot_dimension_numbers<[1], [0], [0], [1], [0, 0, 1, 1], [], []>} : vector<16x24xbf16>, vector<24x24xbf16>, vector<16x24xf32> -> vector<16x24xf32>
    %cst_42 = arith.constant 1.000000e-30 : f32
    %76 = vector.broadcast %cst_42 : f32 to vector<16x24xf32>
    %77 = arith.maximumf %75, %76 : vector<16x24xf32>
    %78 = tpu.reciprocal %77 {approx = true} : vector<16x24xf32> -> vector<16x24xf32>
    %79 = arith.mulf %72, %78 : vector<16x24xf32>
    %c0_43 = arith.constant 0 : index
    %c0_44 = arith.constant 0 : index
    %80 = vector.load %arg15[%c0_43, %c0_44] : memref<1x24xf32, #tpu.memory_space<vmem>>, vector<1x24xf32>
    %81 = vector.broadcast %80 : vector<1x24xf32> to vector<16x24xf32>
    %82 = arith.addf %79, %81 : vector<16x24xf32>
    %83 = arith.truncf %82 : vector<16x24xf32> to vector<16x24xbf16>
    %c0_45 = arith.constant 0 : index
    %c0_46 = arith.constant 0 : index
    %84 = vector.load %arg17[%c0_45, %c0_46] : memref<24x1024xbf16, #tpu.memory_space<vmem>>, vector<24x1024xbf16>
    %cst_47 = arith.constant dense<0.000000e+00> : vector<16x1024xf32>
    %85 = tpu.matmul %83, %84, %cst_47 {dimension_numbers = #tpu.dot_dimension_numbers<[1], [0], [0], [1], [0, 0, 1, 1], [], []>} : vector<16x24xbf16>, vector<24x1024xbf16>, vector<16x1024xf32> -> vector<16x1024xf32>
    %86 = vector.extract_strided_slice %85 {offsets = [0, 0], sizes = [16, 896], strides = [1, 1]} : vector<16x1024xf32> to vector<16x896xf32>
    %87 = vector.extract_strided_slice %62 {offsets = [0, 0], sizes = [16, 896], strides = [1, 1]} : vector<16x1024xf32> to vector<16x896xf32>
    %88 = arith.mulf %86, %87 : vector<16x896xf32>
    %89 = vector.extract_strided_slice %88 {offsets = [0, 0], sizes = [16, 128], strides = [1, 1]} : vector<16x896xf32> to vector<16x128xf32>
    %90 = vector.extract_strided_slice %88 {offsets = [0, 128], sizes = [16, 128], strides = [1, 1]} : vector<16x896xf32> to vector<16x128xf32>
    %91 = vector.extract_strided_slice %88 {offsets = [0, 256], sizes = [16, 128], strides = [1, 1]} : vector<16x896xf32> to vector<16x128xf32>
    %92 = vector.extract_strided_slice %88 {offsets = [0, 384], sizes = [16, 128], strides = [1, 1]} : vector<16x896xf32> to vector<16x128xf32>
    %93 = vector.extract_strided_slice %88 {offsets = [0, 512], sizes = [16, 128], strides = [1, 1]} : vector<16x896xf32> to vector<16x128xf32>
    %94 = vector.extract_strided_slice %88 {offsets = [0, 640], sizes = [16, 128], strides = [1, 1]} : vector<16x896xf32> to vector<16x128xf32>
    %95 = vector.extract_strided_slice %88 {offsets = [0, 768], sizes = [16, 128], strides = [1, 1]} : vector<16x896xf32> to vector<16x128xf32>
    %96 = arith.addf %89, %90 : vector<16x128xf32>
    %97 = arith.addf %91, %92 : vector<16x128xf32>
    %98 = arith.addf %93, %94 : vector<16x128xf32>
    %99 = arith.addf %96, %97 : vector<16x128xf32>
    %100 = arith.addf %98, %95 : vector<16x128xf32>
    %101 = arith.addf %99, %100 : vector<16x128xf32>
    %c0_48 = arith.constant 0 : index
    %c0_49 = arith.constant 0 : index
    %102 = vector.load %arg18[%c0_48, %c0_49] : memref<16x128xf32, #tpu.memory_space<vmem>>, vector<16x128xf32>
    tpu.vector_store %arg18[%c0_48, %c0_49], %101 {strides = array<i32>} : memref<16x128xf32, #tpu.memory_space<vmem>>, vector<16x128xf32>,
    return
  }
  func.func @transform_0(%arg0: i32) -> (i32, i32) {
    %c0_i32 = arith.constant 0 : i32
    %c0_i32_0 = arith.constant 0 : i32
    return %arg0, %c0_i32 : i32, i32
  }
  func.func @transform_1(%arg0: i32) -> (i32, i32) {
    %c0_i32 = arith.constant 0 : i32
    %c0_i32_0 = arith.constant 0 : i32
    %c0_i32_1 = arith.constant 0 : i32
    return %c0_i32, %c0_i32_0 : i32, i32
  }
  func.func @transform_2(%arg0: i32) -> (i32, i32) {
    %c0_i32 = arith.constant 0 : i32
    %c0_i32_0 = arith.constant 0 : i32
    %c0_i32_1 = arith.constant 0 : i32
    return %c0_i32, %c0_i32_0 : i32, i32
  }
  func.func @transform_3(%arg0: i32) -> (i32, i32) {
    %c0_i32 = arith.constant 0 : i32
    %c0_i32_0 = arith.constant 0 : i32
    %c0_i32_1 = arith.constant 0 : i32
    return %c0_i32, %c0_i32_0 : i32, i32
  }
  func.func @transform_4(%arg0: i32) -> (i32, i32) {
    %c0_i32 = arith.constant 0 : i32
    %c0_i32_0 = arith.constant 0 : i32
    %c0_i32_1 = arith.constant 0 : i32
    return %c0_i32, %c0_i32_0 : i32, i32
  }
  func.func @transform_5(%arg0: i32) -> (i32, i32) {
    %c0_i32 = arith.constant 0 : i32
    %c0_i32_0 = arith.constant 0 : i32
    %c0_i32_1 = arith.constant 0 : i32
    return %c0_i32, %c0_i32_0 : i32, i32
  }
  func.func @transform_6(%arg0: i32) -> (i32, i32) {
    %c0_i32 = arith.constant 0 : i32
    %c0_i32_0 = arith.constant 0 : i32
    %c0_i32_1 = arith.constant 0 : i32
    return %c0_i32, %c0_i32_0 : i32, i32
  }
  func.func @transform_7(%arg0: i32) -> (i32, i32) {
    %c0_i32 = arith.constant 0 : i32
    %c0_i32_0 = arith.constant 0 : i32
    %c0_i32_1 = arith.constant 0 : i32
    return %c0_i32, %c0_i32_0 : i32, i32
  }
  func.func @transform_8(%arg0: i32) -> (i32, i32) {
    %c0_i32 = arith.constant 0 : i32
    %c0_i32_0 = arith.constant 0 : i32
    %c0_i32_1 = arith.constant 0 : i32
    return %c0_i32, %c0_i32_0 : i32, i32
  }
  func.func @transform_9(%arg0: i32) -> (i32, i32) {
    %c0_i32 = arith.constant 0 : i32
    %c0_i32_0 = arith.constant 0 : i32
    %c0_i32_1 = arith.constant 0 : i32
    return %c0_i32, %c0_i32_0 : i32, i32
  }
  func.func @transform_10(%arg0: i32) -> (i32, i32) {
    %c0_i32 = arith.constant 0 : i32
    %c0_i32_0 = arith.constant 0 : i32
    %c0_i32_1 = arith.constant 0 : i32
    return %c0_i32, %c0_i32_0 : i32, i32
  }
  func.func @transform_11(%arg0: i32) -> (i32, i32) {
    %c0_i32 = arith.constant 0 : i32
    %c0_i32_0 = arith.constant 0 : i32
    %c0_i32_1 = arith.constant 0 : i32
    return %c0_i32, %c0_i32_0 : i32, i32
  }
  func.func @transform_12(%arg0: i32) -> (i32, i32) {
    %c0_i32 = arith.constant 0 : i32
    %c0_i32_0 = arith.constant 0 : i32
    %c0_i32_1 = arith.constant 0 : i32
    return %c0_i32, %c0_i32_0 : i32, i32
  }
  func.func @transform_13(%arg0: i32) -> (i32, i32) {
    %c0_i32 = arith.constant 0 : i32
    %c0_i32_0 = arith.constant 0 : i32
    %c0_i32_1 = arith.constant 0 : i32
    return %c0_i32, %c0_i32_0 : i32, i32
  }
  func.func @transform_14(%arg0: i32) -> (i32, i32) {
    %c0_i32 = arith.constant 0 : i32
    %c0_i32_0 = arith.constant 0 : i32
    %c0_i32_1 = arith.constant 0 : i32
    return %c0_i32, %c0_i32_0 : i32, i32
  }
  func.func @transform_15(%arg0: i32) -> (i32, i32) {
    %c0_i32 = arith.constant 0 : i32
    %c0_i32_0 = arith.constant 0 : i32
    %c0_i32_1 = arith.constant 0 : i32
    return %c0_i32, %c0_i32_0 : i32, i32
  }
  func.func @transform_16(%arg0: i32) -> (i32, i32) {
    %c0_i32 = arith.constant 0 : i32
    %c0_i32_0 = arith.constant 0 : i32
    %c0_i32_1 = arith.constant 0 : i32
    return %c0_i32, %c0_i32_0 : i32, i32
  }
  func.func @transform_17(%arg0: i32) -> (i32, i32) {
    %c0_i32 = arith.constant 0 : i32
    %c0_i32_0 = arith.constant 0 : i32
    return %arg0, %c0_i32 : i32, i32
  }
}

module attributes {stable_mosaic.version = 11 : i64} {
  func.func @_adatt_fused_kernel(%arg0: i32, %arg1: memref<16x32xbf16, #tpu.memory_space<vmem>>, %arg2: memref<32x256xbf16, #tpu.memory_space<vmem>>, %arg3: memref<1x256xf32, #tpu.memory_space<vmem>>, %arg4: memref<256x1024xbf16, #tpu.memory_space<vmem>>, %arg5: memref<1x1024xf32, #tpu.memory_space<vmem>>, %arg6: memref<32x32xbf16, #tpu.memory_space<vmem>>, %arg7: memref<1x32xf32, #tpu.memory_space<vmem>>, %arg8: memref<1x32xf32, #tpu.memory_space<vmem>>, %arg9: memref<32x32xbf16, #tpu.memory_space<vmem>>, %arg10: memref<32x1024xbf16, #tpu.memory_space<vmem>>, %arg11: memref<128x1024xbf16, #tpu.memory_space<vmem>>, %arg12: memref<1x1024xf32, #tpu.memory_space<vmem>>, %arg13: memref<128x24xbf16, #tpu.memory_space<vmem>>, %arg14: memref<1x24xf32, #tpu.memory_space<vmem>>, %arg15: memref<1x24xf32, #tpu.memory_space<vmem>>, %arg16: memref<24x24xbf16, #tpu.memory_space<vmem>>, %arg17: memref<24x1024xbf16, #tpu.memory_space<vmem>>, %arg18: memref<16x128xf32, #tpu.memory_space<vmem>>) attributes {dimension_semantics = [#tpu.dimension_semantics<parallel>], iteration_bounds = array<i64: 1>, scalar_prefetch = 0 : i64, scratch_operands = 0 : i64, tpu.core_type = #tpu.core_type<tc>, window_params = [{transform_indices = @transform_0, window_bounds = array<i64: 16, 32>}, {pipeline_mode = #tpu.pipeline_mode<synchronous>, transform_indices = @transform_1, window_bounds = array<i64: 32, 256>}, {pipeline_mode = #tpu.pipeline_mode<synchronous>, transform_indices = @transform_2, window_bounds = array<i64: 1, 256>}, {pipeline_mode = #tpu.pipeline_mode<synchronous>, transform_indices = @transform_3, window_bounds = array<i64: 256, 1024>}, {pipeline_mode = #tpu.pipeline_mode<synchronous>, transform_indices = @transform_4, window_bounds = array<i64: 1, 1024>}, {pipeline_mode = #tpu.pipeline_mode<synchronous>, transform_indices = @transform_5, window_bounds = array<i64: 32, 32>}, {pipeline_mode = #tpu.pipeline_mode<synchronous>, transform_indices = @transform_6, window_bounds = array<i64: 1, 32>}, {pipeline_mode = #tpu.pipeline_mode<synchronous>, transform_indices = @transform_7, window_bounds = array<i64: 1, 32>}, {pipeline_mode = #tpu.pipeline_mode<synchronous>, transform_indices = @transform_8, window_bounds = array<i64: 32, 32>}, {pipeline_mode = #tpu.pipeline_mode<synchronous>, transform_indices = @transform_9, window_bounds = array<i64: 32, 1024>}, {pipeline_mode = #tpu.pipeline_mode<synchronous>, transform_indices = @transform_10, window_bounds = array<i64: 128, 1024>}, {pipeline_mode = #tpu.pipeline_mode<synchronous>, transform_indices = @transform_11, window_bounds = array<i64: 1, 1024>}, {pipeline_mode = #tpu.pipeline_mode<synchronous>, transform_indices = @transform_12, window_bounds = array<i64: 128, 24>}, {pipeline_mode = #tpu.pipeline_mode<synchronous>, transform_indices = @transform_13, window_bounds = array<i64: 1, 24>}, {pipeline_mode = #tpu.pipeline_mode<synchronous>, transform_indices = @transform_14, window_bounds = array<i64: 1, 24>}, {pipeline_mode = #tpu.pipeline_mode<synchronous>, transform_indices = @transform_15, window_bounds = array<i64: 24, 24>}, {pipeline_mode = #tpu.pipeline_mode<synchronous>, transform_indices = @transform_16, window_bounds = array<i64: 24, 1024>}, {transform_indices = @transform_17, window_bounds = array<i64: 16, 128>}]} {
    %c0 = arith.constant 0 : index
    %c0_0 = arith.constant 0 : index
    %0 = vector.load %arg1[%c0, %c0_0] : memref<16x32xbf16, #tpu.memory_space<vmem>>, vector<16x32xbf16>
    %c0_1 = arith.constant 0 : index
    %c0_2 = arith.constant 0 : index
    %1 = vector.load %arg2[%c0_1, %c0_2] : memref<32x256xbf16, #tpu.memory_space<vmem>>, vector<32x256xbf16>
    %cst = arith.constant dense<0.000000e+00> : vector<16x256xf32>
    %2 = tpu.matmul %0, %1, %cst {dimension_numbers = #tpu.dot_dimension_numbers<[1], [0], [0], [1], [0, 0, 1, 1], [], []>} : vector<16x32xbf16>, vector<32x256xbf16>, vector<16x256xf32> -> vector<16x256xf32>
    %c0_3 = arith.constant 0 : index
    %c0_4 = arith.constant 0 : index
    %3 = vector.load %arg3[%c0_3, %c0_4] : memref<1x256xf32, #tpu.memory_space<vmem>>, vector<1x256xf32>
    %4 = vector.broadcast %3 : vector<1x256xf32> to vector<16x256xf32>
    %5 = arith.addf %2, %4 : vector<16x256xf32>
    %cst_5 = arith.constant 0.000000e+00 : f32
    %6 = vector.broadcast %cst_5 : f32 to vector<16x256xf32>
    %7 = arith.maximumf %5, %6 : vector<16x256xf32>
    %8 = arith.truncf %7 : vector<16x256xf32> to vector<16x256xbf16>
    %c0_6 = arith.constant 0 : index
    %c0_7 = arith.constant 0 : index
    %9 = vector.load %arg4[%c0_6, %c0_7] : memref<256x1024xbf16, #tpu.memory_space<vmem>>, vector<256x1024xbf16>
    %cst_8 = arith.constant dense<0.000000e+00> : vector<16x1024xf32>
    %10 = tpu.matmul %8, %9, %cst_8 {dimension_numbers = #tpu.dot_dimension_numbers<[1], [0], [0], [1], [0, 0, 1, 1], [], []>} : vector<16x256xbf16>, vector<256x1024xbf16>, vector<16x1024xf32> -> vector<16x1024xf32>
    %c0_9 = arith.constant 0 : index
    %c0_10 = arith.constant 0 : index
    %11 = vector.load %arg5[%c0_9, %c0_10] : memref<1x1024xf32, #tpu.memory_space<vmem>>, vector<1x1024xf32>
    %12 = vector.broadcast %11 : vector<1x1024xf32> to vector<16x1024xf32>
    %13 = arith.addf %10, %12 : vector<16x1024xf32>
    %cst_11 = arith.constant 0.000000e+00 : f32
    %14 = vector.broadcast %cst_11 : f32 to vector<16x1024xf32>
    %15 = arith.maximumf %13, %14 : vector<16x1024xf32>
    %c0_12 = arith.constant 0 : index
    %c0_13 = arith.constant 0 : index
    %16 = vector.load %arg6[%c0_12, %c0_13] : memref<32x32xbf16, #tpu.memory_space<vmem>>, vector<32x32xbf16>
    %cst_14 = arith.constant dense<0.000000e+00> : vector<16x32xf32>
    %17 = tpu.matmul %0, %16, %cst_14 {dimension_numbers = #tpu.dot_dimension_numbers<[1], [0], [0], [1], [0, 0, 1, 1], [], []>} : vector<16x32xbf16>, vector<32x32xbf16>, vector<16x32xf32> -> vector<16x32xf32>
    %c0_15 = arith.constant 0 : index
    %c0_16 = arith.constant 0 : index
    %18 = vector.load %arg7[%c0_15, %c0_16] : memref<1x32xf32, #tpu.memory_space<vmem>>, vector<1x32xf32>
    %19 = vector.broadcast %18 : vector<1x32xf32> to vector<16x32xf32>
    %20 = arith.addf %17, %19 : vector<16x32xf32>
    %cst_17 = arith.constant dense<0xFF800000> : vector<16xf32>
    %21 = vector.multi_reduction <maximumf>, %20, %cst_17 [1] : vector<16x32xf32> to vector<16xf32>
    %22 = vector.shape_cast %21 : vector<16xf32> to vector<16x1xf32>
    %23 = vector.broadcast %22 : vector<16x1xf32> to vector<16x32xf32>
    %24 = arith.subf %20, %23 : vector<16x32xf32>
    %25 = math.exp %24 : vector<16x32xf32>
    %26 = arith.truncf %25 : vector<16x32xf32> to vector<16x32xbf16>
    %c0_18 = arith.constant 0 : index
    %c0_19 = arith.constant 0 : index
    %27 = vector.load %arg9[%c0_18, %c0_19] : memref<32x32xbf16, #tpu.memory_space<vmem>>, vector<32x32xbf16>
    %cst_20 = arith.constant dense<0.000000e+00> : vector<16x32xf32>
    %28 = tpu.matmul %26, %27, %cst_20 {dimension_numbers = #tpu.dot_dimension_numbers<[1], [0], [0], [1], [0, 0, 1, 1], [], []>} : vector<16x32xbf16>, vector<32x32xbf16>, vector<16x32xf32> -> vector<16x32xf32>
    %cst_21 = arith.constant 1.000000e-30 : f32
    %29 = vector.broadcast %cst_21 : f32 to vector<16x32xf32>
    %30 = arith.maximumf %28, %29 : vector<16x32xf32>
    %31 = tpu.reciprocal %30 {approx = true} : vector<16x32xf32> -> vector<16x32xf32>
    %32 = arith.mulf %25, %31 : vector<16x32xf32>
    %c0_22 = arith.constant 0 : index
    %c0_23 = arith.constant 0 : index
    %33 = vector.load %arg8[%c0_22, %c0_23] : memref<1x32xf32, #tpu.memory_space<vmem>>, vector<1x32xf32>
    %34 = vector.broadcast %33 : vector<1x32xf32> to vector<16x32xf32>
    %35 = arith.addf %32, %34 : vector<16x32xf32>
    %36 = arith.truncf %35 : vector<16x32xf32> to vector<16x32xbf16>
    %c0_24 = arith.constant 0 : index
    %c0_25 = arith.constant 0 : index
    %37 = vector.load %arg10[%c0_24, %c0_25] : memref<32x1024xbf16, #tpu.memory_space<vmem>>, vector<32x1024xbf16>
    %cst_26 = arith.constant dense<0.000000e+00> : vector<16x1024xf32>
    %38 = tpu.matmul %36, %37, %cst_26 {dimension_numbers = #tpu.dot_dimension_numbers<[1], [0], [0], [1], [0, 0, 1, 1], [], []>} : vector<16x32xbf16>, vector<32x1024xbf16>, vector<16x1024xf32> -> vector<16x1024xf32>
    %39 = vector.extract_strided_slice %38 {offsets = [0, 0], sizes = [16, 896], strides = [1, 1]} : vector<16x1024xf32> to vector<16x896xf32>
    %40 = vector.extract_strided_slice %15 {offsets = [0, 0], sizes = [16, 896], strides = [1, 1]} : vector<16x1024xf32> to vector<16x896xf32>
    %41 = arith.mulf %39, %40 : vector<16x896xf32>
    %42 = vector.extract_strided_slice %41 {offsets = [0, 0], sizes = [16, 128], strides = [1, 1]} : vector<16x896xf32> to vector<16x128xf32>
    %43 = vector.extract_strided_slice %41 {offsets = [0, 128], sizes = [16, 128], strides = [1, 1]} : vector<16x896xf32> to vector<16x128xf32>
    %44 = vector.extract_strided_slice %41 {offsets = [0, 256], sizes = [16, 128], strides = [1, 1]} : vector<16x896xf32> to vector<16x128xf32>
    %45 = vector.extract_strided_slice %41 {offsets = [0, 384], sizes = [16, 128], strides = [1, 1]} : vector<16x896xf32> to vector<16x128xf32>
    %46 = vector.extract_strided_slice %41 {offsets = [0, 512], sizes = [16, 128], strides = [1, 1]} : vector<16x896xf32> to vector<16x128xf32>
    %47 = vector.extract_strided_slice %41 {offsets = [0, 640], sizes = [16, 128], strides = [1, 1]} : vector<16x896xf32> to vector<16x128xf32>
    %48 = vector.extract_strided_slice %41 {offsets = [0, 768], sizes = [16, 128], strides = [1, 1]} : vector<16x896xf32> to vector<16x128xf32>
    %49 = arith.addf %42, %43 : vector<16x128xf32>
    %50 = arith.addf %44, %45 : vector<16x128xf32>
    %51 = arith.addf %46, %47 : vector<16x128xf32>
    %52 = arith.addf %49, %50 : vector<16x128xf32>
    %53 = arith.addf %51, %48 : vector<16x128xf32>
    %54 = arith.addf %52, %53 : vector<16x128xf32>
    %55 = arith.truncf %54 : vector<16x128xf32> to vector<16x128xbf16>
    %c0_27 = arith.constant 0 : index
    %c0_28 = arith.constant 0 : index
    %56 = vector.load %arg11[%c0_27, %c0_28] : memref<128x1024xbf16, #tpu.memory_space<vmem>>, vector<128x1024xbf16>
    %cst_29 = arith.constant dense<0.000000e+00> : vector<16x1024xf32>
    %57 = tpu.matmul %55, %56, %cst_29 {dimension_numbers = #tpu.dot_dimension_numbers<[1], [0], [0], [1], [0, 0, 1, 1], [], []>} : vector<16x128xbf16>, vector<128x1024xbf16>, vector<16x1024xf32> -> vector<16x1024xf32>
    %c0_30 = arith.constant 0 : index
    %c0_31 = arith.constant 0 : index
    %58 = vector.load %arg12[%c0_30, %c0_31] : memref<1x1024xf32, #tpu.memory_space<vmem>>, vector<1x1024xf32>
    %59 = vector.broadcast %58 : vector<1x1024xf32> to vector<16x1024xf32>
    %60 = arith.addf %57, %59 : vector<16x1024xf32>
    %cst_32 = arith.constant 0.000000e+00 : f32
    %61 = vector.broadcast %cst_32 : f32 to vector<16x1024xf32>
    %62 = arith.maximumf %60, %61 : vector<16x1024xf32>
    %c0_33 = arith.constant 0 : index
    %c0_34 = arith.constant 0 : index
    %63 = vector.load %arg13[%c0_33, %c0_34] : memref<128x24xbf16, #tpu.memory_space<vmem>>, vector<128x24xbf16>
    %cst_35 = arith.constant dense<0.000000e+00> : vector<16x24xf32>
    %64 = tpu.matmul %55, %63, %cst_35 {dimension_numbers = #tpu.dot_dimension_numbers<[1], [0], [0], [1], [0, 0, 1, 1], [], []>} : vector<16x128xbf16>, vector<128x24xbf16>, vector<16x24xf32> -> vector<16x24xf32>
    %c0_36 = arith.constant 0 : index
    %c0_37 = arith.constant 0 : index
    %65 = vector.load %arg14[%c0_36, %c0_37] : memref<1x24xf32, #tpu.memory_space<vmem>>, vector<1x24xf32>
    %66 = vector.broadcast %65 : vector<1x24xf32> to vector<16x24xf32>
    %67 = arith.addf %64, %66 : vector<16x24xf32>
    %cst_38 = arith.constant dense<0xFF800000> : vector<16xf32>
    %68 = vector.multi_reduction <maximumf>, %67, %cst_38 [1] : vector<16x24xf32> to vector<16xf32>
    %69 = vector.shape_cast %68 : vector<16xf32> to vector<16x1xf32>
    %70 = vector.broadcast %69 : vector<16x1xf32> to vector<16x24xf32>
    %71 = arith.subf %67, %70 : vector<16x24xf32>
    %72 = math.exp %71 : vector<16x24xf32>
    %73 = arith.truncf %72 : vector<16x24xf32> to vector<16x24xbf16>
    %c0_39 = arith.constant 0 : index
    %c0_40 = arith.constant 0 : index
    %74 = vector.load %arg16[%c0_39, %c0_40] : memref<24x24xbf16, #tpu.memory_space<vmem>>, vector<24x24xbf16>
    %cst_41 = arith.constant dense<0.000000e+00> : vector<16x24xf32>
    %75 = tpu.matmul %73, %74, %cst_41 {dimension_numbers = #tpu.dot_dimension_numbers<[1], [0], [0], [1], [0, 0, 1, 1], [], []>} : vector<16x24xbf16>, vector<24x24xbf16>, vector<16x24xf32> -> vector<16x24xf32>
    %cst_42 = arith.constant 1.000000e-30 : f32
    %76 = vector.broadcast %cst_42 : f32 to vector<16x24xf32>
    %77 = arith.maximumf %75, %76 : vector<16x24xf32>
    %78 = tpu.reciprocal %77 {approx = true} : vector<16x24xf32> -> vector<16x24xf32>
    %79 = arith.mulf %72, %78 : vector<16x24xf32>
    %c0_43 = arith.constant 0 : index
    %c0_44 = arith.constant 0 : index
    %80 = vector.load %arg15[%c0_43, %c0_44] : memref<1x24xf32, #tpu.memory_space<vmem>>, vector<1x24xf32>
    %81 = vector.broadcast %80 : vector<1x24xf32> to vector<16x24xf32>
    %82 = arith.addf %79, %81 : vector<16x24xf32>
    %83 = arith.truncf %82 : vector<16x24xf32> to vector<16x24xbf16>
    %c0_45 = arith.constant 0 : index
    %c0_46 = arith.constant 0 : index
    %84 = vector.load %arg17[%c0_45, %c0_46] : memref<24x1024xbf16, #tpu.memory_space<vmem>>, vector<24x1024xbf16>
    %cst_47 = arith.constant dense<0.000000e+00> : vector<16x1024xf32>
    %85 = tpu.matmul %83, %84, %cst_47 {dimension_numbers = #tpu.dot_dimension_numbers<[1], [0], [0], [1], [0, 0, 1, 1], [], []>} : vector<16x24xbf16>, vector<24x1024xbf16>, vector<16x1024xf32> -> vector<16x1024xf32>
    %86 = vector.extract_strided_slice %85 {offsets = [0, 0], sizes = [16, 896], strides = [1, 1]} : vector<16x1024xf32> to vector<16x896xf32>
    %87 = vector.extract_strided_slice %62 {offsets = [0, 0], sizes = [16, 896], strides = [1, 1]} : vector<16x1024xf32> to vector<16x896xf32>
    %88 = arith.mulf %86, %87 : vector<16x896xf32>
    %89 = vector.extract_strided_slice %88 {offsets = [0, 0], sizes = [16, 128], strides = [1, 1]} : vector<16x896xf32> to vector<16x128xf32>
    %90 = vector.extract_strided_slice %88 {offsets = [0, 128], sizes = [16, 128], strides = [1, 1]} : vector<16x896xf32> to vector<16x128xf32>
    %91 = vector.extract_strided_slice %88 {offsets = [0, 256], sizes = [16, 128], strides = [1, 1]} : vector<16x896xf32> to vector<16x128xf32>
    %92 = vector.extract_strided_slice %88 {offsets = [0, 384], sizes = [16, 128], strides = [1, 1]} : vector<16x896xf32> to vector<16x128xf32>
    %93 = vector.extract_strided_slice %88 {offsets = [0, 512], sizes = [16, 128], strides = [1, 1]} : vector<16x896xf32> to vector<16x128xf32>
    %94 = vector.extract_strided_slice %88 {offsets = [0, 640], sizes = [16, 128], strides = [1, 1]} : vector<16x896xf32> to vector<16x128xf32>
    %95 = vector.extract_strided_slice %88 {offsets = [0, 768], sizes = [16, 128], strides = [1, 1]} : vector<16x896xf32> to vector<16x128xf32>
    %96 = arith.addf %89, %90 : vector<16x128xf32>
    %97 = arith.addf %91, %92 : vector<16x128xf32>
    %98 = arith.addf %93, %94 : vector<16x128xf32>
    %99 = arith.addf %96, %97 : vector<16x128xf32>
    %100 = arith.addf %98, %95 : vector<16x128xf32>
    %101 = arith.addf %99, %100 : vector<16x128xf32>
    %c0_48 = arith.constant 0 : index
    %c0_49 = arith.constant 0 : index
    %102 = vector.load %arg18[%c0_48, %c0_49] : memref<16x128xf32, #tpu.memory_space<vmem>>, vector<16x128xf32>
    tpu.vector_store %arg18[%c0_48, %c0_49], %101 {strides = array<i32>} : memref<16x128xf32, #tpu.memory_space<vmem>>, vector<16x128xf32>,
    return
  }
  func.func @transform_0(%arg0: i32) -> (i32, i32) {
    %c0_i32 = arith.constant 0 : i32
    %c0_i32_0 = arith.constant 0 : i32
    return %arg0, %c0_i32 : i32, i32
  }
  func.func @transform_1(%arg0: i32) -> (i32, i32) {
    %c0_i32 = arith.constant 0 : i32
    %c0_i32_0 = arith.constant 0 : i32
    %c0_i32_1 = arith.constant 0 : i32
    return %c0_i32, %c0_i32_0 : i32, i32
  }
  func.func @transform_2(%arg0: i32) -> (i32, i32) {
    %c0_i32 = arith.constant 0 : i32
    %c0_i32_0 = arith.constant 0 : i32
    %c0_i32_1 = arith.constant 0 : i32
    return %c0_i32, %c0_i32_0 : i32, i32
  }
  func.func @transform_3(%arg0: i32) -> (i32, i32) {
    %c0_i32 = arith.constant 0 : i32
    %c0_i32_0 = arith.constant 0 : i32
    %c0_i32_1 = arith.constant 0 : i32
    return %c0_i32, %c0_i32_0 : i32, i32
  }
  func.func @transform_4(%arg0: i32) -> (i32, i32) {
    %c0_i32 = arith.constant 0 : i32
    %c0_i32_0 = arith.constant 0 : i32
    %c0_i32_1 = arith.constant 0 : i32
    return %c0_i32, %c0_i32_0 : i32, i32
  }
  func.func @transform_5(%arg0: i32) -> (i32, i32) {
    %c0_i32 = arith.constant 0 : i32
    %c0_i32_0 = arith.constant 0 : i32
    %c0_i32_1 = arith.constant 0 : i32
    return %c0_i32, %c0_i32_0 : i32, i32
  }
  func.func @transform_6(%arg0: i32) -> (i32, i32) {
    %c0_i32 = arith.constant 0 : i32
    %c0_i32_0 = arith.constant 0 : i32
    %c0_i32_1 = arith.constant 0 : i32
    return %c0_i32, %c0_i32_0 : i32, i32
  }
  func.func @transform_7(%arg0: i32) -> (i32, i32) {
    %c0_i32 = arith.constant 0 : i32
    %c0_i32_0 = arith.constant 0 : i32
    %c0_i32_1 = arith.constant 0 : i32
    return %c0_i32, %c0_i32_0 : i32, i32
  }
  func.func @transform_8(%arg0: i32) -> (i32, i32) {
    %c0_i32 = arith.constant 0 : i32
    %c0_i32_0 = arith.constant 0 : i32
    %c0_i32_1 = arith.constant 0 : i32
    return %c0_i32, %c0_i32_0 : i32, i32
  }
  func.func @transform_9(%arg0: i32) -> (i32, i32) {
    %c0_i32 = arith.constant 0 : i32
    %c0_i32_0 = arith.constant 0 : i32
    %c0_i32_1 = arith.constant 0 : i32
    return %c0_i32, %c0_i32_0 : i32, i32
  }
  func.func @transform_10(%arg0: i32) -> (i32, i32) {
    %c0_i32 = arith.constant 0 : i32
    %c0_i32_0 = arith.constant 0 : i32
    %c0_i32_1 = arith.constant 0 : i32
    return %c0_i32, %c0_i32_0 : i32, i32
  }
  func.func @transform_11(%arg0: i32) -> (i32, i32) {
    %c0_i32 = arith.constant 0 : i32
    %c0_i32_0 = arith.constant 0 : i32
    %c0_i32_1 = arith.constant 0 : i32
    return %c0_i32, %c0_i32_0 : i32, i32
  }
  func.func @transform_12(%arg0: i32) -> (i32, i32) {
    %c0_i32 = arith.constant 0 : i32
    %c0_i32_0 = arith.constant 0 : i32
    %c0_i32_1 = arith.constant 0 : i32
    return %c0_i32, %c0_i32_0 : i32, i32
  }
  func.func @transform_13(%arg0: i32) -> (i32, i32) {
    %c0_i32 = arith.constant 0 : i32
    %c0_i32_0 = arith.constant 0 : i32
    %c0_i32_1 = arith.constant 0 : i32
    return %c0_i32, %c0_i32_0 : i32, i32
  }
  func.func @transform_14(%arg0: i32) -> (i32, i32) {
    %c0_i32 = arith.constant 0 : i32
    %c0_i32_0 = arith.constant 0 : i32
    %c0_i32_1 = arith.constant 0 : i32
    return %c0_i32, %c0_i32_0 : i32, i32
  }
  func.func @transform_15(%arg0: i32) -> (i32, i32) {
    %c0_i32 = arith.constant 0 : i32
    %c0_i32_0 = arith.constant 0 : i32
    %c0_i32_1 = arith.constant 0 : i32
    return %c0_i32, %c0_i32_0 : i32, i32
  }
  func.func @transform_16(%arg0: i32) -> (i32, i32) {
    %c0_i32 = arith.constant 0 : i32
    %c0_i32_0 = arith.constant 0 : i32
    %c0_i32_1 = arith.constant 0 : i32
    return %c0_i32, %c0_i32_0 : i32, i32
  }
  func.func @transform_17(%arg0: i32) -> (i32, i32) {
    %c0_i32 = arith.constant 0 : i32
    %c0_i32_0 = arith.constant 0 : i32
    return %arg0, %c0_i32 : i32, i32
  }
}

</mosaic_0001>

<llo_original>
// kernel: tpu_custom_call.1
$region0: #{tpu_custom_call.1}
  #allocation0 [shape = 'u32[]', space=smem, size = 0x4, offset = 0x4, fixed_abs, tag = 'smem constant byte address 0x4 - core index']
  #allocation1 [shape = 'u32[144,128]{1,0:T(1,128)}', space=vmem, size = 0x12000, scoped, tag = 'internal scratch']
  %s0 = inlined_call_operand.vmem [shape: bf16[16,32], index: 0, kind: input, shape index: {}]
  %s1 = inlined_call_operand.vmem [shape: bf16[32,256], index: 1, kind: input, shape index: {}]
  %s2 = inlined_call_operand.hbm [shape: f32[1,256], index: 2, kind: input, shape index: {}]
  %s3 = inlined_call_operand.hbm [shape: bf16[256,1024], index: 3, kind: input, shape index: {}]
  %s4 = inlined_call_operand.hbm [shape: f32[1,1024], index: 4, kind: input, shape index: {}]
  %s5 = inlined_call_operand.hbm [shape: bf16[32,32], index: 5, kind: input, shape index: {}]
  %s6 = inlined_call_operand.hbm [shape: f32[1,32], index: 6, kind: input, shape index: {}]
  %s7 = inlined_call_operand.hbm [shape: f32[1,32], index: 7, kind: input, shape index: {}]
  %s8 = inlined_call_operand.hbm [shape: bf16[32,32], index: 8, kind: input, shape index: {}]
  %s9 = inlined_call_operand.hbm [shape: bf16[32,1024], index: 9, kind: input, shape index: {}]
  %s10 = inlined_call_operand.hbm [shape: bf16[128,1024], index: 10, kind: input, shape index: {}]
  %s11 = inlined_call_operand.hbm [shape: f32[1,1024], index: 11, kind: input, shape index: {}]
  %s12 = inlined_call_operand.vmem [shape: bf16[128,24], index: 12, kind: input, shape index: {}]
  %s13 = inlined_call_operand.hbm [shape: f32[1,24], index: 13, kind: input, shape index: {}]
  %s14 = inlined_call_operand.hbm [shape: f32[1,24], index: 14, kind: input, shape index: {}]
  %s15 = inlined_call_operand.hbm [shape: bf16[24,24], index: 15, kind: input, shape index: {}]
  %s16 = inlined_call_operand.vmem [shape: bf16[24,1024], index: 16, kind: input, shape index: {}]
  %s17 = inlined_call_operand.hbm [shape: f32[16,128], index: 17, kind: output, shape index: {}]
  %s18 = sld [smem:[#allocation0]]
  $region130: #{tpu_custom_call.1} parent=0
    _
  %s20 = ssub.s32 1, %s18
  %s21 = scalar_select 0, %s20, %s18
  $region1: #{tpu_custom_call.1} parent=0
    #allocation2 [shape = 'u8[1024]{0}', space=vmem, size = 0x400, scoped, tag = 'input window, operand 2, single buffered']
    #allocation3 [shape = 's32[1]{0}', space=sflag, size = 0x4, scoped, tag = 'scoped memory for tpu_custom_call.1']
    #allocation4 [shape = 's32[1]{0}', space=sflag, size = 0x4, scoped, tag = 'scoped memory for tpu_custom_call.1']
    #allocation5 [shape = 'u8[524288]{0}', space=vmem, size = 0x80000, scoped, tag = 'input window, operand 3, single buffered']
    #allocation6 [shape = 's32[1]{0}', space=sflag, size = 0x4, scoped, tag = 'scoped memory for tpu_custom_call.1']
    #allocation7 [shape = 'u8[4096]{0}', space=vmem, size = 0x1000, scoped, tag = 'input window, operand 4, single buffered']
    #allocation8 [shape = 'u8[8192]{0}', space=vmem, size = 0x2000, scoped, tag = 'input window, operand 5, single buffered']
    #allocation9 [shape = 's32[1]{0}', space=sflag, size = 0x4, scoped, tag = 'scoped memory for tpu_custom_call.1']
    #allocation10 [shape = 'u8[512]{0}', space=vmem, size = 0x400, scoped, tag = 'input window, operand 6, single buffered']
    #allocation11 [shape = 'u8[512]{0}', space=vmem, size = 0x400, scoped, tag = 'input window, operand 7, single buffered']
    #allocation12 [shape = 's32[1]{0}', space=sflag, size = 0x4, scoped, tag = 'scoped memory for tpu_custom_call.1']
    #allocation13 [shape = 'u8[8192]{0}', space=vmem, size = 0x2000, scoped, tag = 'input window, operand 8, single buffered']
    #allocation14 [shape = 'u8[65536]{0}', space=vmem, size = 0x10000, scoped, tag = 'input window, operand 9, single buffered']
    #allocation15 [shape = 's32[1]{0}', space=sflag, size = 0x4, scoped, tag = 'scoped memory for tpu_custom_call.1']
    #allocation16 [shape = 'u8[262144]{0}', space=vmem, size = 0x40000, scoped, tag = 'input window, operand 10, single buffered']
    #allocation17 [shape = 'u8[4096]{0}', space=vmem, size = 0x1000, scoped, tag = 'input window, operand 11, single buffered']
    #allocation18 [shape = 's32[1]{0}', space=sflag, size = 0x4, scoped, tag = 'scoped memory for tpu_custom_call.1']
    #allocation19 [shape = 'u8[512]{0}', space=vmem, size = 0x400, scoped, tag = 'input window, operand 13, single buffered']
    #allocation20 [shape = 'u8[512]{0}', space=vmem, size = 0x400, scoped, tag = 'input window, operand 14, single buffered']
    #allocation21 [shape = 's32[1]{0}', space=sflag, size = 0x4, scoped, tag = 'scoped memory for tpu_custom_call.1']
    #allocation22 [shape = 'u8[6144]{0}', space=vmem, size = 0x1800, scoped, tag = 'input window, operand 15, single buffered']
    #allocation23 [shape = 'u8[8192]{0}', space=vmem, size = 0x2000, scoped, tag = 'output window, operand 0, single buffered']
    %22 = vsyncpa [#allocation3], 0
    %23 = vsyncpa [#allocation6], 0
    %24 = vsyncpa [#allocation9], 0
    %25 = vsyncpa [#allocation12], 0
    %26 = vsyncpa [#allocation15], 0
    %27 = vsyncpa [#allocation18], 0
    %28 = vsyncpa [#allocation21], 0
    %29 = vsyncpa [#allocation4], 0
    // Predicated region
    $region2: #{tpu_custom_call.1} parent=1 // pred_check
      _
    $region3: #{tpu_custom_call.1} parent=1 // pred_check_branch
      %31 = sbr.rel (0) target = $region5
    $region4: #{tpu_custom_call.1} parent=1 // pred_region
      _
    $region5: #{tpu_custom_call.1} parent=1 // pred_fallthru
      _
    // Predicated region
    $region6: #{tpu_custom_call.1} parent=1 // pred_check
      _
    $region7: #{tpu_custom_call.1} parent=1 // pred_check_branch
      %33 = sbr.rel (0) target = $region9
    $region8: #{tpu_custom_call.1} parent=1 // pred_region
      _
    $region9: #{tpu_custom_call.1} parent=1 // pred_fallthru
      _
    // Predicated region
    $region10: #{tpu_custom_call.1} parent=1 // pred_check
      _
    $region11: #{tpu_custom_call.1} parent=1 // pred_check_branch
      %35 = sbr.rel (0) target = $region13
    $region12: #{tpu_custom_call.1} parent=1 // pred_region
      %s37 = ssub.s32 32, 32
      %38 = vsyncadd [#allocation3], %s37
      %s40 = sshll.u32 [#allocation2], 4
      %s41 = int_to_ptr.vmem [resolvable:$true] %s40
      %43 = dma.hbm_to_vmem [thread:$0]  %s2, 32, %s41, [#allocation3]
    $region13: #{tpu_custom_call.1} parent=1 // pred_fallthru
      _
    // Predicated region
    $region14: #{tpu_custom_call.1} parent=1 // pred_check
      _
    $region15: #{tpu_custom_call.1} parent=1 // pred_check_branch
      %45 = sbr.rel (0) target = $region17
    $region16: #{tpu_custom_call.1} parent=1 // pred_region
      %s47 = ssub.s32 16384, 16384
      %48 = vsyncadd [#allocation6], %s47
      %s49 = sshll.u32 [#allocation5], 4
      %s50 = int_to_ptr.vmem [resolvable:$true] %s49
      %55 = dma.hbm_to_vmem [thread:$0]  %s3, 16384, %s50, [#allocation6], 512, 512, 32
    $region17: #{tpu_custom_call.1} parent=1 // pred_fallthru
      _
    // Predicated region
    $region18: #{tpu_custom_call.1} parent=1 // pred_check
      _
    $region19: #{tpu_custom_call.1} parent=1 // pred_check_branch
      %57 = sbr.rel (0) target = $region21
    $region20: #{tpu_custom_call.1} parent=1 // pred_region
      %s59 = ssub.s32 128, 128
      %60 = vsyncadd [#allocation6], %s59
      %s62 = sshll.u32 [#allocation7], 4
      %s63 = int_to_ptr.vmem [resolvable:$true] %s62
      %65 = dma.hbm_to_vmem [thread:$0]  %s4, 128, %s63, [#allocation6]
    $region21: #{tpu_custom_call.1} parent=1 // pred_fallthru
      _
    // Predicated region
    $region22: #{tpu_custom_call.1} parent=1 // pred_check
      _
    $region23: #{tpu_custom_call.1} parent=1 // pred_check_branch
      %67 = sbr.rel (0) target = $region25
    $region24: #{tpu_custom_call.1} parent=1 // pred_region
      %s69 = ssub.s32 256, 256
      %70 = vsyncadd [#allocation9], %s69
      %s71 = sshll.u32 [#allocation8], 4
      %s72 = int_to_ptr.vmem [resolvable:$true] %s71
      %77 = dma.hbm_to_vmem [thread:$0]  %s5, 256, %s72, [#allocation9], 64, 64, 4
    $region25: #{tpu_custom_call.1} parent=1 // pred_fallthru
      _
    // Predicated region
    $region26: #{tpu_custom_call.1} parent=1 // pred_check
      _
    $region27: #{tpu_custom_call.1} parent=1 // pred_check_branch
      %79 = sbr.rel (0) target = $region29
    $region28: #{tpu_custom_call.1} parent=1 // pred_region
      %s81 = ssub.s32 16, 16
      %82 = vsyncadd [#allocation9], %s81
      %s84 = sshll.u32 [#allocation10], 4
      %s85 = int_to_ptr.vmem [resolvable:$true] %s84
      %87 = dma.hbm_to_vmem [thread:$0]  %s6, 16, %s85, [#allocation9]
    $region29: #{tpu_custom_call.1} parent=1 // pred_fallthru
      _
    // Predicated region
    $region30: #{tpu_custom_call.1} parent=1 // pred_check
      _
    $region31: #{tpu_custom_call.1} parent=1 // pred_check_branch
      %89 = sbr.rel (0) target = $region33
    $region32: #{tpu_custom_call.1} parent=1 // pred_region
      %s91 = ssub.s32 16, 16
      %92 = vsyncadd [#allocation12], %s91
      %s94 = sshll.u32 [#allocation11], 4
      %s95 = int_to_ptr.vmem [resolvable:$true] %s94
      %97 = dma.hbm_to_vmem [thread:$0]  %s7, 16, %s95, [#allocation12]
    $region33: #{tpu_custom_call.1} parent=1 // pred_fallthru
      _
    // Predicated region
    $region34: #{tpu_custom_call.1} parent=1 // pred_check
      _
    $region35: #{tpu_custom_call.1} parent=1 // pred_check_branch
      %99 = sbr.rel (0) target = $region37
    $region36: #{tpu_custom_call.1} parent=1 // pred_region
      %s101 = ssub.s32 256, 256
      %102 = vsyncadd [#allocation12], %s101
      %s103 = sshll.u32 [#allocation13], 4
      %s104 = int_to_ptr.vmem [resolvable:$true] %s103
      %109 = dma.hbm_to_vmem [thread:$0]  %s8, 256, %s104, [#allocation12], 64, 64, 4
    $region37: #{tpu_custom_call.1} parent=1 // pred_fallthru
      _
    // Predicated region
    $region38: #{tpu_custom_call.1} parent=1 // pred_check
      _
    $region39: #{tpu_custom_call.1} parent=1 // pred_check_branch
      %111 = sbr.rel (0) target = $region41
    $region40: #{tpu_custom_call.1} parent=1 // pred_region
      %s113 = ssub.s32 2048, 2048
      %114 = vsyncadd [#allocation15], %s113
      %s115 = sshll.u32 [#allocation14], 4
      %s116 = int_to_ptr.vmem [resolvable:$true] %s115
      %121 = dma.hbm_to_vmem [thread:$0]  %s9, 2048, %s116, [#allocation15], 512, 512, 32
    $region41: #{tpu_custom_call.1} parent=1 // pred_fallthru
      _
    // Predicated region
    $region42: #{tpu_custom_call.1} parent=1 // pred_check
      _
    $region43: #{tpu_custom_call.1} parent=1 // pred_check_branch
      %123 = sbr.rel (0) target = $region45
    $region44: #{tpu_custom_call.1} parent=1 // pred_region
      %s125 = ssub.s32 8192, 8192
      %126 = vsyncadd [#allocation15], %s125
      %s127 = sshll.u32 [#allocation16], 4
      %s128 = int_to_ptr.vmem [resolvable:$true] %s127
      %133 = dma.hbm_to_vmem [thread:$0]  %s10, 8192, %s128, [#allocation15], 512, 512, 32
    $region45: #{tpu_custom_call.1} parent=1 // pred_fallthru
      _
    // Predicated region
    $region46: #{tpu_custom_call.1} parent=1 // pred_check
      _
    $region47: #{tpu_custom_call.1} parent=1 // pred_check_branch
      %135 = sbr.rel (0) target = $region49
    $region48: #{tpu_custom_call.1} parent=1 // pred_region
      %s137 = ssub.s32 128, 128
      %138 = vsyncadd [#allocation18], %s137
      %s140 = sshll.u32 [#allocation17], 4
      %s141 = int_to_ptr.vmem [resolvable:$true] %s140
      %143 = dma.hbm_to_vmem [thread:$0]  %s11, 128, %s141, [#allocation18]
    $region49: #{tpu_custom_call.1} parent=1 // pred_fallthru
      _
    // Predicated region
    $region50: #{tpu_custom_call.1} parent=1 // pred_check
      _
    $region51: #{tpu_custom_call.1} parent=1 // pred_check_branch
      %145 = sbr.rel (0) target = $region53
    $region52: #{tpu_custom_call.1} parent=1 // pred_region
      _
    $region53: #{tpu_custom_call.1} parent=1 // pred_fallthru
      _
    // Predicated region
    $region54: #{tpu_custom_call.1} parent=1 // pred_check
      _
    $region55: #{tpu_custom_call.1} parent=1 // pred_check_branch
      %147 = sbr.rel (0) target = $region57
    $region56: #{tpu_custom_call.1} parent=1 // pred_region
      %s149 = ssub.s32 16, 16
      %150 = vsyncadd [#allocation18], %s149
      %s152 = sshll.u32 [#allocation19], 4
      %s153 = int_to_ptr.vmem [resolvable:$true] %s152
      %155 = dma.hbm_to_vmem [thread:$0]  %s13, 16, %s153, [#allocation18]
    $region57: #{tpu_custom_call.1} parent=1 // pred_fallthru
      _
    // Predicated region
    $region58: #{tpu_custom_call.1} parent=1 // pred_check
      _
    $region59: #{tpu_custom_call.1} parent=1 // pred_check_branch
      %157 = sbr.rel (0) target = $region61
    $region60: #{tpu_custom_call.1} parent=1 // pred_region
      %s159 = ssub.s32 16, 16
      %160 = vsyncadd [#allocation21], %s159
      %s162 = sshll.u32 [#allocation20], 4
      %s163 = int_to_ptr.vmem [resolvable:$true] %s162
      %165 = dma.hbm_to_vmem [thread:$0]  %s14, 16, %s163, [#allocation21]
    $region61: #{tpu_custom_call.1} parent=1 // pred_fallthru
      _
    // Predicated region
    $region62: #{tpu_custom_call.1} parent=1 // pred_check
      _
    $region63: #{tpu_custom_call.1} parent=1 // pred_check_branch
      %167 = sbr.rel (0) target = $region65
    $region64: #{tpu_custom_call.1} parent=1 // pred_region
      %s169 = ssub.s32 192, 192
      %170 = vsyncadd [#allocation21], %s169
      %s171 = sshll.u32 [#allocation22], 4
      %s172 = int_to_ptr.vmem [resolvable:$true] %s171
      %177 = dma.hbm_to_vmem [thread:$0]  %s15, 192, %s172, [#allocation21], 64, 64, 4
    $region65: #{tpu_custom_call.1} parent=1 // pred_fallthru
      _
    // Predicated region
    $region66: #{tpu_custom_call.1} parent=1 // pred_check
      _
    $region67: #{tpu_custom_call.1} parent=1 // pred_check_branch
      %179 = sbr.rel (0) target = $region69
    $region68: #{tpu_custom_call.1} parent=1 // pred_region
      _
    $region69: #{tpu_custom_call.1} parent=1 // pred_fallthru
      _
    // Predicated region
    $region70: #{tpu_custom_call.1} parent=1 // pred_check
      _
    $region71: #{tpu_custom_call.1} parent=1 // pred_check_branch
      %181 = sbr.rel (0) target = $region73
    $region72: #{tpu_custom_call.1} parent=1 // pred_region
      %182 = dma.done [#allocation3], 32
    $region73: #{tpu_custom_call.1} parent=1 // pred_fallthru
      _
    // Predicated region
    $region74: #{tpu_custom_call.1} parent=1 // pred_check
      _
    $region75: #{tpu_custom_call.1} parent=1 // pred_check_branch
      %184 = sbr.rel (0) target = $region77
    $region76: #{tpu_custom_call.1} parent=1 // pred_region
      %185 = dma.done [#allocation6], 16384
    $region77: #{tpu_custom_call.1} parent=1 // pred_fallthru
      _
    // Predicated region
    $region78: #{tpu_custom_call.1} parent=1 // pred_check
      _
    $region79: #{tpu_custom_call.1} parent=1 // pred_check_branch
      %187 = sbr.rel (0) target = $region81
    $region80: #{tpu_custom_call.1} parent=1 // pred_region
      %188 = dma.done [#allocation6], 128
    $region81: #{tpu_custom_call.1} parent=1 // pred_fallthru
      _
    // Predicated region
    $region82: #{tpu_custom_call.1} parent=1 // pred_check
      _
    $region83: #{tpu_custom_call.1} parent=1 // pred_check_branch
      %190 = sbr.rel (0) target = $region85
    $region84: #{tpu_custom_call.1} parent=1 // pred_region
      %191 = dma.done [#allocation9], 256
    $region85: #{tpu_custom_call.1} parent=1 // pred_fallthru
      _
    // Predicated region
    $region86: #{tpu_custom_call.1} parent=1 // pred_check
      _
    $region87: #{tpu_custom_call.1} parent=1 // pred_check_branch
      %193 = sbr.rel (0) target = $region89
    $region88: #{tpu_custom_call.1} parent=1 // pred_region
      %194 = dma.done [#allocation9], 16
    $region89: #{tpu_custom_call.1} parent=1 // pred_fallthru
      _
    // Predicated region
    $region90: #{tpu_custom_call.1} parent=1 // pred_check
      _
    $region91: #{tpu_custom_call.1} parent=1 // pred_check_branch
      %196 = sbr.rel (0) target = $region93
    $region92: #{tpu_custom_call.1} parent=1 // pred_region
      %197 = dma.done [#allocation12], 16
    $region93: #{tpu_custom_call.1} parent=1 // pred_fallthru
      _
    // Predicated region
    $region94: #{tpu_custom_call.1} parent=1 // pred_check
      _
    $region95: #{tpu_custom_call.1} parent=1 // pred_check_branch
      %199 = sbr.rel (0) target = $region97
    $region96: #{tpu_custom_call.1} parent=1 // pred_region
      %200 = dma.done [#allocation12], 256
    $region97: #{tpu_custom_call.1} parent=1 // pred_fallthru
      _
    // Predicated region
    $region98: #{tpu_custom_call.1} parent=1 // pred_check
      _
    $region99: #{tpu_custom_call.1} parent=1 // pred_check_branch
      %202 = sbr.rel (0) target = $region101
    $region100: #{tpu_custom_call.1} parent=1 // pred_region
      %203 = dma.done [#allocation15], 2048
    $region101: #{tpu_custom_call.1} parent=1 // pred_fallthru
      _
    // Predicated region
    $region102: #{tpu_custom_call.1} parent=1 // pred_check
      _
    $region103: #{tpu_custom_call.1} parent=1 // pred_check_branch
      %205 = sbr.rel (0) target = $region105
    $region104: #{tpu_custom_call.1} parent=1 // pred_region
      %206 = dma.done [#allocation15], 8192
    $region105: #{tpu_custom_call.1} parent=1 // pred_fallthru
      _
    // Predicated region
    $region106: #{tpu_custom_call.1} parent=1 // pred_check
      _
    $region107: #{tpu_custom_call.1} parent=1 // pred_check_branch
      %208 = sbr.rel (0) target = $region109
    $region108: #{tpu_custom_call.1} parent=1 // pred_region
      %209 = dma.done [#allocation18], 128
    $region109: #{tpu_custom_call.1} parent=1 // pred_fallthru
      _
    // Predicated region
    $region110: #{tpu_custom_call.1} parent=1 // pred_check
      _
    $region111: #{tpu_custom_call.1} parent=1 // pred_check_branch
      %211 = sbr.rel (0) target = $region113
    $region112: #{tpu_custom_call.1} parent=1 // pred_region
      %212 = dma.done [#allocation18], 16
    $region113: #{tpu_custom_call.1} parent=1 // pred_fallthru
      _
    // Predicated region
    $region114: #{tpu_custom_call.1} parent=1 // pred_check
      _
    $region115: #{tpu_custom_call.1} parent=1 // pred_check_branch
      %214 = sbr.rel (0) target = $region117
    $region116: #{tpu_custom_call.1} parent=1 // pred_region
      %215 = dma.done [#allocation21], 16
    $region117: #{tpu_custom_call.1} parent=1 // pred_fallthru
      _
    // Predicated region
    $region118: #{tpu_custom_call.1} parent=1 // pred_check
      _
    $region119: #{tpu_custom_call.1} parent=1 // pred_check_branch
      %217 = sbr.rel (0) target = $region121
    $region120: #{tpu_custom_call.1} parent=1 // pred_region
      %218 = dma.done [#allocation21], 192
    $region121: #{tpu_custom_call.1} parent=1 // pred_fallthru
      _
    %v220 = vld [vmem:[%s0] sm:$0xf]
    %v221 = vld [vmem:[%s0 + $0x4] sm:$0xf]
    %v222 = vld [vmem:[%s1] sm:$0xff]
    %v223 = vld [vmem:[%s1 + $0x8] sm:$0xff]
    %v224 = vld [vmem:[%s1 + $0x10] sm:$0xff]
    %v225 = vld [vmem:[%s1 + $0x18] sm:$0xff]
    %v226 = vld [vmem:[#allocation2] sm:$0x3]
    %v228 = vlaneseq
    %v229 = vshrl.u32 %v228, 7
    %v230 = vsub.s32 0, %v229
    %v231 = vrot.slane %v226, %v230
    %v232 = vlaneseq
    %v233 = vshrl.u32 %v232, 7
    %v234 = vsub.s32 1, %v233
    %v235 = vrot.slane %v226, %v234
    %v240 = vunpack.c.l.b16 %v220
    %v241 = vunpack.c.l.b16 %v221
    %v242 = vpack.c.b16 %v241, %v240
    %v247 = vunpack.c.l.b16 %v222
    %v248 = vunpack.c.h.b16 %v222
    %v249 = vunpack.c.l.b16 %v223
    %v250 = vunpack.c.h.b16 %v223
    %v251 = vunpack.c.l.b16 %v224
    %v252 = vunpack.c.h.b16 %v224
    %v253 = vunpack.c.l.b16 %v225
    %v254 = vunpack.c.h.b16 %v225
    %v255 = vpack.c.b16 %v249, %v247
    %v256 = vpack.c.b16 %v250, %v248
    %v257 = vpack.c.b16 %v253, %v251
    %v258 = vpack.c.b16 %v254, %v252
    %vm263 = vcmask 261120
    %v265 = vsel %vm263, %v242, 0
    %267 = vmatprep.subr.bf16.mxu0 %v256
    %268 = vmatpush1.bf16.msra.mxu0 %v255
    %269 = vmatprep.subr.bf16.mxu0 %v258
    %270 = vmatpush1.bf16.msra.mxu0 %v257
    %271 = vmatprep.subr.bf16.mxu0 0
    %272 = vmatpush1.bf16.msra.mxu0 0
    %273 = vmatprep.subr.bf16.mxu0 0
    %274 = vmatpush1.bf16.msra.mxu0 0
    %275 = vmatprep.subr.bf16.mxu0 0
    %276 = vmatpush1.bf16.msra.mxu0 0
    %277 = vmatprep.subr.bf16.mxu0 0
    %278 = vmatpush1.bf16.msra.mxu0 0
    %279 = vmatprep.subr.bf16.mxu0 0
    %280 = vmatpush1.bf16.msra.mxu0 0
    %281 = vmatprep.subr.bf16.mxu0 0
    %282 = vmatpush1.bf16.msra.mxu0 0
    %283 = vmatprep.subr.bf16.mxu0 0
    %284 = vmatpush1.bf16.msra.mxu0 0
    %285 = vmatprep.subr.bf16.mxu0 0
    %286 = vmatpush1.bf16.msra.mxu0 0
    %287 = vmatprep.subr.bf16.mxu0 0
    %288 = vmatpush1.bf16.msra.mxu0 0
    %289 = vmatprep.subr.bf16.mxu0 0
    %290 = vmatpush1.bf16.msra.mxu0 0
    %291 = vmatprep.subr.bf16.mxu0 0
    %292 = vmatpush1.bf16.msra.mxu0 0
    %293 = vmatprep.subr.bf16.mxu0 0
    %294 = vmatpush1.bf16.msra.mxu0 0
    %295 = vmatprep.subr.bf16.mxu0 0
    %296 = vmatpush1.bf16.msra.mxu0 0
    %297 = vmatprep.subr.bf16.mxu0 0
    %298 = vmatpush1.bf16.msra.mxu0 0
    %299 = vmatprep.mubr.bf16.mxu0 0
    %300 = vmatmul.mubr.bf16.gmra.mrb[0].mxu0 %v265
    %v301 = vpop.f32.mrb[0].mxu0
    %v302 = vadd.f32 %v231, %v301
    %v303 = vpop.f32.mrb[0].mxu0
    %v304 = vadd.f32 %v235, %v303
    %v305 = vpop.f32.mrb[0].mxu0
    %v306 = vadd.f32 %v231, %v305
    %v307 = vpop.f32.mrb[0].mxu0
    %v308 = vadd.f32 %v235, %v307
    %309 = vdwg.mxu0
    %v310 = vmax.f32 %v302, 0.0
    %v311 = vmax.f32 %v304, 0.0
    %v312 = vmax.f32 %v306, 0.0
    %v313 = vmax.f32 %v308, 0.0
    %v314 = vpack.c.bf16 %v312, %v310
    %v315 = vpack.c.bf16 %v313, %v311
    %v316 = vld [vmem:[#allocation5] sm:$0xff]
    %v317 = vld [vmem:[#allocation5 + $0x8] sm:$0xff]
    %v318 = vld [vmem:[#allocation5 + $0x10] sm:$0xff]
    %v319 = vld [vmem:[#allocation5 + $0x18] sm:$0xff]
    %v320 = vld [vmem:[#allocation5 + $0x20] sm:$0xff]
    %v321 = vld [vmem:[#allocation5 + $0x28] sm:$0xff]
    %v322 = vld [vmem:[#allocation5 + $0x30] sm:$0xff]
    %v323 = vld [vmem:[#allocation5 + $0x38] sm:$0xff]
    %v324 = vld [vmem:[#allocation5 + $0x40] sm:$0xff]
    %v325 = vld [vmem:[#allocation5 + $0x48] sm:$0xff]
    %v326 = vld [vmem:[#allocation5 + $0x50] sm:$0xff]
    %v327 = vld [vmem:[#allocation5 + $0x58] sm:$0xff]
    %v328 = vld [vmem:[#allocation5 + $0x60] sm:$0xff]
    %v329 = vld [vmem:[#allocation5 + $0x68] sm:$0xff]
    %v330 = vld [vmem:[#allocation5 + $0x70] sm:$0xff]
    %v331 = vld [vmem:[#allocation5 + $0x78] sm:$0xff]
    %v332 = vld [vmem:[#allocation5 + $0x80] sm:$0xff]
    %v333 = vld [vmem:[#allocation5 + $0x88] sm:$0xff]
    %v334 = vld [vmem:[#allocation5 + $0x90] sm:$0xff]
    %v335 = vld [vmem:[#allocation5 + $0x98] sm:$0xff]
    %v336 = vld [vmem:[#allocation5 + $0xa0] sm:$0xff]
    %v337 = vld [vmem:[#allocation5 + $0xa8] sm:$0xff]
    %v338 = vld [vmem:[#allocation5 + $0xb0] sm:$0xff]
    %v339 = vld [vmem:[#allocation5 + $0xb8] sm:$0xff]
    %v340 = vld [vmem:[#allocation5 + $0xc0] sm:$0xff]
    %v341 = vld [vmem:[#allocation5 + $0xc8] sm:$0xff]
    %v342 = vld [vmem:[#allocation5 + $0xd0] sm:$0xff]
    %v343 = vld [vmem:[#allocation5 + $0xd8] sm:$0xff]
    %v344 = vld [vmem:[#allocation5 + $0xe0] sm:$0xff]
    %v345 = vld [vmem:[#allocation5 + $0xe8] sm:$0xff]
    %v346 = vld [vmem:[#allocation5 + $0xf0] sm:$0xff]
    %v347 = vld [vmem:[#allocation5 + $0xf8] sm:$0xff]
    %v348 = vld [vmem:[#allocation5 + $0x100] sm:$0xff]
    %v349 = vld [vmem:[#allocation5 + $0x108] sm:$0xff]
    %v350 = vld [vmem:[#allocation5 + $0x110] sm:$0xff]
    %v351 = vld [vmem:[#allocation5 + $0x118] sm:$0xff]
    %v352 = vld [vmem:[#allocation5 + $0x120] sm:$0xff]
    %v353 = vld [vmem:[#allocation5 + $0x128] sm:$0xff]
    %v354 = vld [vmem:[#allocation5 + $0x130] sm:$0xff]
    %v355 = vld [vmem:[#allocation5 + $0x138] sm:$0xff]
    %v356 = vld [vmem:[#allocation5 + $0x140] sm:$0xff]
    %v357 = vld [vmem:[#allocation5 + $0x148] sm:$0xff]
    %v358 = vld [vmem:[#allocation5 + $0x150] sm:$0xff]
    %v359 = vld [vmem:[#allocation5 + $0x158] sm:$0xff]
    %v360 = vld [vmem:[#allocation5 + $0x160] sm:$0xff]
    %v361 = vld [vmem:[#allocation5 + $0x168] sm:$0xff]
    %v362 = vld [vmem:[#allocation5 + $0x170] sm:$0xff]
    %v363 = vld [vmem:[#allocation5 + $0x178] sm:$0xff]
    %v364 = vld [vmem:[#allocation5 + $0x180] sm:$0xff]
    %v365 = vld [vmem:[#allocation5 + $0x188] sm:$0xff]
    %v366 = vld [vmem:[#allocation5 + $0x190] sm:$0xff]
    %v367 = vld [vmem:[#allocation5 + $0x198] sm:$0xff]
    %v368 = vld [vmem:[#allocation5 + $0x1a0] sm:$0xff]
    %v369 = vld [vmem:[#allocation5 + $0x1a8] sm:$0xff]
    %v370 = vld [vmem:[#allocation5 + $0x1b0] sm:$0xff]
    %v371 = vld [vmem:[#allocation5 + $0x1b8] sm:$0xff]
    %v372 = vld [vmem:[#allocation5 + $0x1c0] sm:$0xff]
    %v373 = vld [vmem:[#allocation5 + $0x1c8] sm:$0xff]
    %v374 = vld [vmem:[#allocation5 + $0x1d0] sm:$0xff]
    %v375 = vld [vmem:[#allocation5 + $0x1d8] sm:$0xff]
    %v376 = vld [vmem:[#allocation5 + $0x1e0] sm:$0xff]
    %v377 = vld [vmem:[#allocation5 + $0x1e8] sm:$0xff]
    %v378 = vld [vmem:[#allocation5 + $0x1f0] sm:$0xff]
    %v379 = vld [vmem:[#allocation5 + $0x1f8] sm:$0xff]
    %v380 = vld [vmem:[#allocation5 + $0x200] sm:$0xff]
    %v381 = vld [vmem:[#allocation5 + $0x208] sm:$0xff]
    %v382 = vld [vmem:[#allocation5 + $0x210] sm:$0xff]
    %v383 = vld [vmem:[#allocation5 + $0x218] sm:$0xff]
    %v384 = vld [vmem:[#allocation5 + $0x220] sm:$0xff]
    %v385 = vld [vmem:[#allocation5 + $0x228] sm:$0xff]
    %v386 = vld [vmem:[#allocation5 + $0x230] sm:$0xff]
    %v387 = vld [vmem:[#allocation5 + $0x238] sm:$0xff]
    %v388 = vld [vmem:[#allocation5 + $0x240] sm:$0xff]
    %v389 = vld [vmem:[#allocation5 + $0x248] sm:$0xff]
    %v390 = vld [vmem:[#allocation5 + $0x250] sm:$0xff]
    %v391 = vld [vmem:[#allocation5 + $0x258] sm:$0xff]
    %v392 = vld [vmem:[#allocation5 + $0x260] sm:$0xff]
    %v393 = vld [vmem:[#allocation5 + $0x268] sm:$0xff]
    %v394 = vld [vmem:[#allocation5 + $0x270] sm:$0xff]
    %v395 = vld [vmem:[#allocation5 + $0x278] sm:$0xff]
    %v396 = vld [vmem:[#allocation5 + $0x280] sm:$0xff]
    %v397 = vld [vmem:[#allocation5 + $0x288] sm:$0xff]
    %v398 = vld [vmem:[#allocation5 + $0x290] sm:$0xff]
    %v399 = vld [vmem:[#allocation5 + $0x298] sm:$0xff]
    %v400 = vld [vmem:[#allocation5 + $0x2a0] sm:$0xff]
    %v401 = vld [vmem:[#allocation5 + $0x2a8] sm:$0xff]
    %v402 = vld [vmem:[#allocation5 + $0x2b0] sm:$0xff]
    %v403 = vld [vmem:[#allocation5 + $0x2b8] sm:$0xff]
    %v404 = vld [vmem:[#allocation5 + $0x2c0] sm:$0xff]
    %v405 = vld [vmem:[#allocation5 + $0x2c8] sm:$0xff]
    %v406 = vld [vmem:[#allocation5 + $0x2d0] sm:$0xff]
    %v407 = vld [vmem:[#allocation5 + $0x2d8] sm:$0xff]
    %v408 = vld [vmem:[#allocation5 + $0x2e0] sm:$0xff]
    %v409 = vld [vmem:[#allocation5 + $0x2e8] sm:$0xff]
    %v410 = vld [vmem:[#allocation5 + $0x2f0] sm:$0xff]
    %v411 = vld [vmem:[#allocation5 + $0x2f8] sm:$0xff]
    %v412 = vld [vmem:[#allocation5 + $0x300] sm:$0xff]
    %v413 = vld [vmem:[#allocation5 + $0x308] sm:$0xff]
    %v414 = vld [vmem:[#allocation5 + $0x310] sm:$0xff]
    %v415 = vld [vmem:[#allocation5 + $0x318] sm:$0xff]
    %v416 = vld [vmem:[#allocation5 + $0x320] sm:$0xff]
    %v417 = vld [vmem:[#allocation5 + $0x328] sm:$0xff]
    %v418 = vld [vmem:[#allocation5 + $0x330] sm:$0xff]
    %v419 = vld [vmem:[#allocation5 + $0x338] sm:$0xff]
    %v420 = vld [vmem:[#allocation5 + $0x340] sm:$0xff]
    %v421 = vld [vmem:[#allocation5 + $0x348] sm:$0xff]
    %v422 = vld [vmem:[#allocation5 + $0x350] sm:$0xff]
    %v423 = vld [vmem:[#allocation5 + $0x358] sm:$0xff]
    %v424 = vld [vmem:[#allocation5 + $0x360] sm:$0xff]
    %v425 = vld [vmem:[#allocation5 + $0x368] sm:$0xff]
    %v426 = vld [vmem:[#allocation5 + $0x370] sm:$0xff]
    %v427 = vld [vmem:[#allocation5 + $0x378] sm:$0xff]
    %v428 = vld [vmem:[#allocation5 + $0x380] sm:$0xff]
    %v429 = vld [vmem:[#allocation5 + $0x388] sm:$0xff]
    %v430 = vld [vmem:[#allocation5 + $0x390] sm:$0xff]
    %v431 = vld [vmem:[#allocation5 + $0x398] sm:$0xff]
    %v432 = vld [vmem:[#allocation5 + $0x3a0] sm:$0xff]
    %v433 = vld [vmem:[#allocation5 + $0x3a8] sm:$0xff]
    %v434 = vld [vmem:[#allocation5 + $0x3b0] sm:$0xff]
    %v435 = vld [vmem:[#allocation5 + $0x3b8] sm:$0xff]
    %v436 = vld [vmem:[#allocation5 + $0x3c0] sm:$0xff]
    %v437 = vld [vmem:[#allocation5 + $0x3c8] sm:$0xff]
    %v438 = vld [vmem:[#allocation5 + $0x3d0] sm:$0xff]
    %v439 = vld [vmem:[#allocation5 + $0x3d8] sm:$0xff]
    %v440 = vld [vmem:[#allocation5 + $0x3e0] sm:$0xff]
    %v441 = vld [vmem:[#allocation5 + $0x3e8] sm:$0xff]
    %v442 = vld [vmem:[#allocation5 + $0x3f0] sm:$0xff]
    %v443 = vld [vmem:[#allocation5 + $0x3f8] sm:$0xff]
    %v444 = vld [vmem:[#allocation7] sm:$0xff]
    %v446 = vlaneseq
    %v447 = vshrl.u32 %v446, 7
    %v448 = vsub.s32 0, %v447
    %v449 = vrot.slane %v444, %v448
    %v450 = vlaneseq
    %v451 = vshrl.u32 %v450, 7
    %v452 = vsub.s32 1, %v451
    %v453 = vrot.slane %v444, %v452
    %v454 = vlaneseq
    %v455 = vshrl.u32 %v454, 7
    %v456 = vsub.s32 2, %v455
    %v457 = vrot.slane %v444, %v456
    %v458 = vlaneseq
    %v459 = vshrl.u32 %v458, 7
    %v460 = vsub.s32 3, %v459
    %v461 = vrot.slane %v444, %v460
    %v462 = vlaneseq
    %v463 = vshrl.u32 %v462, 7
    %v464 = vsub.s32 4, %v463
    %v465 = vrot.slane %v444, %v464
    %v466 = vlaneseq
    %v467 = vshrl.u32 %v466, 7
    %v468 = vsub.s32 5, %v467
    %v469 = vrot.slane %v444, %v468
    %v470 = vlaneseq
    %v471 = vshrl.u32 %v470, 7
    %v472 = vsub.s32 6, %v471
    %v473 = vrot.slane %v444, %v472
    %v609 = vunpack.c.l.b16 %v316
    %v610 = vunpack.c.h.b16 %v316
    %v611 = vunpack.c.l.b16 %v317
    %v612 = vunpack.c.h.b16 %v317
    %v613 = vunpack.c.l.b16 %v318
    %v614 = vunpack.c.h.b16 %v318
    %v615 = vunpack.c.l.b16 %v319
    %v616 = vunpack.c.h.b16 %v319
    %v617 = vunpack.c.l.b16 %v320
    %v618 = vunpack.c.h.b16 %v320
    %v619 = vunpack.c.l.b16 %v321
    %v620 = vunpack.c.h.b16 %v321
    %v621 = vunpack.c.l.b16 %v322
    %v622 = vunpack.c.h.b16 %v322
    %v623 = vunpack.c.l.b16 %v323
    %v624 = vunpack.c.h.b16 %v323
    %v625 = vunpack.c.l.b16 %v324
    %v626 = vunpack.c.h.b16 %v324
    %v627 = vunpack.c.l.b16 %v325
    %v628 = vunpack.c.h.b16 %v325
    %v629 = vunpack.c.l.b16 %v326
    %v630 = vunpack.c.h.b16 %v326
    %v631 = vunpack.c.l.b16 %v327
    %v632 = vunpack.c.h.b16 %v327
    %v633 = vunpack.c.l.b16 %v328
    %v634 = vunpack.c.h.b16 %v328
    %v635 = vunpack.c.l.b16 %v329
    %v636 = vunpack.c.h.b16 %v329
    %v637 = vunpack.c.l.b16 %v330
    %v638 = vunpack.c.h.b16 %v330
    %v639 = vunpack.c.l.b16 %v331
    %v640 = vunpack.c.h.b16 %v331
    %v641 = vunpack.c.l.b16 %v332
    %v642 = vunpack.c.h.b16 %v332
    %v643 = vunpack.c.l.b16 %v333
    %v644 = vunpack.c.h.b16 %v333
    %v645 = vunpack.c.l.b16 %v334
    %v646 = vunpack.c.h.b16 %v334
    %v647 = vunpack.c.l.b16 %v335
    %v648 = vunpack.c.h.b16 %v335
    %v649 = vunpack.c.l.b16 %v336
    %v650 = vunpack.c.h.b16 %v336
    %v651 = vunpack.c.l.b16 %v337
    %v652 = vunpack.c.h.b16 %v337
    %v653 = vunpack.c.l.b16 %v338
    %v654 = vunpack.c.h.b16 %v338
    %v655 = vunpack.c.l.b16 %v339
    %v656 = vunpack.c.h.b16 %v339
    %v657 = vunpack.c.l.b16 %v340
    %v658 = vunpack.c.h.b16 %v340
    %v659 = vunpack.c.l.b16 %v341
    %v660 = vunpack.c.h.b16 %v341
    %v661 = vunpack.c.l.b16 %v342
    %v662 = vunpack.c.h.b16 %v342
    %v663 = vunpack.c.l.b16 %v343
    %v664 = vunpack.c.h.b16 %v343
    %v665 = vunpack.c.l.b16 %v344
    %v666 = vunpack.c.h.b16 %v344
    %v667 = vunpack.c.l.b16 %v345
    %v668 = vunpack.c.h.b16 %v345
    %v669 = vunpack.c.l.b16 %v346
    %v670 = vunpack.c.h.b16 %v346
    %v671 = vunpack.c.l.b16 %v347
    %v672 = vunpack.c.h.b16 %v347
    %v673 = vunpack.c.l.b16 %v348
    %v674 = vunpack.c.h.b16 %v348
    %v675 = vunpack.c.l.b16 %v349
    %v676 = vunpack.c.h.b16 %v349
    %v677 = vunpack.c.l.b16 %v350
    %v678 = vunpack.c.h.b16 %v350
    %v679 = vunpack.c.l.b16 %v351
    %v680 = vunpack.c.h.b16 %v351
    %v681 = vunpack.c.l.b16 %v352
    %v682 = vunpack.c.h.b16 %v352
    %v683 = vunpack.c.l.b16 %v353
    %v684 = vunpack.c.h.b16 %v353
    %v685 = vunpack.c.l.b16 %v354
    %v686 = vunpack.c.h.b16 %v354
    %v687 = vunpack.c.l.b16 %v355
    %v688 = vunpack.c.h.b16 %v355
    %v689 = vunpack.c.l.b16 %v356
    %v690 = vunpack.c.h.b16 %v356
    %v691 = vunpack.c.l.b16 %v357
    %v692 = vunpack.c.h.b16 %v357
    %v693 = vunpack.c.l.b16 %v358
    %v694 = vunpack.c.h.b16 %v358
    %v695 = vunpack.c.l.b16 %v359
    %v696 = vunpack.c.h.b16 %v359
    %v697 = vunpack.c.l.b16 %v360
    %v698 = vunpack.c.h.b16 %v360
    %v699 = vunpack.c.l.b16 %v361
    %v700 = vunpack.c.h.b16 %v361
    %v701 = vunpack.c.l.b16 %v362
    %v702 = vunpack.c.h.b16 %v362
    %v703 = vunpack.c.l.b16 %v363
    %v704 = vunpack.c.h.b16 %v363
    %v705 = vunpack.c.l.b16 %v364
    %v706 = vunpack.c.h.b16 %v364
    %v707 = vunpack.c.l.b16 %v365
    %v708 = vunpack.c.h.b16 %v365
    %v709 = vunpack.c.l.b16 %v366
    %v710 = vunpack.c.h.b16 %v366
    %v711 = vunpack.c.l.b16 %v367
    %v712 = vunpack.c.h.b16 %v367
    %v713 = vunpack.c.l.b16 %v368
    %v714 = vunpack.c.h.b16 %v368
    %v715 = vunpack.c.l.b16 %v369
    %v716 = vunpack.c.h.b16 %v369
    %v717 = vunpack.c.l.b16 %v370
    %v718 = vunpack.c.h.b16 %v370
    %v719 = vunpack.c.l.b16 %v371
    %v720 = vunpack.c.h.b16 %v371
    %v721 = vunpack.c.l.b16 %v372
    %v722 = vunpack.c.h.b16 %v372
    %v723 = vunpack.c.l.b16 %v373
    %v724 = vunpack.c.h.b16 %v373
    %v725 = vunpack.c.l.b16 %v374
    %v726 = vunpack.c.h.b16 %v374
    %v727 = vunpack.c.l.b16 %v375
    %v728 = vunpack.c.h.b16 %v375
    %v729 = vunpack.c.l.b16 %v376
    %v730 = vunpack.c.h.b16 %v376
    %v731 = vunpack.c.l.b16 %v377
    %v732 = vunpack.c.h.b16 %v377
    %v733 = vunpack.c.l.b16 %v378
    %v734 = vunpack.c.h.b16 %v378
    %v735 = vunpack.c.l.b16 %v379
    %v736 = vunpack.c.h.b16 %v379
    %v737 = vunpack.c.l.b16 %v380
    %v738 = vunpack.c.h.b16 %v380
    %v739 = vunpack.c.l.b16 %v381
    %v740 = vunpack.c.h.b16 %v381
    %v741 = vunpack.c.l.b16 %v382
    %v742 = vunpack.c.h.b16 %v382
    %v743 = vunpack.c.l.b16 %v383
    %v744 = vunpack.c.h.b16 %v383
    %v745 = vunpack.c.l.b16 %v384
    %v746 = vunpack.c.h.b16 %v384
    %v747 = vunpack.c.l.b16 %v385
    %v748 = vunpack.c.h.b16 %v385
    %v749 = vunpack.c.l.b16 %v386
    %v750 = vunpack.c.h.b16 %v386
    %v751 = vunpack.c.l.b16 %v387
    %v752 = vunpack.c.h.b16 %v387
    %v753 = vunpack.c.l.b16 %v388
    %v754 = vunpack.c.h.b16 %v388
    %v755 = vunpack.c.l.b16 %v389
    %v756 = vunpack.c.h.b16 %v389
    %v757 = vunpack.c.l.b16 %v390
    %v758 = vunpack.c.h.b16 %v390
    %v759 = vunpack.c.l.b16 %v391
    %v760 = vunpack.c.h.b16 %v391
    %v761 = vunpack.c.l.b16 %v392
    %v762 = vunpack.c.h.b16 %v392
    %v763 = vunpack.c.l.b16 %v393
    %v764 = vunpack.c.h.b16 %v393
    %v765 = vunpack.c.l.b16 %v394
    %v766 = vunpack.c.h.b16 %v394
    %v767 = vunpack.c.l.b16 %v395
    %v768 = vunpack.c.h.b16 %v395
    %v769 = vunpack.c.l.b16 %v396
    %v770 = vunpack.c.h.b16 %v396
    %v771 = vunpack.c.l.b16 %v397
    %v772 = vunpack.c.h.b16 %v397
    %v773 = vunpack.c.l.b16 %v398
    %v774 = vunpack.c.h.b16 %v398
    %v775 = vunpack.c.l.b16 %v399
    %v776 = vunpack.c.h.b16 %v399
    %v777 = vunpack.c.l.b16 %v400
    %v778 = vunpack.c.h.b16 %v400
    %v779 = vunpack.c.l.b16 %v401
    %v780 = vunpack.c.h.b16 %v401
    %v781 = vunpack.c.l.b16 %v402
    %v782 = vunpack.c.h.b16 %v402
    %v783 = vunpack.c.l.b16 %v403
    %v784 = vunpack.c.h.b16 %v403
    %v785 = vunpack.c.l.b16 %v404
    %v786 = vunpack.c.h.b16 %v404
    %v787 = vunpack.c.l.b16 %v405
    %v788 = vunpack.c.h.b16 %v405
    %v789 = vunpack.c.l.b16 %v406
    %v790 = vunpack.c.h.b16 %v406
    %v791 = vunpack.c.l.b16 %v407
    %v792 = vunpack.c.h.b16 %v407
    %v793 = vunpack.c.l.b16 %v408
    %v794 = vunpack.c.h.b16 %v408
    %v795 = vunpack.c.l.b16 %v409
    %v796 = vunpack.c.h.b16 %v409
    %v797 = vunpack.c.l.b16 %v410
    %v798 = vunpack.c.h.b16 %v410
    %v799 = vunpack.c.l.b16 %v411
    %v800 = vunpack.c.h.b16 %v411
    %v801 = vunpack.c.l.b16 %v412
    %v802 = vunpack.c.h.b16 %v412
    %v803 = vunpack.c.l.b16 %v413
    %v804 = vunpack.c.h.b16 %v413
    %v805 = vunpack.c.l.b16 %v414
    %v806 = vunpack.c.h.b16 %v414
    %v807 = vunpack.c.l.b16 %v415
    %v808 = vunpack.c.h.b16 %v415
    %v809 = vunpack.c.l.b16 %v416
    %v810 = vunpack.c.h.b16 %v416
    %v811 = vunpack.c.l.b16 %v417
    %v812 = vunpack.c.h.b16 %v417
    %v813 = vunpack.c.l.b16 %v418
    %v814 = vunpack.c.h.b16 %v418
    %v815 = vunpack.c.l.b16 %v419
    %v816 = vunpack.c.h.b16 %v419
    %v817 = vunpack.c.l.b16 %v420
    %v818 = vunpack.c.h.b16 %v420
    %v819 = vunpack.c.l.b16 %v421
    %v820 = vunpack.c.h.b16 %v421
    %v821 = vunpack.c.l.b16 %v422
    %v822 = vunpack.c.h.b16 %v422
    %v823 = vunpack.c.l.b16 %v423
    %v824 = vunpack.c.h.b16 %v423
    %v825 = vunpack.c.l.b16 %v424
    %v826 = vunpack.c.h.b16 %v424
    %v827 = vunpack.c.l.b16 %v425
    %v828 = vunpack.c.h.b16 %v425
    %v829 = vunpack.c.l.b16 %v426
    %v830 = vunpack.c.h.b16 %v426
    %v831 = vunpack.c.l.b16 %v427
    %v832 = vunpack.c.h.b16 %v427
    %v833 = vunpack.c.l.b16 %v428
    %v834 = vunpack.c.h.b16 %v428
    %v835 = vunpack.c.l.b16 %v429
    %v836 = vunpack.c.h.b16 %v429
    %v837 = vunpack.c.l.b16 %v430
    %v838 = vunpack.c.h.b16 %v430
    %v839 = vunpack.c.l.b16 %v431
    %v840 = vunpack.c.h.b16 %v431
    %v841 = vunpack.c.l.b16 %v432
    %v842 = vunpack.c.h.b16 %v432
    %v843 = vunpack.c.l.b16 %v433
    %v844 = vunpack.c.h.b16 %v433
    %v845 = vunpack.c.l.b16 %v434
    %v846 = vunpack.c.h.b16 %v434
    %v847 = vunpack.c.l.b16 %v435
    %v848 = vunpack.c.h.b16 %v435
    %v849 = vunpack.c.l.b16 %v436
    %v850 = vunpack.c.h.b16 %v436
    %v851 = vunpack.c.l.b16 %v437
    %v852 = vunpack.c.h.b16 %v437
    %v853 = vunpack.c.l.b16 %v438
    %v854 = vunpack.c.h.b16 %v438
    %v855 = vunpack.c.l.b16 %v439
    %v856 = vunpack.c.h.b16 %v439
    %v857 = vunpack.c.l.b16 %v440
    %v858 = vunpack.c.h.b16 %v440
    %v859 = vunpack.c.l.b16 %v441
    %v860 = vunpack.c.h.b16 %v441
    %v861 = vunpack.c.l.b16 %v442
    %v862 = vunpack.c.h.b16 %v442
    %v863 = vunpack.c.l.b16 %v443
    %v864 = vunpack.c.h.b16 %v443
    %v865 = vpack.c.b16 %v617, %v609
    %v866 = vpack.c.b16 %v618, %v610
    %v867 = vpack.c.b16 %v619, %v611
    %v868 = vpack.c.b16 %v620, %v612
    %v869 = vpack.c.b16 %v621, %v613
    %v870 = vpack.c.b16 %v622, %v614
    %v871 = vpack.c.b16 %v623, %v615
    %v872 = vpack.c.b16 %v624, %v616
    %v873 = vpack.c.b16 %v633, %v625
    %v874 = vpack.c.b16 %v634, %v626
    %v875 = vpack.c.b16 %v635, %v627
    %v876 = vpack.c.b16 %v636, %v628
    %v877 = vpack.c.b16 %v637, %v629
    %v878 = vpack.c.b16 %v638, %v630
    %v879 = vpack.c.b16 %v639, %v631
    %v880 = vpack.c.b16 %v640, %v632
    %v881 = vpack.c.b16 %v649, %v641
    %v882 = vpack.c.b16 %v650, %v642
    %v883 = vpack.c.b16 %v651, %v643
    %v884 = vpack.c.b16 %v652, %v644
    %v885 = vpack.c.b16 %v653, %v645
    %v886 = vpack.c.b16 %v654, %v646
    %v887 = vpack.c.b16 %v655, %v647
    %v888 = vpack.c.b16 %v656, %v648
    %v889 = vpack.c.b16 %v665, %v657
    %v890 = vpack.c.b16 %v666, %v658
    %v891 = vpack.c.b16 %v667, %v659
    %v892 = vpack.c.b16 %v668, %v660
    %v893 = vpack.c.b16 %v669, %v661
    %v894 = vpack.c.b16 %v670, %v662
    %v895 = vpack.c.b16 %v671, %v663
    %v896 = vpack.c.b16 %v672, %v664
    %v897 = vpack.c.b16 %v681, %v673
    %v898 = vpack.c.b16 %v682, %v674
    %v899 = vpack.c.b16 %v683, %v675
    %v900 = vpack.c.b16 %v684, %v676
    %v901 = vpack.c.b16 %v685, %v677
    %v902 = vpack.c.b16 %v686, %v678
    %v903 = vpack.c.b16 %v687, %v679
    %v904 = vpack.c.b16 %v688, %v680
    %v905 = vpack.c.b16 %v697, %v689
    %v906 = vpack.c.b16 %v698, %v690
    %v907 = vpack.c.b16 %v699, %v691
    %v908 = vpack.c.b16 %v700, %v692
    %v909 = vpack.c.b16 %v701, %v693
    %v910 = vpack.c.b16 %v702, %v694
    %v911 = vpack.c.b16 %v703, %v695
    %v912 = vpack.c.b16 %v704, %v696
    %v913 = vpack.c.b16 %v713, %v705
    %v914 = vpack.c.b16 %v714, %v706
    %v915 = vpack.c.b16 %v715, %v707
    %v916 = vpack.c.b16 %v716, %v708
    %v917 = vpack.c.b16 %v717, %v709
    %v918 = vpack.c.b16 %v718, %v710
    %v919 = vpack.c.b16 %v719, %v711
    %v920 = vpack.c.b16 %v720, %v712
    %v921 = vpack.c.b16 %v729, %v721
    %v922 = vpack.c.b16 %v730, %v722
    %v923 = vpack.c.b16 %v731, %v723
    %v924 = vpack.c.b16 %v732, %v724
    %v925 = vpack.c.b16 %v733, %v725
    %v926 = vpack.c.b16 %v734, %v726
    %v927 = vpack.c.b16 %v735, %v727
    %v928 = vpack.c.b16 %v736, %v728
    %v929 = vpack.c.b16 %v745, %v737
    %v930 = vpack.c.b16 %v746, %v738
    %v931 = vpack.c.b16 %v747, %v739
    %v932 = vpack.c.b16 %v748, %v740
    %v933 = vpack.c.b16 %v749, %v741
    %v934 = vpack.c.b16 %v750, %v742
    %v935 = vpack.c.b16 %v751, %v743
    %v936 = vpack.c.b16 %v752, %v744
    %v937 = vpack.c.b16 %v761, %v753
    %v938 = vpack.c.b16 %v762, %v754
    %v939 = vpack.c.b16 %v763, %v755
    %v940 = vpack.c.b16 %v764, %v756
    %v941 = vpack.c.b16 %v765, %v757
    %v942 = vpack.c.b16 %v766, %v758
    %v943 = vpack.c.b16 %v767, %v759
    %v944 = vpack.c.b16 %v768, %v760
    %v945 = vpack.c.b16 %v777, %v769
    %v946 = vpack.c.b16 %v778, %v770
    %v947 = vpack.c.b16 %v779, %v771
    %v948 = vpack.c.b16 %v780, %v772
    %v949 = vpack.c.b16 %v781, %v773
    %v950 = vpack.c.b16 %v782, %v774
    %v951 = vpack.c.b16 %v783, %v775
    %v952 = vpack.c.b16 %v784, %v776
    %v953 = vpack.c.b16 %v793, %v785
    %v954 = vpack.c.b16 %v794, %v786
    %v955 = vpack.c.b16 %v795, %v787
    %v956 = vpack.c.b16 %v796, %v788
    %v957 = vpack.c.b16 %v797, %v789
    %v958 = vpack.c.b16 %v798, %v790
    %v959 = vpack.c.b16 %v799, %v791
    %v960 = vpack.c.b16 %v800, %v792
    %v961 = vpack.c.b16 %v809, %v801
    %v962 = vpack.c.b16 %v810, %v802
    %v963 = vpack.c.b16 %v811, %v803
    %v964 = vpack.c.b16 %v812, %v804
    %v965 = vpack.c.b16 %v813, %v805
    %v966 = vpack.c.b16 %v814, %v806
    %v967 = vpack.c.b16 %v815, %v807
    %v968 = vpack.c.b16 %v816, %v808
    %v969 = vpack.c.b16 %v825, %v817
    %v970 = vpack.c.b16 %v826, %v818
    %v971 = vpack.c.b16 %v827, %v819
    %v972 = vpack.c.b16 %v828, %v820
    %v973 = vpack.c.b16 %v829, %v821
    %v974 = vpack.c.b16 %v830, %v822
    %v975 = vpack.c.b16 %v831, %v823
    %v976 = vpack.c.b16 %v832, %v824
    %v977 = vpack.c.b16 %v841, %v833
    %v978 = vpack.c.b16 %v842, %v834
    %v979 = vpack.c.b16 %v843, %v835
    %v980 = vpack.c.b16 %v844, %v836
    %v981 = vpack.c.b16 %v845, %v837
    %v982 = vpack.c.b16 %v846, %v838
    %v983 = vpack.c.b16 %v847, %v839
    %v984 = vpack.c.b16 %v848, %v840
    %v985 = vpack.c.b16 %v857, %v849
    %v986 = vpack.c.b16 %v858, %v850
    %v987 = vpack.c.b16 %v859, %v851
    %v988 = vpack.c.b16 %v860, %v852
    %v989 = vpack.c.b16 %v861, %v853
    %v990 = vpack.c.b16 %v862, %v854
    %v991 = vpack.c.b16 %v863, %v855
    %v992 = vpack.c.b16 %v864, %v856
    %1121 = vmatprep.subr.bf16.mxu0 %v866
    %1122 = vmatpush1.bf16.msra.mxu0 %v865
    %1123 = vmatprep.subr.bf16.mxu0 %v874
    %1124 = vmatpush1.bf16.msra.mxu0 %v873
    %1125 = vmatprep.subr.bf16.mxu0 %v882
    %1126 = vmatpush1.bf16.msra.mxu0 %v881
    %1127 = vmatprep.subr.bf16.mxu0 %v890
    %1128 = vmatpush1.bf16.msra.mxu0 %v889
    %1129 = vmatprep.subr.bf16.mxu0 %v898
    %1130 = vmatpush1.bf16.msra.mxu0 %v897
    %1131 = vmatprep.subr.bf16.mxu0 %v906
    %1132 = vmatpush1.bf16.msra.mxu0 %v905
    %1133 = vmatprep.subr.bf16.mxu0 %v914
    %1134 = vmatpush1.bf16.msra.mxu0 %v913
    %1135 = vmatprep.subr.bf16.mxu0 %v922
    %1136 = vmatpush1.bf16.msra.mxu0 %v921
    %1137 = vmatprep.subr.bf16.mxu0 %v930
    %1138 = vmatpush1.bf16.msra.mxu0 %v929
    %1139 = vmatprep.subr.bf16.mxu0 %v938
    %1140 = vmatpush1.bf16.msra.mxu0 %v937
    %1141 = vmatprep.subr.bf16.mxu0 %v946
    %1142 = vmatpush1.bf16.msra.mxu0 %v945
    %1143 = vmatprep.subr.bf16.mxu0 %v954
    %1144 = vmatpush1.bf16.msra.mxu0 %v953
    %1145 = vmatprep.subr.bf16.mxu0 %v962
    %1146 = vmatpush1.bf16.msra.mxu0 %v961
    %1147 = vmatprep.subr.bf16.mxu0 %v970
    %1148 = vmatpush1.bf16.msra.mxu0 %v969
    %1149 = vmatprep.subr.bf16.mxu0 %v978
    %1150 = vmatpush1.bf16.msra.mxu0 %v977
    %1151 = vmatprep.subr.bf16.mxu0 %v986
    %1152 = vmatpush1.bf16.msra.mxu0 %v985
    %1153 = vmatprep.mubr.bf16.mxu0 %v315
    %1154 = vmatmul.mubr.bf16.gmra.mrb[0].mxu0 %v314
    %v1155 = vpop.f32.mrb[0].mxu0
    %v1156 = vadd.f32 %v449, %v1155
    %v1157 = vpop.f32.mrb[0].mxu0
    %v1158 = vadd.f32 %v453, %v1157
    %v1159 = vpop.f32.mrb[0].mxu0
    %v1160 = vadd.f32 %v449, %v1159
    %v1161 = vpop.f32.mrb[0].mxu0
    %v1162 = vadd.f32 %v453, %v1161
    %1163 = vdwg.mxu0
    %1164 = vmatprep.subr.bf16.mxu0 %v868
    %1165 = vmatpush1.bf16.msra.mxu0 %v867
    %1166 = vmatprep.subr.bf16.mxu0 %v876
    %1167 = vmatpush1.bf16.msra.mxu0 %v875
    %1168 = vmatprep.subr.bf16.mxu0 %v884
    %1169 = vmatpush1.bf16.msra.mxu0 %v883
    %1170 = vmatprep.subr.bf16.mxu0 %v892
    %1171 = vmatpush1.bf16.msra.mxu0 %v891
    %1172 = vmatprep.subr.bf16.mxu0 %v900
    %1173 = vmatpush1.bf16.msra.mxu0 %v899
    %1174 = vmatprep.subr.bf16.mxu0 %v908
    %1175 = vmatpush1.bf16.msra.mxu0 %v907
    %1176 = vmatprep.subr.bf16.mxu0 %v916
    %1177 = vmatpush1.bf16.msra.mxu0 %v915
    %1178 = vmatprep.subr.bf16.mxu0 %v924
    %1179 = vmatpush1.bf16.msra.mxu0 %v923
    %1180 = vmatprep.subr.bf16.mxu0 %v932
    %1181 = vmatpush1.bf16.msra.mxu0 %v931
    %1182 = vmatprep.subr.bf16.mxu0 %v940
    %1183 = vmatpush1.bf16.msra.mxu0 %v939
    %1184 = vmatprep.subr.bf16.mxu0 %v948
    %1185 = vmatpush1.bf16.msra.mxu0 %v947
    %1186 = vmatprep.subr.bf16.mxu0 %v956
    %1187 = vmatpush1.bf16.msra.mxu0 %v955
    %1188 = vmatprep.subr.bf16.mxu0 %v964
    %1189 = vmatpush1.bf16.msra.mxu0 %v963
    %1190 = vmatprep.subr.bf16.mxu0 %v972
    %1191 = vmatpush1.bf16.msra.mxu0 %v971
    %1192 = vmatprep.subr.bf16.mxu0 %v980
    %1193 = vmatpush1.bf16.msra.mxu0 %v979
    %1194 = vmatprep.subr.bf16.mxu0 %v988
    %1195 = vmatpush1.bf16.msra.mxu0 %v987
    %1196 = vmatprep.mubr.bf16.mxu0 %v315
    %1197 = vmatmul.mubr.bf16.gmra.mrb[0].mxu0 %v314
    %v1198 = vpop.f32.mrb[0].mxu0
    %v1199 = vadd.f32 %v457, %v1198
    %v1200 = vpop.f32.mrb[0].mxu0
    %v1201 = vadd.f32 %v461, %v1200
    %v1202 = vpop.f32.mrb[0].mxu0
    %v1203 = vadd.f32 %v457, %v1202
    %v1204 = vpop.f32.mrb[0].mxu0
    %v1205 = vadd.f32 %v461, %v1204
    %1206 = vdwg.mxu0
    %1207 = vmatprep.subr.bf16.mxu0 %v870
    %1208 = vmatpush1.bf16.msra.mxu0 %v869
    %1209 = vmatprep.subr.bf16.mxu0 %v878
    %1210 = vmatpush1.bf16.msra.mxu0 %v877
    %1211 = vmatprep.subr.bf16.mxu0 %v886
    %1212 = vmatpush1.bf16.msra.mxu0 %v885
    %1213 = vmatprep.subr.bf16.mxu0 %v894
    %1214 = vmatpush1.bf16.msra.mxu0 %v893
    %1215 = vmatprep.subr.bf16.mxu0 %v902
    %1216 = vmatpush1.bf16.msra.mxu0 %v901
    %1217 = vmatprep.subr.bf16.mxu0 %v910
    %1218 = vmatpush1.bf16.msra.mxu0 %v909
    %1219 = vmatprep.subr.bf16.mxu0 %v918
    %1220 = vmatpush1.bf16.msra.mxu0 %v917
    %1221 = vmatprep.subr.bf16.mxu0 %v926
    %1222 = vmatpush1.bf16.msra.mxu0 %v925
    %1223 = vmatprep.subr.bf16.mxu0 %v934
    %1224 = vmatpush1.bf16.msra.mxu0 %v933
    %1225 = vmatprep.subr.bf16.mxu0 %v942
    %1226 = vmatpush1.bf16.msra.mxu0 %v941
    %1227 = vmatprep.subr.bf16.mxu0 %v950
    %1228 = vmatpush1.bf16.msra.mxu0 %v949
    %1229 = vmatprep.subr.bf16.mxu0 %v958
    %1230 = vmatpush1.bf16.msra.mxu0 %v957
    %1231 = vmatprep.subr.bf16.mxu0 %v966
    %1232 = vmatpush1.bf16.msra.mxu0 %v965
    %1233 = vmatprep.subr.bf16.mxu0 %v974
    %1234 = vmatpush1.bf16.msra.mxu0 %v973
    %1235 = vmatprep.subr.bf16.mxu0 %v982
    %1236 = vmatpush1.bf16.msra.mxu0 %v981
    %1237 = vmatprep.subr.bf16.mxu0 %v990
    %1238 = vmatpush1.bf16.msra.mxu0 %v989
    %1239 = vmatprep.mubr.bf16.mxu0 %v315
    %1240 = vmatmul.mubr.bf16.gmra.mrb[0].mxu0 %v314
    %v1241 = vpop.f32.mrb[0].mxu0
    %v1242 = vadd.f32 %v465, %v1241
    %v1243 = vpop.f32.mrb[0].mxu0
    %v1244 = vadd.f32 %v469, %v1243
    %v1245 = vpop.f32.mrb[0].mxu0
    %v1246 = vadd.f32 %v465, %v1245
    %v1247 = vpop.f32.mrb[0].mxu0
    %v1248 = vadd.f32 %v469, %v1247
    %1249 = vdwg.mxu0
    %1250 = vmatprep.subr.bf16.mxu0 %v872
    %1251 = vmatpush1.bf16.msra.mxu0 %v871
    %1252 = vmatprep.subr.bf16.mxu0 %v880
    %1253 = vmatpush1.bf16.msra.mxu0 %v879
    %1254 = vmatprep.subr.bf16.mxu0 %v888
    %1255 = vmatpush1.bf16.msra.mxu0 %v887
    %1256 = vmatprep.subr.bf16.mxu0 %v896
    %1257 = vmatpush1.bf16.msra.mxu0 %v895
    %1258 = vmatprep.subr.bf16.mxu0 %v904
    %1259 = vmatpush1.bf16.msra.mxu0 %v903
    %1260 = vmatprep.subr.bf16.mxu0 %v912
    %1261 = vmatpush1.bf16.msra.mxu0 %v911
    %1262 = vmatprep.subr.bf16.mxu0 %v920
    %1263 = vmatpush1.bf16.msra.mxu0 %v919
    %1264 = vmatprep.subr.bf16.mxu0 %v928
    %1265 = vmatpush1.bf16.msra.mxu0 %v927
    %1266 = vmatprep.subr.bf16.mxu0 %v936
    %1267 = vmatpush1.bf16.msra.mxu0 %v935
    %1268 = vmatprep.subr.bf16.mxu0 %v944
    %1269 = vmatpush1.bf16.msra.mxu0 %v943
    %1270 = vmatprep.subr.bf16.mxu0 %v952
    %1271 = vmatpush1.bf16.msra.mxu0 %v951
    %1272 = vmatprep.subr.bf16.mxu0 %v960
    %1273 = vmatpush1.bf16.msra.mxu0 %v959
    %1274 = vmatprep.subr.bf16.mxu0 %v968
    %1275 = vmatpush1.bf16.msra.mxu0 %v967
    %1276 = vmatprep.subr.bf16.mxu0 %v976
    %1277 = vmatpush1.bf16.msra.mxu0 %v975
    %1278 = vmatprep.subr.bf16.mxu0 %v984
    %1279 = vmatpush1.bf16.msra.mxu0 %v983
    %1280 = vmatprep.subr.bf16.mxu0 %v992
    %1281 = vmatpush1.bf16.msra.mxu0 %v991
    %1282 = vmatprep.mubr.bf16.mxu0 %v315
    %1283 = vmatmul.mubr.bf16.gmra.mrb[0].mxu0 %v314
    %v1284 = vpop.f32.mrb[0].mxu0
    %v1285 = vadd.f32 %v473, %v1284
    %v1286 = vpop.f32.mrb[0].mxu0
    %v1287 = vpop.f32.mrb[0].mxu0
    %v1288 = vadd.f32 %v473, %v1287
    %v1289 = vpop.f32.mrb[0].mxu0
    %1290 = vdwg.mxu0
    %v1291 = vmax.f32 %v1156, 0.0
    %v1292 = vmax.f32 %v1158, 0.0
    %v1293 = vmax.f32 %v1199, 0.0
    %v1294 = vmax.f32 %v1201, 0.0
    %v1295 = vmax.f32 %v1242, 0.0
    %v1296 = vmax.f32 %v1244, 0.0
    %v1297 = vmax.f32 %v1285, 0.0
    %v1298 = vmax.f32 %v1160, 0.0
    %v1299 = vmax.f32 %v1162, 0.0
    %v1300 = vmax.f32 %v1203, 0.0
    %v1301 = vmax.f32 %v1205, 0.0
    %v1302 = vmax.f32 %v1246, 0.0
    %v1303 = vmax.f32 %v1248, 0.0
    %v1304 = vmax.f32 %v1288, 0.0
    %v1305 = vld [vmem:[#allocation8] sm:$0xf]
    %v1306 = vld [vmem:[#allocation8 + $0x4] sm:$0xf]
    %v1307 = vld [vmem:[#allocation8 + $0x8] sm:$0xf]
    %v1308 = vld [vmem:[#allocation8 + $0xc] sm:$0xf]
    %v1309 = vld [vmem:[#allocation10] sm:$0x1]
    %v1311 = vlaneseq
    %v1312 = vshrl.u32 %v1311, 7
    %v1313 = vsub.s32 0, %v1312
    %v1314 = vrot.slane %v1309, %v1313
    %v1320 = vunpack.c.l.b16 %v1305
    %v1321 = vunpack.c.l.b16 %v1306
    %v1322 = vunpack.c.l.b16 %v1307
    %v1323 = vunpack.c.l.b16 %v1308
    %v1324 = vpack.c.b16 %v1321, %v1320
    %v1325 = vpack.c.b16 %v1323, %v1322
    %1328 = vmatprep.subr.bf16.mxu0 0
    %1329 = vmatpush1.bf16.msra.mxu0 %v1324
    %1330 = vmatprep.subr.bf16.mxu0 0
    %1331 = vmatpush1.bf16.msra.mxu0 %v1325
    %1332 = vmatprep.subr.bf16.mxu0 0
    %1333 = vmatpush1.bf16.msra.mxu0 0
    %1334 = vmatprep.subr.bf16.mxu0 0
    %1335 = vmatpush1.bf16.msra.mxu0 0
    %1336 = vmatprep.subr.bf16.mxu0 0
    %1337 = vmatpush1.bf16.msra.mxu0 0
    %1338 = vmatprep.subr.bf16.mxu0 0
    %1339 = vmatpush1.bf16.msra.mxu0 0
    %1340 = vmatprep.subr.bf16.mxu0 0
    %1341 = vmatpush1.bf16.msra.mxu0 0
    %1342 = vmatprep.subr.bf16.mxu0 0
    %1343 = vmatpush1.bf16.msra.mxu0 0
    %1344 = vmatprep.subr.bf16.mxu0 0
    %1345 = vmatpush1.bf16.msra.mxu0 0
    %1346 = vmatprep.subr.bf16.mxu0 0
    %1347 = vmatpush1.bf16.msra.mxu0 0
    %1348 = vmatprep.subr.bf16.mxu0 0
    %1349 = vmatpush1.bf16.msra.mxu0 0
    %1350 = vmatprep.subr.bf16.mxu0 0
    %1351 = vmatpush1.bf16.msra.mxu0 0
    %1352 = vmatprep.subr.bf16.mxu0 0
    %1353 = vmatpush1.bf16.msra.mxu0 0
    %1354 = vmatprep.subr.bf16.mxu0 0
    %1355 = vmatpush1.bf16.msra.mxu0 0
    %1356 = vmatprep.subr.bf16.mxu0 0
    %1357 = vmatpush1.bf16.msra.mxu0 0
    %1358 = vmatprep.subr.bf16.mxu0 0
    %1359 = vmatpush1.bf16.msra.mxu0 0
    %1360 = vmatprep.mubr.bf16.mxu0 0
    %1361 = vmatmul.mubr.bf16.gmra.mrb[0].mxu0 %v265
    %v1362 = vpop.f32.mrb[0].mxu0
    %v1363 = vadd.f32 %v1314, %v1362
    %v1364 = vpop.f32.mrb[0].mxu0
    %v1365 = vpop.f32.mrb[0].mxu0
    %v1366 = vadd.f32 %v1314, %v1365
    %v1367 = vpop.f32.mrb[0].mxu0
    %1368 = vdwg.mxu0
    %v1369 = vsel %vm263, %v1363, -inf
    %1370 = vmax.xlane.f32.xlu0 %v1369
    %v1371 = vpop.xlane.xlu0 %1370
    %v1372 = vsel %vm263, %v1366, -inf
    %1373 = vmax.xlane.f32.xlu0 %v1372
    %v1374 = vpop.xlane.xlu0 %1373
    %v1375 = vsub.f32 %v1363, %v1371
    %v1376 = vsub.f32 %v1366, %v1374
    %v1377 = vmul.f32 %v1375, 1.442695
    %v1378 = vpow.pop %v1377
    %v1379 = vmul.f32 %v1376, 1.442695
    %v1380 = vpow.pop %v1379
    %v1381 = vpack.c.bf16 %v1380, %v1378
    %v1382 = vld [vmem:[#allocation13] sm:$0xf]
    %v1383 = vld [vmem:[#allocation13 + $0x4] sm:$0xf]
    %v1384 = vld [vmem:[#allocation13 + $0x8] sm:$0xf]
    %v1385 = vld [vmem:[#allocation13 + $0xc] sm:$0xf]
    %v1390 = vunpack.c.l.b16 %v1382
    %v1391 = vunpack.c.l.b16 %v1383
    %v1392 = vunpack.c.l.b16 %v1384
    %v1393 = vunpack.c.l.b16 %v1385
    %v1394 = vpack.c.b16 %v1391, %v1390
    %v1395 = vpack.c.b16 %v1393, %v1392
    %v1399 = vsel %vm263, %v1381, 0
    %1401 = vmatprep.subr.bf16.mxu0 0
    %1402 = vmatpush1.bf16.msra.mxu0 %v1394
    %1403 = vmatprep.subr.bf16.mxu0 0
    %1404 = vmatpush1.bf16.msra.mxu0 %v1395
    %1405 = vmatprep.subr.bf16.mxu0 0
    %1406 = vmatpush1.bf16.msra.mxu0 0
    %1407 = vmatprep.subr.bf16.mxu0 0
    %1408 = vmatpush1.bf16.msra.mxu0 0
    %1409 = vmatprep.subr.bf16.mxu0 0
    %1410 = vmatpush1.bf16.msra.mxu0 0
    %1411 = vmatprep.subr.bf16.mxu0 0
    %1412 = vmatpush1.bf16.msra.mxu0 0
    %1413 = vmatprep.subr.bf16.mxu0 0
    %1414 = vmatpush1.bf16.msra.mxu0 0
    %1415 = vmatprep.subr.bf16.mxu0 0
    %1416 = vmatpush1.bf16.msra.mxu0 0
    %1417 = vmatprep.subr.bf16.mxu0 0
    %1418 = vmatpush1.bf16.msra.mxu0 0
    %1419 = vmatprep.subr.bf16.mxu0 0
    %1420 = vmatpush1.bf16.msra.mxu0 0
    %1421 = vmatprep.subr.bf16.mxu0 0
    %1422 = vmatpush1.bf16.msra.mxu0 0
    %1423 = vmatprep.subr.bf16.mxu0 0
    %1424 = vmatpush1.bf16.msra.mxu0 0
    %1425 = vmatprep.subr.bf16.mxu0 0
    %1426 = vmatpush1.bf16.msra.mxu0 0
    %1427 = vmatprep.subr.bf16.mxu0 0
    %1428 = vmatpush1.bf16.msra.mxu0 0
    %1429 = vmatprep.subr.bf16.mxu0 0
    %1430 = vmatpush1.bf16.msra.mxu0 0
    %1431 = vmatprep.subr.bf16.mxu0 0
    %1432 = vmatpush1.bf16.msra.mxu0 0
    %1433 = vmatprep.mubr.bf16.mxu0 0
    %1434 = vmatmul.mubr.bf16.gmra.mrb[0].mxu0 %v1399
    %v1435 = vpop.f32.mrb[0].mxu0
    %v1436 = vadd.f32 0.0, %v1435
    %v1437 = vpop.f32.mrb[0].mxu0
    %v1438 = vpop.f32.mrb[0].mxu0
    %v1439 = vadd.f32 0.0, %v1438
    %v1440 = vpop.f32.mrb[0].mxu0
    %1441 = vdwg.mxu0
    %v1442 = vmax.f32 %v1436, 1e-30
    %v1443 = vmax.f32 %v1439, 1e-30
    %v1444 = vrcp.pop %v1442
    %v1445 = vrcp.pop %v1443
    %v1446 = vmul.f32 %v1378, %v1444
    %v1447 = vmul.f32 %v1380, %v1445
    %v1448 = vld [vmem:[#allocation11] sm:$0x1]
    %v1450 = vlaneseq
    %v1451 = vshrl.u32 %v1450, 7
    %v1452 = vsub.s32 0, %v1451
    %v1453 = vrot.slane %v1448, %v1452
    %v1455 = vadd.f32 %v1446, %v1453
    %v1456 = vadd.f32 %v1447, %v1453
    %v1457 = vpack.c.bf16 %v1456, %v1455
    %v1458 = vld [vmem:[#allocation14] sm:$0xff]
    %v1459 = vld [vmem:[#allocation14 + $0x8] sm:$0xff]
    %v1460 = vld [vmem:[#allocation14 + $0x10] sm:$0xff]
    %v1461 = vld [vmem:[#allocation14 + $0x18] sm:$0xff]
    %v1462 = vld [vmem:[#allocation14 + $0x20] sm:$0xff]
    %v1463 = vld [vmem:[#allocation14 + $0x28] sm:$0xff]
    %v1464 = vld [vmem:[#allocation14 + $0x30] sm:$0xff]
    %v1465 = vld [vmem:[#allocation14 + $0x38] sm:$0xff]
    %v1466 = vld [vmem:[#allocation14 + $0x40] sm:$0xff]
    %v1467 = vld [vmem:[#allocation14 + $0x48] sm:$0xff]
    %v1468 = vld [vmem:[#allocation14 + $0x50] sm:$0xff]
    %v1469 = vld [vmem:[#allocation14 + $0x58] sm:$0xff]
    %v1470 = vld [vmem:[#allocation14 + $0x60] sm:$0xff]
    %v1471 = vld [vmem:[#allocation14 + $0x68] sm:$0xff]
    %v1472 = vld [vmem:[#allocation14 + $0x70] sm:$0xff]
    %v1473 = vld [vmem:[#allocation14 + $0x78] sm:$0xff]
    %v1490 = vunpack.c.l.b16 %v1458
    %v1491 = vunpack.c.h.b16 %v1458
    %v1492 = vunpack.c.l.b16 %v1459
    %v1493 = vunpack.c.h.b16 %v1459
    %v1494 = vunpack.c.l.b16 %v1460
    %v1495 = vunpack.c.h.b16 %v1460
    %v1496 = vunpack.c.l.b16 %v1461
    %v1497 = vunpack.c.h.b16 %v1461
    %v1498 = vunpack.c.l.b16 %v1462
    %v1499 = vunpack.c.h.b16 %v1462
    %v1500 = vunpack.c.l.b16 %v1463
    %v1501 = vunpack.c.h.b16 %v1463
    %v1502 = vunpack.c.l.b16 %v1464
    %v1503 = vunpack.c.h.b16 %v1464
    %v1504 = vunpack.c.l.b16 %v1465
    %v1505 = vunpack.c.h.b16 %v1465
    %v1506 = vunpack.c.l.b16 %v1466
    %v1507 = vunpack.c.h.b16 %v1466
    %v1508 = vunpack.c.l.b16 %v1467
    %v1509 = vunpack.c.h.b16 %v1467
    %v1510 = vunpack.c.l.b16 %v1468
    %v1511 = vunpack.c.h.b16 %v1468
    %v1512 = vunpack.c.l.b16 %v1469
    %v1513 = vunpack.c.h.b16 %v1469
    %v1514 = vunpack.c.l.b16 %v1470
    %v1515 = vunpack.c.h.b16 %v1470
    %v1516 = vunpack.c.l.b16 %v1471
    %v1517 = vunpack.c.h.b16 %v1471
    %v1518 = vunpack.c.l.b16 %v1472
    %v1519 = vunpack.c.h.b16 %v1472
    %v1520 = vunpack.c.l.b16 %v1473
    %v1521 = vunpack.c.h.b16 %v1473
    %v1522 = vpack.c.b16 %v1498, %v1490
    %v1523 = vpack.c.b16 %v1499, %v1491
    %v1524 = vpack.c.b16 %v1500, %v1492
    %v1525 = vpack.c.b16 %v1501, %v1493
    %v1526 = vpack.c.b16 %v1502, %v1494
    %v1527 = vpack.c.b16 %v1503, %v1495
    %v1528 = vpack.c.b16 %v1504, %v1496
    %v1529 = vpack.c.b16 %v1505, %v1497
    %v1530 = vpack.c.b16 %v1514, %v1506
    %v1531 = vpack.c.b16 %v1515, %v1507
    %v1532 = vpack.c.b16 %v1516, %v1508
    %v1533 = vpack.c.b16 %v1517, %v1509
    %v1534 = vpack.c.b16 %v1518, %v1510
    %v1535 = vpack.c.b16 %v1519, %v1511
    %v1536 = vpack.c.b16 %v1520, %v1512
    %v1537 = vpack.c.b16 %v1521, %v1513
    %v1555 = vsel %vm263, %v1457, 0
    %1557 = vmatprep.subr.bf16.mxu0 %v1523
    %1558 = vmatpush1.bf16.msra.mxu0 %v1522
    %1559 = vmatprep.subr.bf16.mxu0 %v1531
    %1560 = vmatpush1.bf16.msra.mxu0 %v1530
    %1561 = vmatprep.subr.bf16.mxu0 0
    %1562 = vmatpush1.bf16.msra.mxu0 0
    %1563 = vmatprep.subr.bf16.mxu0 0
    %1564 = vmatpush1.bf16.msra.mxu0 0
    %1565 = vmatprep.subr.bf16.mxu0 0
    %1566 = vmatpush1.bf16.msra.mxu0 0
    %1567 = vmatprep.subr.bf16.mxu0 0
    %1568 = vmatpush1.bf16.msra.mxu0 0
    %1569 = vmatprep.subr.bf16.mxu0 0
    %1570 = vmatpush1.bf16.msra.mxu0 0
    %1571 = vmatprep.subr.bf16.mxu0 0
    %1572 = vmatpush1.bf16.msra.mxu0 0
    %1573 = vmatprep.subr.bf16.mxu0 0
    %1574 = vmatpush1.bf16.msra.mxu0 0
    %1575 = vmatprep.subr.bf16.mxu0 0
    %1576 = vmatpush1.bf16.msra.mxu0 0
    %1577 = vmatprep.subr.bf16.mxu0 0
    %1578 = vmatpush1.bf16.msra.mxu0 0
    %1579 = vmatprep.subr.bf16.mxu0 0
    %1580 = vmatpush1.bf16.msra.mxu0 0
    %1581 = vmatprep.subr.bf16.mxu0 0
    %1582 = vmatpush1.bf16.msra.mxu0 0
    %1583 = vmatprep.subr.bf16.mxu0 0
    %1584 = vmatpush1.bf16.msra.mxu0 0
    %1585 = vmatprep.subr.bf16.mxu0 0
    %1586 = vmatpush1.bf16.msra.mxu0 0
    %1587 = vmatprep.subr.bf16.mxu0 0
    %1588 = vmatpush1.bf16.msra.mxu0 0
    %1589 = vmatprep.mubr.bf16.mxu0 0
    %1590 = vmatmul.mubr.bf16.gmra.mrb[0].mxu0 %v1555
    %v1591 = vpop.f32.mrb[0].mxu0
    %v1592 = vadd.f32 0.0, %v1591
    %v1593 = vpop.f32.mrb[0].mxu0
    %v1594 = vadd.f32 0.0, %v1593
    %v1595 = vpop.f32.mrb[0].mxu0
    %v1596 = vadd.f32 0.0, %v1595
    %v1597 = vpop.f32.mrb[0].mxu0
    %v1598 = vadd.f32 0.0, %v1597
    %1599 = vdwg.mxu0
    %1600 = vmatprep.subr.bf16.mxu0 %v1525
    %1601 = vmatpush1.bf16.msra.mxu0 %v1524
    %1602 = vmatprep.subr.bf16.mxu0 %v1533
    %1603 = vmatpush1.bf16.msra.mxu0 %v1532
    %1604 = vmatprep.subr.bf16.mxu0 0
    %1605 = vmatpush1.bf16.msra.mxu0 0
    %1606 = vmatprep.subr.bf16.mxu0 0
    %1607 = vmatpush1.bf16.msra.mxu0 0
    %1608 = vmatprep.subr.bf16.mxu0 0
    %1609 = vmatpush1.bf16.msra.mxu0 0
    %1610 = vmatprep.subr.bf16.mxu0 0
    %1611 = vmatpush1.bf16.msra.mxu0 0
    %1612 = vmatprep.subr.bf16.mxu0 0
    %1613 = vmatpush1.bf16.msra.mxu0 0
    %1614 = vmatprep.subr.bf16.mxu0 0
    %1615 = vmatpush1.bf16.msra.mxu0 0
    %1616 = vmatprep.subr.bf16.mxu0 0
    %1617 = vmatpush1.bf16.msra.mxu0 0
    %1618 = vmatprep.subr.bf16.mxu0 0
    %1619 = vmatpush1.bf16.msra.mxu0 0
    %1620 = vmatprep.subr.bf16.mxu0 0
    %1621 = vmatpush1.bf16.msra.mxu0 0
    %1622 = vmatprep.subr.bf16.mxu0 0
    %1623 = vmatpush1.bf16.msra.mxu0 0
    %1624 = vmatprep.subr.bf16.mxu0 0
    %1625 = vmatpush1.bf16.msra.mxu0 0
    %1626 = vmatprep.subr.bf16.mxu0 0
    %1627 = vmatpush1.bf16.msra.mxu0 0
    %1628 = vmatprep.subr.bf16.mxu0 0
    %1629 = vmatpush1.bf16.msra.mxu0 0
    %1630 = vmatprep.subr.bf16.mxu0 0
    %1631 = vmatpush1.bf16.msra.mxu0 0
    %1632 = vmatprep.mubr.bf16.mxu0 0
    %1633 = vmatmul.mubr.bf16.gmra.mrb[0].mxu0 %v1555
    %v1634 = vpop.f32.mrb[0].mxu0
    %v1635 = vadd.f32 0.0, %v1634
    %v1636 = vpop.f32.mrb[0].mxu0
    %v1637 = vadd.f32 0.0, %v1636
    %v1638 = vpop.f32.mrb[0].mxu0
    %v1639 = vadd.f32 0.0, %v1638
    %v1640 = vpop.f32.mrb[0].mxu0
    %v1641 = vadd.f32 0.0, %v1640
    %1642 = vdwg.mxu0
    %1643 = vmatprep.subr.bf16.mxu0 %v1527
    %1644 = vmatpush1.bf16.msra.mxu0 %v1526
    %1645 = vmatprep.subr.bf16.mxu0 %v1535
    %1646 = vmatpush1.bf16.msra.mxu0 %v1534
    %1647 = vmatprep.subr.bf16.mxu0 0
    %1648 = vmatpush1.bf16.msra.mxu0 0
    %1649 = vmatprep.subr.bf16.mxu0 0
    %1650 = vmatpush1.bf16.msra.mxu0 0
    %1651 = vmatprep.subr.bf16.mxu0 0
    %1652 = vmatpush1.bf16.msra.mxu0 0
    %1653 = vmatprep.subr.bf16.mxu0 0
    %1654 = vmatpush1.bf16.msra.mxu0 0
    %1655 = vmatprep.subr.bf16.mxu0 0
    %1656 = vmatpush1.bf16.msra.mxu0 0
    %1657 = vmatprep.subr.bf16.mxu0 0
    %1658 = vmatpush1.bf16.msra.mxu0 0
    %1659 = vmatprep.subr.bf16.mxu0 0
    %1660 = vmatpush1.bf16.msra.mxu0 0
    %1661 = vmatprep.subr.bf16.mxu0 0
    %1662 = vmatpush1.bf16.msra.mxu0 0
    %1663 = vmatprep.subr.bf16.mxu0 0
    %1664 = vmatpush1.bf16.msra.mxu0 0
    %1665 = vmatprep.subr.bf16.mxu0 0
    %1666 = vmatpush1.bf16.msra.mxu0 0
    %1667 = vmatprep.subr.bf16.mxu0 0
    %1668 = vmatpush1.bf16.msra.mxu0 0
    %1669 = vmatprep.subr.bf16.mxu0 0
    %1670 = vmatpush1.bf16.msra.mxu0 0
    %1671 = vmatprep.subr.bf16.mxu0 0
    %1672 = vmatpush1.bf16.msra.mxu0 0
    %1673 = vmatprep.subr.bf16.mxu0 0
    %1674 = vmatpush1.bf16.msra.mxu0 0
    %1675 = vmatprep.mubr.bf16.mxu0 0
    %1676 = vmatmul.mubr.bf16.gmra.mrb[0].mxu0 %v1555
    %v1677 = vpop.f32.mrb[0].mxu0
    %v1678 = vadd.f32 0.0, %v1677
    %v1679 = vpop.f32.mrb[0].mxu0
    %v1680 = vadd.f32 0.0, %v1679
    %v1681 = vpop.f32.mrb[0].mxu0
    %v1682 = vadd.f32 0.0, %v1681
    %v1683 = vpop.f32.mrb[0].mxu0
    %v1684 = vadd.f32 0.0, %v1683
    %1685 = vdwg.mxu0
    %1686 = vmatprep.subr.bf16.mxu0 %v1529
    %1687 = vmatpush1.bf16.msra.mxu0 %v1528
    %1688 = vmatprep.subr.bf16.mxu0 %v1537
    %1689 = vmatpush1.bf16.msra.mxu0 %v1536
    %1690 = vmatprep.subr.bf16.mxu0 0
    %1691 = vmatpush1.bf16.msra.mxu0 0
    %1692 = vmatprep.subr.bf16.mxu0 0
    %1693 = vmatpush1.bf16.msra.mxu0 0
    %1694 = vmatprep.subr.bf16.mxu0 0
    %1695 = vmatpush1.bf16.msra.mxu0 0
    %1696 = vmatprep.subr.bf16.mxu0 0
    %1697 = vmatpush1.bf16.msra.mxu0 0
    %1698 = vmatprep.subr.bf16.mxu0 0
    %1699 = vmatpush1.bf16.msra.mxu0 0
    %1700 = vmatprep.subr.bf16.mxu0 0
    %1701 = vmatpush1.bf16.msra.mxu0 0
    %1702 = vmatprep.subr.bf16.mxu0 0
    %1703 = vmatpush1.bf16.msra.mxu0 0
    %1704 = vmatprep.subr.bf16.mxu0 0
    %1705 = vmatpush1.bf16.msra.mxu0 0
    %1706 = vmatprep.subr.bf16.mxu0 0
    %1707 = vmatpush1.bf16.msra.mxu0 0
    %1708 = vmatprep.subr.bf16.mxu0 0
    %1709 = vmatpush1.bf16.msra.mxu0 0
    %1710 = vmatprep.subr.bf16.mxu0 0
    %1711 = vmatpush1.bf16.msra.mxu0 0
    %1712 = vmatprep.subr.bf16.mxu0 0
    %1713 = vmatpush1.bf16.msra.mxu0 0
    %1714 = vmatprep.subr.bf16.mxu0 0
    %1715 = vmatpush1.bf16.msra.mxu0 0
    %1716 = vmatprep.subr.bf16.mxu0 0
    %1717 = vmatpush1.bf16.msra.mxu0 0
    %1718 = vmatprep.mubr.bf16.mxu0 0
    %1719 = vmatmul.mubr.bf16.gmra.mrb[0].mxu0 %v1555
    %v1720 = vpop.f32.mrb[0].mxu0
    %v1721 = vadd.f32 0.0, %v1720
    %v1722 = vpop.f32.mrb[0].mxu0
    %v1723 = vpop.f32.mrb[0].mxu0
    %v1724 = vadd.f32 0.0, %v1723
    %v1725 = vpop.f32.mrb[0].mxu0
    %1726 = vdwg.mxu0
    %v1727 = vmul.f32 %v1592, %v1291
    %v1728 = vmul.f32 %v1594, %v1292
    %v1729 = vmul.f32 %v1635, %v1293
    %v1730 = vmul.f32 %v1637, %v1294
    %v1731 = vmul.f32 %v1678, %v1295
    %v1732 = vmul.f32 %v1680, %v1296
    %v1733 = vmul.f32 %v1721, %v1297
    %v1734 = vmul.f32 %v1596, %v1298
    %v1735 = vmul.f32 %v1598, %v1299
    %v1736 = vmul.f32 %v1639, %v1300
    %v1737 = vmul.f32 %v1641, %v1301
    %v1738 = vmul.f32 %v1682, %v1302
    %v1739 = vmul.f32 %v1684, %v1303
    %v1740 = vmul.f32 %v1724, %v1304
    %v1741 = vadd.f32 %v1727, %v1728
    %v1742 = vadd.f32 %v1734, %v1735
    %v1743 = vadd.f32 %v1729, %v1730
    %v1744 = vadd.f32 %v1736, %v1737
    %v1745 = vadd.f32 %v1731, %v1732
    %v1746 = vadd.f32 %v1738, %v1739
    %v1747 = vadd.f32 %v1741, %v1743
    %v1748 = vadd.f32 %v1742, %v1744
    %v1749 = vadd.f32 %v1745, %v1733
    %v1750 = vadd.f32 %v1746, %v1740
    %v1751 = vadd.f32 %v1747, %v1749
    %v1752 = vadd.f32 %v1748, %v1750
    %v1753 = vpack.c.bf16 %v1752, %v1751
    %v1754 = vld [vmem:[#allocation16] sm:$0xff]
    %v1755 = vld [vmem:[#allocation16 + $0x8] sm:$0xff]
    %v1756 = vld [vmem:[#allocation16 + $0x10] sm:$0xff]
    %v1757 = vld [vmem:[#allocation16 + $0x18] sm:$0xff]
    %v1758 = vld [vmem:[#allocation16 + $0x20] sm:$0xff]
    %v1759 = vld [vmem:[#allocation16 + $0x28] sm:$0xff]
    %v1760 = vld [vmem:[#allocation16 + $0x30] sm:$0xff]
    %v1761 = vld [vmem:[#allocation16 + $0x38] sm:$0xff]
    %v1762 = vld [vmem:[#allocation16 + $0x40] sm:$0xff]
    %v1763 = vld [vmem:[#allocation16 + $0x48] sm:$0xff]
    %v1764 = vld [vmem:[#allocation16 + $0x50] sm:$0xff]
    %v1765 = vld [vmem:[#allocation16 + $0x58] sm:$0xff]
    %v1766 = vld [vmem:[#allocation16 + $0x60] sm:$0xff]
    %v1767 = vld [vmem:[#allocation16 + $0x68] sm:$0xff]
    %v1768 = vld [vmem:[#allocation16 + $0x70] sm:$0xff]
    %v1769 = vld [vmem:[#allocation16 + $0x78] sm:$0xff]
    %v1770 = vld [vmem:[#allocation16 + $0x80] sm:$0xff]
    %v1771 = vld [vmem:[#allocation16 + $0x88] sm:$0xff]
    %v1772 = vld [vmem:[#allocation16 + $0x90] sm:$0xff]
    %v1773 = vld [vmem:[#allocation16 + $0x98] sm:$0xff]
    %v1774 = vld [vmem:[#allocation16 + $0xa0] sm:$0xff]
    %v1775 = vld [vmem:[#allocation16 + $0xa8] sm:$0xff]
    %v1776 = vld [vmem:[#allocation16 + $0xb0] sm:$0xff]
    %v1777 = vld [vmem:[#allocation16 + $0xb8] sm:$0xff]
    %v1778 = vld [vmem:[#allocation16 + $0xc0] sm:$0xff]
    %v1779 = vld [vmem:[#allocation16 + $0xc8] sm:$0xff]
    %v1780 = vld [vmem:[#allocation16 + $0xd0] sm:$0xff]
    %v1781 = vld [vmem:[#allocation16 + $0xd8] sm:$0xff]
    %v1782 = vld [vmem:[#allocation16 + $0xe0] sm:$0xff]
    %v1783 = vld [vmem:[#allocation16 + $0xe8] sm:$0xff]
    %v1784 = vld [vmem:[#allocation16 + $0xf0] sm:$0xff]
    %v1785 = vld [vmem:[#allocation16 + $0xf8] sm:$0xff]
    %v1786 = vld [vmem:[#allocation16 + $0x100] sm:$0xff]
    %v1787 = vld [vmem:[#allocation16 + $0x108] sm:$0xff]
    %v1788 = vld [vmem:[#allocation16 + $0x110] sm:$0xff]
    %v1789 = vld [vmem:[#allocation16 + $0x118] sm:$0xff]
    %v1790 = vld [vmem:[#allocation16 + $0x120] sm:$0xff]
    %v1791 = vld [vmem:[#allocation16 + $0x128] sm:$0xff]
    %v1792 = vld [vmem:[#allocation16 + $0x130] sm:$0xff]
    %v1793 = vld [vmem:[#allocation16 + $0x138] sm:$0xff]
    %v1794 = vld [vmem:[#allocation16 + $0x140] sm:$0xff]
    %v1795 = vld [vmem:[#allocation16 + $0x148] sm:$0xff]
    %v1796 = vld [vmem:[#allocation16 + $0x150] sm:$0xff]
    %v1797 = vld [vmem:[#allocation16 + $0x158] sm:$0xff]
    %v1798 = vld [vmem:[#allocation16 + $0x160] sm:$0xff]
    %v1799 = vld [vmem:[#allocation16 + $0x168] sm:$0xff]
    %v1800 = vld [vmem:[#allocation16 + $0x170] sm:$0xff]
    %v1801 = vld [vmem:[#allocation16 + $0x178] sm:$0xff]
    %v1802 = vld [vmem:[#allocation16 + $0x180] sm:$0xff]
    %v1803 = vld [vmem:[#allocation16 + $0x188] sm:$0xff]
    %v1804 = vld [vmem:[#allocation16 + $0x190] sm:$0xff]
    %v1805 = vld [vmem:[#allocation16 + $0x198] sm:$0xff]
    %v1806 = vld [vmem:[#allocation16 + $0x1a0] sm:$0xff]
    %v1807 = vld [vmem:[#allocation16 + $0x1a8] sm:$0xff]
    %v1808 = vld [vmem:[#allocation16 + $0x1b0] sm:$0xff]
    %v1809 = vld [vmem:[#allocation16 + $0x1b8] sm:$0xff]
    %v1810 = vld [vmem:[#allocation16 + $0x1c0] sm:$0xff]
    %v1811 = vld [vmem:[#allocation16 + $0x1c8] sm:$0xff]
    %v1812 = vld [vmem:[#allocation16 + $0x1d0] sm:$0xff]
    %v1813 = vld [vmem:[#allocation16 + $0x1d8] sm:$0xff]
    %v1814 = vld [vmem:[#allocation16 + $0x1e0] sm:$0xff]
    %v1815 = vld [vmem:[#allocation16 + $0x1e8] sm:$0xff]
    %v1816 = vld [vmem:[#allocation16 + $0x1f0] sm:$0xff]
    %v1817 = vld [vmem:[#allocation16 + $0x1f8] sm:$0xff]
    %v1818 = vld [vmem:[#allocation17] sm:$0xff]
    %v1820 = vlaneseq
    %v1821 = vshrl.u32 %v1820, 7
    %v1822 = vsub.s32 0, %v1821
    %v1823 = vrot.slane %v1818, %v1822
    %v1824 = vlaneseq
    %v1825 = vshrl.u32 %v1824, 7
    %v1826 = vsub.s32 1, %v1825
    %v1827 = vrot.slane %v1818, %v1826
    %v1828 = vlaneseq
    %v1829 = vshrl.u32 %v1828, 7
    %v1830 = vsub.s32 2, %v1829
    %v1831 = vrot.slane %v1818, %v1830
    %v1832 = vlaneseq
    %v1833 = vshrl.u32 %v1832, 7
    %v1834 = vsub.s32 3, %v1833
    %v1835 = vrot.slane %v1818, %v1834
    %v1836 = vlaneseq
    %v1837 = vshrl.u32 %v1836, 7
    %v1838 = vsub.s32 4, %v1837
    %v1839 = vrot.slane %v1818, %v1838
    %v1840 = vlaneseq
    %v1841 = vshrl.u32 %v1840, 7
    %v1842 = vsub.s32 5, %v1841
    %v1843 = vrot.slane %v1818, %v1842
    %v1844 = vlaneseq
    %v1845 = vshrl.u32 %v1844, 7
    %v1846 = vsub.s32 6, %v1845
    %v1847 = vrot.slane %v1818, %v1846
    %v1919 = vunpack.c.l.b16 %v1754
    %v1920 = vunpack.c.h.b16 %v1754
    %v1921 = vunpack.c.l.b16 %v1755
    %v1922 = vunpack.c.h.b16 %v1755
    %v1923 = vunpack.c.l.b16 %v1756
    %v1924 = vunpack.c.h.b16 %v1756
    %v1925 = vunpack.c.l.b16 %v1757
    %v1926 = vunpack.c.h.b16 %v1757
    %v1927 = vunpack.c.l.b16 %v1758
    %v1928 = vunpack.c.h.b16 %v1758
    %v1929 = vunpack.c.l.b16 %v1759
    %v1930 = vunpack.c.h.b16 %v1759
    %v1931 = vunpack.c.l.b16 %v1760
    %v1932 = vunpack.c.h.b16 %v1760
    %v1933 = vunpack.c.l.b16 %v1761
    %v1934 = vunpack.c.h.b16 %v1761
    %v1935 = vunpack.c.l.b16 %v1762
    %v1936 = vunpack.c.h.b16 %v1762
    %v1937 = vunpack.c.l.b16 %v1763
    %v1938 = vunpack.c.h.b16 %v1763
    %v1939 = vunpack.c.l.b16 %v1764
    %v1940 = vunpack.c.h.b16 %v1764
    %v1941 = vunpack.c.l.b16 %v1765
    %v1942 = vunpack.c.h.b16 %v1765
    %v1943 = vunpack.c.l.b16 %v1766
    %v1944 = vunpack.c.h.b16 %v1766
    %v1945 = vunpack.c.l.b16 %v1767
    %v1946 = vunpack.c.h.b16 %v1767
    %v1947 = vunpack.c.l.b16 %v1768
    %v1948 = vunpack.c.h.b16 %v1768
    %v1949 = vunpack.c.l.b16 %v1769
    %v1950 = vunpack.c.h.b16 %v1769
    %v1951 = vunpack.c.l.b16 %v1770
    %v1952 = vunpack.c.h.b16 %v1770
    %v1953 = vunpack.c.l.b16 %v1771
    %v1954 = vunpack.c.h.b16 %v1771
    %v1955 = vunpack.c.l.b16 %v1772
    %v1956 = vunpack.c.h.b16 %v1772
    %v1957 = vunpack.c.l.b16 %v1773
    %v1958 = vunpack.c.h.b16 %v1773
    %v1959 = vunpack.c.l.b16 %v1774
    %v1960 = vunpack.c.h.b16 %v1774
    %v1961 = vunpack.c.l.b16 %v1775
    %v1962 = vunpack.c.h.b16 %v1775
    %v1963 = vunpack.c.l.b16 %v1776
    %v1964 = vunpack.c.h.b16 %v1776
    %v1965 = vunpack.c.l.b16 %v1777
    %v1966 = vunpack.c.h.b16 %v1777
    %v1967 = vunpack.c.l.b16 %v1778
    %v1968 = vunpack.c.h.b16 %v1778
    %v1969 = vunpack.c.l.b16 %v1779
    %v1970 = vunpack.c.h.b16 %v1779
    %v1971 = vunpack.c.l.b16 %v1780
    %v1972 = vunpack.c.h.b16 %v1780
    %v1973 = vunpack.c.l.b16 %v1781
    %v1974 = vunpack.c.h.b16 %v1781
    %v1975 = vunpack.c.l.b16 %v1782
    %v1976 = vunpack.c.h.b16 %v1782
    %v1977 = vunpack.c.l.b16 %v1783
    %v1978 = vunpack.c.h.b16 %v1783
    %v1979 = vunpack.c.l.b16 %v1784
    %v1980 = vunpack.c.h.b16 %v1784
    %v1981 = vunpack.c.l.b16 %v1785
    %v1982 = vunpack.c.h.b16 %v1785
    %v1983 = vunpack.c.l.b16 %v1786
    %v1984 = vunpack.c.h.b16 %v1786
    %v1985 = vunpack.c.l.b16 %v1787
    %v1986 = vunpack.c.h.b16 %v1787
    %v1987 = vunpack.c.l.b16 %v1788
    %v1988 = vunpack.c.h.b16 %v1788
    %v1989 = vunpack.c.l.b16 %v1789
    %v1990 = vunpack.c.h.b16 %v1789
    %v1991 = vunpack.c.l.b16 %v1790
    %v1992 = vunpack.c.h.b16 %v1790
    %v1993 = vunpack.c.l.b16 %v1791
    %v1994 = vunpack.c.h.b16 %v1791
    %v1995 = vunpack.c.l.b16 %v1792
    %v1996 = vunpack.c.h.b16 %v1792
    %v1997 = vunpack.c.l.b16 %v1793
    %v1998 = vunpack.c.h.b16 %v1793
    %v1999 = vunpack.c.l.b16 %v1794
    %v2000 = vunpack.c.h.b16 %v1794
    %v2001 = vunpack.c.l.b16 %v1795
    %v2002 = vunpack.c.h.b16 %v1795
    %v2003 = vunpack.c.l.b16 %v1796
    %v2004 = vunpack.c.h.b16 %v1796
    %v2005 = vunpack.c.l.b16 %v1797
    %v2006 = vunpack.c.h.b16 %v1797
    %v2007 = vunpack.c.l.b16 %v1798
    %v2008 = vunpack.c.h.b16 %v1798
    %v2009 = vunpack.c.l.b16 %v1799
    %v2010 = vunpack.c.h.b16 %v1799
    %v2011 = vunpack.c.l.b16 %v1800
    %v2012 = vunpack.c.h.b16 %v1800
    %v2013 = vunpack.c.l.b16 %v1801
    %v2014 = vunpack.c.h.b16 %v1801
    %v2015 = vunpack.c.l.b16 %v1802
    %v2016 = vunpack.c.h.b16 %v1802
    %v2017 = vunpack.c.l.b16 %v1803
    %v2018 = vunpack.c.h.b16 %v1803
    %v2019 = vunpack.c.l.b16 %v1804
    %v2020 = vunpack.c.h.b16 %v1804
    %v2021 = vunpack.c.l.b16 %v1805
    %v2022 = vunpack.c.h.b16 %v1805
    %v2023 = vunpack.c.l.b16 %v1806
    %v2024 = vunpack.c.h.b16 %v1806
    %v2025 = vunpack.c.l.b16 %v1807
    %v2026 = vunpack.c.h.b16 %v1807
    %v2027 = vunpack.c.l.b16 %v1808
    %v2028 = vunpack.c.h.b16 %v1808
    %v2029 = vunpack.c.l.b16 %v1809
    %v2030 = vunpack.c.h.b16 %v1809
    %v2031 = vunpack.c.l.b16 %v1810
    %v2032 = vunpack.c.h.b16 %v1810
    %v2033 = vunpack.c.l.b16 %v1811
    %v2034 = vunpack.c.h.b16 %v1811
    %v2035 = vunpack.c.l.b16 %v1812
    %v2036 = vunpack.c.h.b16 %v1812
    %v2037 = vunpack.c.l.b16 %v1813
    %v2038 = vunpack.c.h.b16 %v1813
    %v2039 = vunpack.c.l.b16 %v1814
    %v2040 = vunpack.c.h.b16 %v1814
    %v2041 = vunpack.c.l.b16 %v1815
    %v2042 = vunpack.c.h.b16 %v1815
    %v2043 = vunpack.c.l.b16 %v1816
    %v2044 = vunpack.c.h.b16 %v1816
    %v2045 = vunpack.c.l.b16 %v1817
    %v2046 = vunpack.c.h.b16 %v1817
    %v2047 = vpack.c.b16 %v1927, %v1919
    %v2048 = vpack.c.b16 %v1928, %v1920
    %v2049 = vpack.c.b16 %v1929, %v1921
    %v2050 = vpack.c.b16 %v1930, %v1922
    %v2051 = vpack.c.b16 %v1931, %v1923
    %v2052 = vpack.c.b16 %v1932, %v1924
    %v2053 = vpack.c.b16 %v1933, %v1925
    %v2054 = vpack.c.b16 %v1934, %v1926
    %v2055 = vpack.c.b16 %v1943, %v1935
    %v2056 = vpack.c.b16 %v1944, %v1936
    %v2057 = vpack.c.b16 %v1945, %v1937
    %v2058 = vpack.c.b16 %v1946, %v1938
    %v2059 = vpack.c.b16 %v1947, %v1939
    %v2060 = vpack.c.b16 %v1948, %v1940
    %v2061 = vpack.c.b16 %v1949, %v1941
    %v2062 = vpack.c.b16 %v1950, %v1942
    %v2063 = vpack.c.b16 %v1959, %v1951
    %v2064 = vpack.c.b16 %v1960, %v1952
    %v2065 = vpack.c.b16 %v1961, %v1953
    %v2066 = vpack.c.b16 %v1962, %v1954
    %v2067 = vpack.c.b16 %v1963, %v1955
    %v2068 = vpack.c.b16 %v1964, %v1956
    %v2069 = vpack.c.b16 %v1965, %v1957
    %v2070 = vpack.c.b16 %v1966, %v1958
    %v2071 = vpack.c.b16 %v1975, %v1967
    %v2072 = vpack.c.b16 %v1976, %v1968
    %v2073 = vpack.c.b16 %v1977, %v1969
    %v2074 = vpack.c.b16 %v1978, %v1970
    %v2075 = vpack.c.b16 %v1979, %v1971
    %v2076 = vpack.c.b16 %v1980, %v1972
    %v2077 = vpack.c.b16 %v1981, %v1973
    %v2078 = vpack.c.b16 %v1982, %v1974
    %v2079 = vpack.c.b16 %v1991, %v1983
    %v2080 = vpack.c.b16 %v1992, %v1984
    %v2081 = vpack.c.b16 %v1993, %v1985
    %v2082 = vpack.c.b16 %v1994, %v1986
    %v2083 = vpack.c.b16 %v1995, %v1987
    %v2084 = vpack.c.b16 %v1996, %v1988
    %v2085 = vpack.c.b16 %v1997, %v1989
    %v2086 = vpack.c.b16 %v1998, %v1990
    %v2087 = vpack.c.b16 %v2007, %v1999
    %v2088 = vpack.c.b16 %v2008, %v2000
    %v2089 = vpack.c.b16 %v2009, %v2001
    %v2090 = vpack.c.b16 %v2010, %v2002
    %v2091 = vpack.c.b16 %v2011, %v2003
    %v2092 = vpack.c.b16 %v2012, %v2004
    %v2093 = vpack.c.b16 %v2013, %v2005
    %v2094 = vpack.c.b16 %v2014, %v2006
    %v2095 = vpack.c.b16 %v2023, %v2015
    %v2096 = vpack.c.b16 %v2024, %v2016
    %v2097 = vpack.c.b16 %v2025, %v2017
    %v2098 = vpack.c.b16 %v2026, %v2018
    %v2099 = vpack.c.b16 %v2027, %v2019
    %v2100 = vpack.c.b16 %v2028, %v2020
    %v2101 = vpack.c.b16 %v2029, %v2021
    %v2102 = vpack.c.b16 %v2030, %v2022
    %v2103 = vpack.c.b16 %v2039, %v2031
    %v2104 = vpack.c.b16 %v2040, %v2032
    %v2105 = vpack.c.b16 %v2041, %v2033
    %v2106 = vpack.c.b16 %v2042, %v2034
    %v2107 = vpack.c.b16 %v2043, %v2035
    %v2108 = vpack.c.b16 %v2044, %v2036
    %v2109 = vpack.c.b16 %v2045, %v2037
    %v2110 = vpack.c.b16 %v2046, %v2038
    %2175 = vmatprep.subr.bf16.mxu0 %v2048
    %2176 = vmatpush1.bf16.msra.mxu0 %v2047
    %2177 = vmatprep.subr.bf16.mxu0 %v2056
    %2178 = vmatpush1.bf16.msra.mxu0 %v2055
    %2179 = vmatprep.subr.bf16.mxu0 %v2064
    %2180 = vmatpush1.bf16.msra.mxu0 %v2063
    %2181 = vmatprep.subr.bf16.mxu0 %v2072
    %2182 = vmatpush1.bf16.msra.mxu0 %v2071
    %2183 = vmatprep.subr.bf16.mxu0 %v2080
    %2184 = vmatpush1.bf16.msra.mxu0 %v2079
    %2185 = vmatprep.subr.bf16.mxu0 %v2088
    %2186 = vmatpush1.bf16.msra.mxu0 %v2087
    %2187 = vmatprep.subr.bf16.mxu0 %v2096
    %2188 = vmatpush1.bf16.msra.mxu0 %v2095
    %2189 = vmatprep.subr.bf16.mxu0 %v2104
    %2190 = vmatpush1.bf16.msra.mxu0 %v2103
    %2191 = vmatprep.subr.bf16.mxu0 0
    %2192 = vmatpush1.bf16.msra.mxu0 0
    %2193 = vmatprep.subr.bf16.mxu0 0
    %2194 = vmatpush1.bf16.msra.mxu0 0
    %2195 = vmatprep.subr.bf16.mxu0 0
    %2196 = vmatpush1.bf16.msra.mxu0 0
    %2197 = vmatprep.subr.bf16.mxu0 0
    %2198 = vmatpush1.bf16.msra.mxu0 0
    %2199 = vmatprep.subr.bf16.mxu0 0
    %2200 = vmatpush1.bf16.msra.mxu0 0
    %2201 = vmatprep.subr.bf16.mxu0 0
    %2202 = vmatpush1.bf16.msra.mxu0 0
    %2203 = vmatprep.subr.bf16.mxu0 0
    %2204 = vmatpush1.bf16.msra.mxu0 0
    %2205 = vmatprep.subr.bf16.mxu0 0
    %2206 = vmatpush1.bf16.msra.mxu0 0
    %2207 = vmatprep.mubr.bf16.mxu0 0
    %2208 = vmatmul.mubr.bf16.gmra.mrb[0].mxu0 %v1753
    %v2209 = vpop.f32.mrb[0].mxu0
    %v2210 = vadd.f32 %v1823, %v2209
    %v2211 = vpop.f32.mrb[0].mxu0
    %v2212 = vadd.f32 %v1827, %v2211
    %v2213 = vpop.f32.mrb[0].mxu0
    %v2214 = vadd.f32 %v1823, %v2213
    %v2215 = vpop.f32.mrb[0].mxu0
    %v2216 = vadd.f32 %v1827, %v2215
    %2217 = vdwg.mxu0
    %2218 = vmatprep.subr.bf16.mxu0 %v2050
    %2219 = vmatpush1.bf16.msra.mxu0 %v2049
    %2220 = vmatprep.subr.bf16.mxu0 %v2058
    %2221 = vmatpush1.bf16.msra.mxu0 %v2057
    %2222 = vmatprep.subr.bf16.mxu0 %v2066
    %2223 = vmatpush1.bf16.msra.mxu0 %v2065
    %2224 = vmatprep.subr.bf16.mxu0 %v2074
    %2225 = vmatpush1.bf16.msra.mxu0 %v2073
    %2226 = vmatprep.subr.bf16.mxu0 %v2082
    %2227 = vmatpush1.bf16.msra.mxu0 %v2081
    %2228 = vmatprep.subr.bf16.mxu0 %v2090
    %2229 = vmatpush1.bf16.msra.mxu0 %v2089
    %2230 = vmatprep.subr.bf16.mxu0 %v2098
    %2231 = vmatpush1.bf16.msra.mxu0 %v2097
    %2232 = vmatprep.subr.bf16.mxu0 %v2106
    %2233 = vmatpush1.bf16.msra.mxu0 %v2105
    %2234 = vmatprep.subr.bf16.mxu0 0
    %2235 = vmatpush1.bf16.msra.mxu0 0
    %2236 = vmatprep.subr.bf16.mxu0 0
    %2237 = vmatpush1.bf16.msra.mxu0 0
    %2238 = vmatprep.subr.bf16.mxu0 0
    %2239 = vmatpush1.bf16.msra.mxu0 0
    %2240 = vmatprep.subr.bf16.mxu0 0
    %2241 = vmatpush1.bf16.msra.mxu0 0
    %2242 = vmatprep.subr.bf16.mxu0 0
    %2243 = vmatpush1.bf16.msra.mxu0 0
    %2244 = vmatprep.subr.bf16.mxu0 0
    %2245 = vmatpush1.bf16.msra.mxu0 0
    %2246 = vmatprep.subr.bf16.mxu0 0
    %2247 = vmatpush1.bf16.msra.mxu0 0
    %2248 = vmatprep.subr.bf16.mxu0 0
    %2249 = vmatpush1.bf16.msra.mxu0 0
    %2250 = vmatprep.mubr.bf16.mxu0 0
    %2251 = vmatmul.mubr.bf16.gmra.mrb[0].mxu0 %v1753
    %v2252 = vpop.f32.mrb[0].mxu0
    %v2253 = vadd.f32 %v1831, %v2252
    %v2254 = vpop.f32.mrb[0].mxu0
    %v2255 = vadd.f32 %v1835, %v2254
    %v2256 = vpop.f32.mrb[0].mxu0
    %v2257 = vadd.f32 %v1831, %v2256
    %v2258 = vpop.f32.mrb[0].mxu0
    %v2259 = vadd.f32 %v1835, %v2258
    %2260 = vdwg.mxu0
    %2261 = vmatprep.subr.bf16.mxu0 %v2052
    %2262 = vmatpush1.bf16.msra.mxu0 %v2051
    %2263 = vmatprep.subr.bf16.mxu0 %v2060
    %2264 = vmatpush1.bf16.msra.mxu0 %v2059
    %2265 = vmatprep.subr.bf16.mxu0 %v2068
    %2266 = vmatpush1.bf16.msra.mxu0 %v2067
    %2267 = vmatprep.subr.bf16.mxu0 %v2076
    %2268 = vmatpush1.bf16.msra.mxu0 %v2075
    %2269 = vmatprep.subr.bf16.mxu0 %v2084
    %2270 = vmatpush1.bf16.msra.mxu0 %v2083
    %2271 = vmatprep.subr.bf16.mxu0 %v2092
    %2272 = vmatpush1.bf16.msra.mxu0 %v2091
    %2273 = vmatprep.subr.bf16.mxu0 %v2100
    %2274 = vmatpush1.bf16.msra.mxu0 %v2099
    %2275 = vmatprep.subr.bf16.mxu0 %v2108
    %2276 = vmatpush1.bf16.msra.mxu0 %v2107
    %2277 = vmatprep.subr.bf16.mxu0 0
    %2278 = vmatpush1.bf16.msra.mxu0 0
    %2279 = vmatprep.subr.bf16.mxu0 0
    %2280 = vmatpush1.bf16.msra.mxu0 0
    %2281 = vmatprep.subr.bf16.mxu0 0
    %2282 = vmatpush1.bf16.msra.mxu0 0
    %2283 = vmatprep.subr.bf16.mxu0 0
    %2284 = vmatpush1.bf16.msra.mxu0 0
    %2285 = vmatprep.subr.bf16.mxu0 0
    %2286 = vmatpush1.bf16.msra.mxu0 0
    %2287 = vmatprep.subr.bf16.mxu0 0
    %2288 = vmatpush1.bf16.msra.mxu0 0
    %2289 = vmatprep.subr.bf16.mxu0 0
    %2290 = vmatpush1.bf16.msra.mxu0 0
    %2291 = vmatprep.subr.bf16.mxu0 0
    %2292 = vmatpush1.bf16.msra.mxu0 0
    %2293 = vmatprep.mubr.bf16.mxu0 0
    %2294 = vmatmul.mubr.bf16.gmra.mrb[0].mxu0 %v1753
    %v2295 = vpop.f32.mrb[0].mxu0
    %v2296 = vadd.f32 %v1839, %v2295
    %v2297 = vpop.f32.mrb[0].mxu0
    %v2298 = vadd.f32 %v1843, %v2297
    %v2299 = vpop.f32.mrb[0].mxu0
    %v2300 = vadd.f32 %v1839, %v2299
    %v2301 = vpop.f32.mrb[0].mxu0
    %v2302 = vadd.f32 %v1843, %v2301
    %2303 = vdwg.mxu0
    %2304 = vmatprep.subr.bf16.mxu0 %v2054
    %2305 = vmatpush1.bf16.msra.mxu0 %v2053
    %2306 = vmatprep.subr.bf16.mxu0 %v2062
    %2307 = vmatpush1.bf16.msra.mxu0 %v2061
    %2308 = vmatprep.subr.bf16.mxu0 %v2070
    %2309 = vmatpush1.bf16.msra.mxu0 %v2069
    %2310 = vmatprep.subr.bf16.mxu0 %v2078
    %2311 = vmatpush1.bf16.msra.mxu0 %v2077
    %2312 = vmatprep.subr.bf16.mxu0 %v2086
    %2313 = vmatpush1.bf16.msra.mxu0 %v2085
    %2314 = vmatprep.subr.bf16.mxu0 %v2094
    %2315 = vmatpush1.bf16.msra.mxu0 %v2093
    %2316 = vmatprep.subr.bf16.mxu0 %v2102
    %2317 = vmatpush1.bf16.msra.mxu0 %v2101
    %2318 = vmatprep.subr.bf16.mxu0 %v2110
    %2319 = vmatpush1.bf16.msra.mxu0 %v2109
    %2320 = vmatprep.subr.bf16.mxu0 0
    %2321 = vmatpush1.bf16.msra.mxu0 0
    %2322 = vmatprep.subr.bf16.mxu0 0
    %2323 = vmatpush1.bf16.msra.mxu0 0
    %2324 = vmatprep.subr.bf16.mxu0 0
    %2325 = vmatpush1.bf16.msra.mxu0 0
    %2326 = vmatprep.subr.bf16.mxu0 0
    %2327 = vmatpush1.bf16.msra.mxu0 0
    %2328 = vmatprep.subr.bf16.mxu0 0
    %2329 = vmatpush1.bf16.msra.mxu0 0
    %2330 = vmatprep.subr.bf16.mxu0 0
    %2331 = vmatpush1.bf16.msra.mxu0 0
    %2332 = vmatprep.subr.bf16.mxu0 0
    %2333 = vmatpush1.bf16.msra.mxu0 0
    %2334 = vmatprep.subr.bf16.mxu0 0
    %2335 = vmatpush1.bf16.msra.mxu0 0
    %2336 = vmatprep.mubr.bf16.mxu0 0
    %2337 = vmatmul.mubr.bf16.gmra.mrb[0].mxu0 %v1753
    %v2338 = vpop.f32.mrb[0].mxu0
    %v2339 = vadd.f32 %v1847, %v2338
    %v2340 = vpop.f32.mrb[0].mxu0
    %v2341 = vpop.f32.mrb[0].mxu0
    %v2342 = vadd.f32 %v1847, %v2341
    %v2343 = vpop.f32.mrb[0].mxu0
    %2344 = vdwg.mxu0
    %v2345 = vmax.f32 %v2210, 0.0
    %v2346 = vmax.f32 %v2212, 0.0
    %v2347 = vmax.f32 %v2253, 0.0
    %v2348 = vmax.f32 %v2255, 0.0
    %v2349 = vmax.f32 %v2296, 0.0
    %v2350 = vmax.f32 %v2298, 0.0
    %v2351 = vmax.f32 %v2339, 0.0
    %v2352 = vmax.f32 %v2214, 0.0
    %v2353 = vmax.f32 %v2216, 0.0
    %v2354 = vmax.f32 %v2257, 0.0
    %v2355 = vmax.f32 %v2259, 0.0
    %v2356 = vmax.f32 %v2300, 0.0
    %v2357 = vmax.f32 %v2302, 0.0
    %v2358 = vmax.f32 %v2342, 0.0
    %v2359 = vld [vmem:[%s12] sm:$0xf]
    %v2360 = vld [vmem:[%s12 + $0x4] sm:$0xf]
    %v2361 = vld [vmem:[%s12 + $0x8] sm:$0xf]
    %v2362 = vld [vmem:[%s12 + $0xc] sm:$0xf]
    %v2363 = vld [vmem:[%s12 + $0x10] sm:$0xf]
    %v2364 = vld [vmem:[%s12 + $0x14] sm:$0xf]
    %v2365 = vld [vmem:[%s12 + $0x18] sm:$0xf]
    %v2366 = vld [vmem:[%s12 + $0x1c] sm:$0xf]
    %v2367 = vld [vmem:[%s12 + $0x20] sm:$0xf]
    %v2368 = vld [vmem:[%s12 + $0x24] sm:$0xf]
    %v2369 = vld [vmem:[%s12 + $0x28] sm:$0xf]
    %v2370 = vld [vmem:[%s12 + $0x2c] sm:$0xf]
    %v2371 = vld [vmem:[%s12 + $0x30] sm:$0xf]
    %v2372 = vld [vmem:[%s12 + $0x34] sm:$0xf]
    %v2373 = vld [vmem:[%s12 + $0x38] sm:$0xf]
    %v2374 = vld [vmem:[%s12 + $0x3c] sm:$0xf]
    %v2375 = vld [vmem:[#allocation19] sm:$0x1]
    %v2377 = vlaneseq
    %v2378 = vshrl.u32 %v2377, 7
    %v2379 = vsub.s32 0, %v2378
    %v2380 = vrot.slane %v2375, %v2379
    %v2398 = vunpack.c.l.b16 %v2359
    %v2399 = vunpack.c.l.b16 %v2360
    %v2400 = vunpack.c.l.b16 %v2361
    %v2401 = vunpack.c.l.b16 %v2362
    %v2402 = vunpack.c.l.b16 %v2363
    %v2403 = vunpack.c.l.b16 %v2364
    %v2404 = vunpack.c.l.b16 %v2365
    %v2405 = vunpack.c.l.b16 %v2366
    %v2406 = vunpack.c.l.b16 %v2367
    %v2407 = vunpack.c.l.b16 %v2368
    %v2408 = vunpack.c.l.b16 %v2369
    %v2409 = vunpack.c.l.b16 %v2370
    %v2410 = vunpack.c.l.b16 %v2371
    %v2411 = vunpack.c.l.b16 %v2372
    %v2412 = vunpack.c.l.b16 %v2373
    %v2413 = vunpack.c.l.b16 %v2374
    %v2414 = vpack.c.b16 %v2399, %v2398
    %v2415 = vpack.c.b16 %v2401, %v2400
    %v2416 = vpack.c.b16 %v2403, %v2402
    %v2417 = vpack.c.b16 %v2405, %v2404
    %v2418 = vpack.c.b16 %v2407, %v2406
    %v2419 = vpack.c.b16 %v2409, %v2408
    %v2420 = vpack.c.b16 %v2411, %v2410
    %v2421 = vpack.c.b16 %v2413, %v2412
    %2430 = vmatprep.subr.bf16.mxu0 0
    %2431 = vmatpush1.bf16.msra.mxu0 %v2414
    %2432 = vmatprep.subr.bf16.mxu0 0
    %2433 = vmatpush1.bf16.msra.mxu0 %v2415
    %2434 = vmatprep.subr.bf16.mxu0 0
    %2435 = vmatpush1.bf16.msra.mxu0 %v2416
    %2436 = vmatprep.subr.bf16.mxu0 0
    %2437 = vmatpush1.bf16.msra.mxu0 %v2417
    %2438 = vmatprep.subr.bf16.mxu0 0
    %2439 = vmatpush1.bf16.msra.mxu0 %v2418
    %2440 = vmatprep.subr.bf16.mxu0 0
    %2441 = vmatpush1.bf16.msra.mxu0 %v2419
    %2442 = vmatprep.subr.bf16.mxu0 0
    %2443 = vmatpush1.bf16.msra.mxu0 %v2420
    %2444 = vmatprep.subr.bf16.mxu0 0
    %2445 = vmatpush1.bf16.msra.mxu0 %v2421
    %2446 = vmatprep.subr.bf16.mxu0 0
    %2447 = vmatpush1.bf16.msra.mxu0 0
    %2448 = vmatprep.subr.bf16.mxu0 0
    %2449 = vmatpush1.bf16.msra.mxu0 0
    %2450 = vmatprep.subr.bf16.mxu0 0
    %2451 = vmatpush1.bf16.msra.mxu0 0
    %2452 = vmatprep.subr.bf16.mxu0 0
    %2453 = vmatpush1.bf16.msra.mxu0 0
    %2454 = vmatprep.subr.bf16.mxu0 0
    %2455 = vmatpush1.bf16.msra.mxu0 0
    %2456 = vmatprep.subr.bf16.mxu0 0
    %2457 = vmatpush1.bf16.msra.mxu0 0
    %2458 = vmatprep.subr.bf16.mxu0 0
    %2459 = vmatpush1.bf16.msra.mxu0 0
    %2460 = vmatprep.subr.bf16.mxu0 0
    %2461 = vmatpush1.bf16.msra.mxu0 0
    %2462 = vmatprep.mubr.bf16.mxu0 0
    %2463 = vmatmul.mubr.bf16.gmra.mrb[0].mxu0 %v1753
    %v2464 = vpop.f32.mrb[0].mxu0
    %v2465 = vadd.f32 %v2380, %v2464
    %v2466 = vpop.f32.mrb[0].mxu0
    %v2467 = vpop.f32.mrb[0].mxu0
    %v2468 = vadd.f32 %v2380, %v2467
    %v2469 = vpop.f32.mrb[0].mxu0
    %2470 = vdwg.mxu0
    %vm2471 = vcmask 195584
    %v2472 = vsel %vm2471, %v2465, -inf
    %2473 = vmax.xlane.f32.xlu0 %v2472
    %v2474 = vpop.xlane.xlu0 %2473
    %v2475 = vsel %vm2471, %v2468, -inf
    %2476 = vmax.xlane.f32.xlu0 %v2475
    %v2477 = vpop.xlane.xlu0 %2476
    %v2478 = vsub.f32 %v2465, %v2474
    %v2479 = vsub.f32 %v2468, %v2477
    %v2480 = vmul.f32 %v2478, 1.442695
    %v2481 = vpow.pop %v2480
    %v2482 = vmul.f32 %v2479, 1.442695
    %v2483 = vpow.pop %v2482
    %v2484 = vpack.c.bf16 %v2483, %v2481
    %v2485 = vld [vmem:[#allocation22] sm:$0xf]
    %v2486 = vld [vmem:[#allocation22 + $0x4] sm:$0xf]
    %v2487 = vld [vmem:[#allocation22 + $0x8] sm:$0xf]
    %v2491 = vunpack.c.l.b16 %v2485
    %v2492 = vunpack.c.l.b16 %v2486
    %v2493 = vunpack.c.l.b16 %v2487
    %v2494 = vpack.c.b16 %v2492, %v2491
    %v2495 = vpack.c.b16 %v2493, %v2493
    %v2498 = vsel %vm2471, %v2484, 0
    %vm2500 = vcmask 1043456
    %v2502 = vsel %vm2500, %v2495, 0
    %2504 = vmatprep.subr.bf16.mxu0 0
    %2505 = vmatpush1.bf16.msra.mxu0 %v2494
    %2506 = vmatprep.subr.bf16.mxu0 0
    %2507 = vmatpush1.bf16.msra.mxu0 %v2502
    %2508 = vmatprep.subr.bf16.mxu0 0
    %2509 = vmatpush1.bf16.msra.mxu0 0
    %2510 = vmatprep.subr.bf16.mxu0 0
    %2511 = vmatpush1.bf16.msra.mxu0 0
    %2512 = vmatprep.subr.bf16.mxu0 0
    %2513 = vmatpush1.bf16.msra.mxu0 0
    %2514 = vmatprep.subr.bf16.mxu0 0
    %2515 = vmatpush1.bf16.msra.mxu0 0
    %2516 = vmatprep.subr.bf16.mxu0 0
    %2517 = vmatpush1.bf16.msra.mxu0 0
    %2518 = vmatprep.subr.bf16.mxu0 0
    %2519 = vmatpush1.bf16.msra.mxu0 0
    %2520 = vmatprep.subr.bf16.mxu0 0
    %2521 = vmatpush1.bf16.msra.mxu0 0
    %2522 = vmatprep.subr.bf16.mxu0 0
    %2523 = vmatpush1.bf16.msra.mxu0 0
    %2524 = vmatprep.subr.bf16.mxu0 0
    %2525 = vmatpush1.bf16.msra.mxu0 0
    %2526 = vmatprep.subr.bf16.mxu0 0
    %2527 = vmatpush1.bf16.msra.mxu0 0
    %2528 = vmatprep.subr.bf16.mxu0 0
    %2529 = vmatpush1.bf16.msra.mxu0 0
    %2530 = vmatprep.subr.bf16.mxu0 0
    %2531 = vmatpush1.bf16.msra.mxu0 0
    %2532 = vmatprep.subr.bf16.mxu0 0
    %2533 = vmatpush1.bf16.msra.mxu0 0
    %2534 = vmatprep.subr.bf16.mxu0 0
    %2535 = vmatpush1.bf16.msra.mxu0 0
    %2536 = vmatprep.mubr.bf16.mxu0 0
    %2537 = vmatmul.mubr.bf16.gmra.mrb[0].mxu0 %v2498
    %v2538 = vpop.f32.mrb[0].mxu0
    %v2539 = vadd.f32 0.0, %v2538
    %v2540 = vpop.f32.mrb[0].mxu0
    %v2541 = vpop.f32.mrb[0].mxu0
    %v2542 = vadd.f32 0.0, %v2541
    %v2543 = vpop.f32.mrb[0].mxu0
    %2544 = vdwg.mxu0
    %v2545 = vmax.f32 %v2539, 1e-30
    %v2546 = vmax.f32 %v2542, 1e-30
    %v2547 = vrcp.pop %v2545
    %v2548 = vrcp.pop %v2546
    %v2549 = vmul.f32 %v2481, %v2547
    %v2550 = vmul.f32 %v2483, %v2548
    %v2551 = vld [vmem:[#allocation20] sm:$0x1]
    %v2553 = vlaneseq
    %v2554 = vshrl.u32 %v2553, 7
    %v2555 = vsub.s32 0, %v2554
    %v2556 = vrot.slane %v2551, %v2555
    %v2558 = vadd.f32 %v2549, %v2556
    %v2559 = vadd.f32 %v2550, %v2556
    %v2560 = vpack.c.bf16 %v2559, %v2558
    %v2561 = vld [vmem:[%s16] sm:$0xff]
    %v2562 = vld [vmem:[%s16 + $0x8] sm:$0xff]
    %v2563 = vld [vmem:[%s16 + $0x10] sm:$0xff]
    %v2564 = vld [vmem:[%s16 + $0x18] sm:$0xff]
    %v2565 = vld [vmem:[%s16 + $0x20] sm:$0xff]
    %v2566 = vld [vmem:[%s16 + $0x28] sm:$0xff]
    %v2567 = vld [vmem:[%s16 + $0x30] sm:$0xff]
    %v2568 = vld [vmem:[%s16 + $0x38] sm:$0xff]
    %v2569 = vld [vmem:[%s16 + $0x40] sm:$0xff]
    %v2570 = vld [vmem:[%s16 + $0x48] sm:$0xff]
    %v2571 = vld [vmem:[%s16 + $0x50] sm:$0xff]
    %v2572 = vld [vmem:[%s16 + $0x58] sm:$0xff]
    %v2585 = vunpack.c.l.b16 %v2561
    %v2586 = vunpack.c.h.b16 %v2561
    %v2587 = vunpack.c.l.b16 %v2562
    %v2588 = vunpack.c.h.b16 %v2562
    %v2589 = vunpack.c.l.b16 %v2563
    %v2590 = vunpack.c.h.b16 %v2563
    %v2591 = vunpack.c.l.b16 %v2564
    %v2592 = vunpack.c.h.b16 %v2564
    %v2593 = vunpack.c.l.b16 %v2565
    %v2594 = vunpack.c.h.b16 %v2565
    %v2595 = vunpack.c.l.b16 %v2566
    %v2596 = vunpack.c.h.b16 %v2566
    %v2597 = vunpack.c.l.b16 %v2567
    %v2598 = vunpack.c.h.b16 %v2567
    %v2599 = vunpack.c.l.b16 %v2568
    %v2600 = vunpack.c.h.b16 %v2568
    %v2601 = vunpack.c.l.b16 %v2569
    %v2602 = vunpack.c.h.b16 %v2569
    %v2603 = vunpack.c.l.b16 %v2570
    %v2604 = vunpack.c.h.b16 %v2570
    %v2605 = vunpack.c.l.b16 %v2571
    %v2606 = vunpack.c.h.b16 %v2571
    %v2607 = vunpack.c.l.b16 %v2572
    %v2608 = vunpack.c.h.b16 %v2572
    %v2609 = vpack.c.b16 %v2593, %v2585
    %v2610 = vpack.c.b16 %v2594, %v2586
    %v2611 = vpack.c.b16 %v2595, %v2587
    %v2612 = vpack.c.b16 %v2596, %v2588
    %v2613 = vpack.c.b16 %v2597, %v2589
    %v2614 = vpack.c.b16 %v2598, %v2590
    %v2615 = vpack.c.b16 %v2599, %v2591
    %v2616 = vpack.c.b16 %v2600, %v2592
    %v2617 = vpack.c.b16 %v2601, %v2601
    %v2618 = vpack.c.b16 %v2602, %v2602
    %v2619 = vpack.c.b16 %v2603, %v2603
    %v2620 = vpack.c.b16 %v2604, %v2604
    %v2621 = vpack.c.b16 %v2605, %v2605
    %v2622 = vpack.c.b16 %v2606, %v2606
    %v2623 = vpack.c.b16 %v2607, %v2607
    %v2624 = vpack.c.b16 %v2608, %v2608
    %v2634 = vsel %vm2471, %v2560, 0
    %v2637 = vsel %vm2500, %v2617, 0
    %v2640 = vsel %vm2500, %v2618, 0
    %v2643 = vsel %vm2500, %v2619, 0
    %v2646 = vsel %vm2500, %v2620, 0
    %v2649 = vsel %vm2500, %v2621, 0
    %v2652 = vsel %vm2500, %v2622, 0
    %v2655 = vsel %vm2500, %v2623, 0
    %v2658 = vsel %vm2500, %v2624, 0
    %2660 = vmatprep.subr.bf16.mxu0 %v2610
    %2661 = vmatpush1.bf16.msra.mxu0 %v2609
    %2662 = vmatprep.subr.bf16.mxu0 %v2640
    %2663 = vmatpush1.bf16.msra.mxu0 %v2637
    %2664 = vmatprep.subr.bf16.mxu0 0
    %2665 = vmatpush1.bf16.msra.mxu0 0
    %2666 = vmatprep.subr.bf16.mxu0 0
    %2667 = vmatpush1.bf16.msra.mxu0 0
    %2668 = vmatprep.subr.bf16.mxu0 0
    %2669 = vmatpush1.bf16.msra.mxu0 0
    %2670 = vmatprep.subr.bf16.mxu0 0
    %2671 = vmatpush1.bf16.msra.mxu0 0
    %2672 = vmatprep.subr.bf16.mxu0 0
    %2673 = vmatpush1.bf16.msra.mxu0 0
    %2674 = vmatprep.subr.bf16.mxu0 0
    %2675 = vmatpush1.bf16.msra.mxu0 0
    %2676 = vmatprep.subr.bf16.mxu0 0
    %2677 = vmatpush1.bf16.msra.mxu0 0
    %2678 = vmatprep.subr.bf16.mxu0 0
    %2679 = vmatpush1.bf16.msra.mxu0 0
    %2680 = vmatprep.subr.bf16.mxu0 0
    %2681 = vmatpush1.bf16.msra.mxu0 0
    %2682 = vmatprep.subr.bf16.mxu0 0
    %2683 = vmatpush1.bf16.msra.mxu0 0
    %2684 = vmatprep.subr.bf16.mxu0 0
    %2685 = vmatpush1.bf16.msra.mxu0 0
    %2686 = vmatprep.subr.bf16.mxu0 0
    %2687 = vmatpush1.bf16.msra.mxu0 0
    %2688 = vmatprep.subr.bf16.mxu0 0
    %2689 = vmatpush1.bf16.msra.mxu0 0
    %2690 = vmatprep.subr.bf16.mxu0 0
    %2691 = vmatpush1.bf16.msra.mxu0 0
    %2692 = vmatprep.mubr.bf16.mxu0 0
    %2693 = vmatmul.mubr.bf16.gmra.mrb[0].mxu0 %v2634
    %v2694 = vpop.f32.mrb[0].mxu0
    %v2695 = vadd.f32 0.0, %v2694
    %v2696 = vpop.f32.mrb[0].mxu0
    %v2697 = vadd.f32 0.0, %v2696
    %v2698 = vpop.f32.mrb[0].mxu0
    %v2699 = vadd.f32 0.0, %v2698
    %v2700 = vpop.f32.mrb[0].mxu0
    %v2701 = vadd.f32 0.0, %v2700
    %2702 = vdwg.mxu0
    %2703 = vmatprep.subr.bf16.mxu0 %v2612
    %2704 = vmatpush1.bf16.msra.mxu0 %v2611
    %2705 = vmatprep.subr.bf16.mxu0 %v2646
    %2706 = vmatpush1.bf16.msra.mxu0 %v2643
    %2707 = vmatprep.subr.bf16.mxu0 0
    %2708 = vmatpush1.bf16.msra.mxu0 0
    %2709 = vmatprep.subr.bf16.mxu0 0
    %2710 = vmatpush1.bf16.msra.mxu0 0
    %2711 = vmatprep.subr.bf16.mxu0 0
    %2712 = vmatpush1.bf16.msra.mxu0 0
    %2713 = vmatprep.subr.bf16.mxu0 0
    %2714 = vmatpush1.bf16.msra.mxu0 0
    %2715 = vmatprep.subr.bf16.mxu0 0
    %2716 = vmatpush1.bf16.msra.mxu0 0
    %2717 = vmatprep.subr.bf16.mxu0 0
    %2718 = vmatpush1.bf16.msra.mxu0 0
    %2719 = vmatprep.subr.bf16.mxu0 0
    %2720 = vmatpush1.bf16.msra.mxu0 0
    %2721 = vmatprep.subr.bf16.mxu0 0
    %2722 = vmatpush1.bf16.msra.mxu0 0
    %2723 = vmatprep.subr.bf16.mxu0 0
    %2724 = vmatpush1.bf16.msra.mxu0 0
    %2725 = vmatprep.subr.bf16.mxu0 0
    %2726 = vmatpush1.bf16.msra.mxu0 0
    %2727 = vmatprep.subr.bf16.mxu0 0
    %2728 = vmatpush1.bf16.msra.mxu0 0
    %2729 = vmatprep.subr.bf16.mxu0 0
    %2730 = vmatpush1.bf16.msra.mxu0 0
    %2731 = vmatprep.subr.bf16.mxu0 0
    %2732 = vmatpush1.bf16.msra.mxu0 0
    %2733 = vmatprep.subr.bf16.mxu0 0
    %2734 = vmatpush1.bf16.msra.mxu0 0
    %2735 = vmatprep.mubr.bf16.mxu0 0
    %2736 = vmatmul.mubr.bf16.gmra.mrb[0].mxu0 %v2634
    %v2737 = vpop.f32.mrb[0].mxu0
    %v2738 = vadd.f32 0.0, %v2737
    %v2739 = vpop.f32.mrb[0].mxu0
    %v2740 = vadd.f32 0.0, %v2739
    %v2741 = vpop.f32.mrb[0].mxu0
    %v2742 = vadd.f32 0.0, %v2741
    %v2743 = vpop.f32.mrb[0].mxu0
    %v2744 = vadd.f32 0.0, %v2743
    %2745 = vdwg.mxu0
    %2746 = vmatprep.subr.bf16.mxu0 %v2614
    %2747 = vmatpush1.bf16.msra.mxu0 %v2613
    %2748 = vmatprep.subr.bf16.mxu0 %v2652
    %2749 = vmatpush1.bf16.msra.mxu0 %v2649
    %2750 = vmatprep.subr.bf16.mxu0 0
    %2751 = vmatpush1.bf16.msra.mxu0 0
    %2752 = vmatprep.subr.bf16.mxu0 0
    %2753 = vmatpush1.bf16.msra.mxu0 0
    %2754 = vmatprep.subr.bf16.mxu0 0
    %2755 = vmatpush1.bf16.msra.mxu0 0
    %2756 = vmatprep.subr.bf16.mxu0 0
    %2757 = vmatpush1.bf16.msra.mxu0 0
    %2758 = vmatprep.subr.bf16.mxu0 0
    %2759 = vmatpush1.bf16.msra.mxu0 0
    %2760 = vmatprep.subr.bf16.mxu0 0
    %2761 = vmatpush1.bf16.msra.mxu0 0
    %2762 = vmatprep.subr.bf16.mxu0 0
    %2763 = vmatpush1.bf16.msra.mxu0 0
    %2764 = vmatprep.subr.bf16.mxu0 0
    %2765 = vmatpush1.bf16.msra.mxu0 0
    %2766 = vmatprep.subr.bf16.mxu0 0
    %2767 = vmatpush1.bf16.msra.mxu0 0
    %2768 = vmatprep.subr.bf16.mxu0 0
    %2769 = vmatpush1.bf16.msra.mxu0 0
    %2770 = vmatprep.subr.bf16.mxu0 0
    %2771 = vmatpush1.bf16.msra.mxu0 0
    %2772 = vmatprep.subr.bf16.mxu0 0
    %2773 = vmatpush1.bf16.msra.mxu0 0
    %2774 = vmatprep.subr.bf16.mxu0 0
    %2775 = vmatpush1.bf16.msra.mxu0 0
    %2776 = vmatprep.subr.bf16.mxu0 0
    %2777 = vmatpush1.bf16.msra.mxu0 0
    %2778 = vmatprep.mubr.bf16.mxu0 0
    %2779 = vmatmul.mubr.bf16.gmra.mrb[0].mxu0 %v2634
    %v2780 = vpop.f32.mrb[0].mxu0
    %v2781 = vadd.f32 0.0, %v2780
    %v2782 = vpop.f32.mrb[0].mxu0
    %v2783 = vadd.f32 0.0, %v2782
    %v2784 = vpop.f32.mrb[0].mxu0
    %v2785 = vadd.f32 0.0, %v2784
    %v2786 = vpop.f32.mrb[0].mxu0
    %v2787 = vadd.f32 0.0, %v2786
    %2788 = vdwg.mxu0
    %2789 = vmatprep.subr.bf16.mxu0 %v2616
    %2790 = vmatpush1.bf16.msra.mxu0 %v2615
    %2791 = vmatprep.subr.bf16.mxu0 %v2658
    %2792 = vmatpush1.bf16.msra.mxu0 %v2655
    %2793 = vmatprep.subr.bf16.mxu0 0
    %2794 = vmatpush1.bf16.msra.mxu0 0
    %2795 = vmatprep.subr.bf16.mxu0 0
    %2796 = vmatpush1.bf16.msra.mxu0 0
    %2797 = vmatprep.subr.bf16.mxu0 0
    %2798 = vmatpush1.bf16.msra.mxu0 0
    %2799 = vmatprep.subr.bf16.mxu0 0
    %2800 = vmatpush1.bf16.msra.mxu0 0
    %2801 = vmatprep.subr.bf16.mxu0 0
    %2802 = vmatpush1.bf16.msra.mxu0 0
    %2803 = vmatprep.subr.bf16.mxu0 0
    %2804 = vmatpush1.bf16.msra.mxu0 0
    %2805 = vmatprep.subr.bf16.mxu0 0
    %2806 = vmatpush1.bf16.msra.mxu0 0
    %2807 = vmatprep.subr.bf16.mxu0 0
    %2808 = vmatpush1.bf16.msra.mxu0 0
    %2809 = vmatprep.subr.bf16.mxu0 0
    %2810 = vmatpush1.bf16.msra.mxu0 0
    %2811 = vmatprep.subr.bf16.mxu0 0
    %2812 = vmatpush1.bf16.msra.mxu0 0
    %2813 = vmatprep.subr.bf16.mxu0 0
    %2814 = vmatpush1.bf16.msra.mxu0 0
    %2815 = vmatprep.subr.bf16.mxu0 0
    %2816 = vmatpush1.bf16.msra.mxu0 0
    %2817 = vmatprep.subr.bf16.mxu0 0
    %2818 = vmatpush1.bf16.msra.mxu0 0
    %2819 = vmatprep.subr.bf16.mxu0 0
    %2820 = vmatpush1.bf16.msra.mxu0 0
    %2821 = vmatprep.mubr.bf16.mxu0 0
    %2822 = vmatmul.mubr.bf16.gmra.mrb[0].mxu0 %v2634
    %v2823 = vpop.f32.mrb[0].mxu0
    %v2824 = vadd.f32 0.0, %v2823
    %v2825 = vpop.f32.mrb[0].mxu0
    %v2826 = vpop.f32.mrb[0].mxu0
    %v2827 = vadd.f32 0.0, %v2826
    %v2828 = vpop.f32.mrb[0].mxu0
    %2829 = vdwg.mxu0
    %v2830 = vmul.f32 %v2695, %v2345
    %v2831 = vmul.f32 %v2697, %v2346
    %v2832 = vmul.f32 %v2738, %v2347
    %v2833 = vmul.f32 %v2740, %v2348
    %v2834 = vmul.f32 %v2781, %v2349
    %v2835 = vmul.f32 %v2783, %v2350
    %v2836 = vmul.f32 %v2824, %v2351
    %v2837 = vmul.f32 %v2699, %v2352
    %v2838 = vmul.f32 %v2701, %v2353
    %v2839 = vmul.f32 %v2742, %v2354
    %v2840 = vmul.f32 %v2744, %v2355
    %v2841 = vmul.f32 %v2785, %v2356
    %v2842 = vmul.f32 %v2787, %v2357
    %v2843 = vmul.f32 %v2827, %v2358
    %v2844 = vadd.f32 %v2830, %v2831
    %v2845 = vadd.f32 %v2837, %v2838
    %v2846 = vadd.f32 %v2832, %v2833
    %v2847 = vadd.f32 %v2839, %v2840
    %v2848 = vadd.f32 %v2834, %v2835
    %v2849 = vadd.f32 %v2841, %v2842
    %v2850 = vadd.f32 %v2844, %v2846
    %v2851 = vadd.f32 %v2845, %v2847
    %v2852 = vadd.f32 %v2848, %v2836
    %v2853 = vadd.f32 %v2849, %v2843
    %v2854 = vadd.f32 %v2850, %v2852
    %v2855 = vadd.f32 %v2851, %v2853
    %2856 = vst [vmem:[#allocation23] sm:$0xff] %v2854
    %2857 = vst [vmem:[#allocation23 + $0x8] sm:$0xff] %v2855
    // Predicated region
    $region122: #{tpu_custom_call.1} parent=1 // pred_check
      _
    $region123: #{tpu_custom_call.1} parent=1 // pred_check_branch
      %2859 = sbr.rel (0) target = $region125
    $region124: #{tpu_custom_call.1} parent=1 // pred_region
      %s2861 = ssub.s32 256, 256
      %2862 = vsyncadd [#allocation4], %s2861
      %s2863 = sshll.u32 [#allocation23], 4
      %s2864 = int_to_ptr.vmem [resolvable:$true] %s2863
      %2869 = dma.vmem_to_hbm [thread:$0]  %s2864, 256, %s17, [#allocation4], 128, 128, 8
    $region125: #{tpu_custom_call.1} parent=1 // pred_fallthru
      _
    // Predicated region
    $region126: #{tpu_custom_call.1} parent=1 // pred_check
      _
    $region127: #{tpu_custom_call.1} parent=1 // pred_check_branch
      %2871 = sbr.rel (0) target = $region129
    $region128: #{tpu_custom_call.1} parent=1 // pred_region
      %2872 = dma.done [#allocation4], 256
    $region129: #{tpu_custom_call.1} parent=1 // pred_fallthru
      _
    %2873 = vsyncpa [#allocation3], 1
    %2874 = vsyncpa [#allocation6], 1
    %2875 = vsyncpa [#allocation9], 1
    %2876 = vsyncpa [#allocation12], 1
    %2877 = vsyncpa [#allocation15], 1
    %2878 = vsyncpa [#allocation18], 1
    %2879 = vsyncpa [#allocation21], 1
    %2880 = vsyncpa [#allocation4], 1

// kernel: tpu_custom_call.1
$region0: #{tpu_custom_call.1}
  #allocation0 [shape = 'u32[]', space=smem, size = 0x4, offset = 0x4, fixed_abs, tag = 'smem constant byte address 0x4 - core index']
  #allocation1 [shape = 'u32[144,128]{1,0:T(1,128)}', space=vmem, size = 0x12000, scoped, tag = 'internal scratch']
  %s0 = inlined_call_operand.vmem [shape: bf16[16,32], index: 0, kind: input, shape index: {}]
  %s1 = inlined_call_operand.vmem [shape: bf16[32,256], index: 1, kind: input, shape index: {}]
  %s2 = inlined_call_operand.hbm [shape: f32[1,256], index: 2, kind: input, shape index: {}]
  %s3 = inlined_call_operand.hbm [shape: bf16[256,1024], index: 3, kind: input, shape index: {}]
  %s4 = inlined_call_operand.hbm [shape: f32[1,1024], index: 4, kind: input, shape index: {}]
  %s5 = inlined_call_operand.hbm [shape: bf16[32,32], index: 5, kind: input, shape index: {}]
  %s6 = inlined_call_operand.hbm [shape: f32[1,32], index: 6, kind: input, shape index: {}]
  %s7 = inlined_call_operand.hbm [shape: f32[1,32], index: 7, kind: input, shape index: {}]
  %s8 = inlined_call_operand.hbm [shape: bf16[32,32], index: 8, kind: input, shape index: {}]
  %s9 = inlined_call_operand.hbm [shape: bf16[32,1024], index: 9, kind: input, shape index: {}]
  %s10 = inlined_call_operand.hbm [shape: bf16[128,1024], index: 10, kind: input, shape index: {}]
  %s11 = inlined_call_operand.hbm [shape: f32[1,1024], index: 11, kind: input, shape index: {}]
  %s12 = inlined_call_operand.vmem [shape: bf16[128,24], index: 12, kind: input, shape index: {}]
  %s13 = inlined_call_operand.hbm [shape: f32[1,24], index: 13, kind: input, shape index: {}]
  %s14 = inlined_call_operand.hbm [shape: f32[1,24], index: 14, kind: input, shape index: {}]
  %s15 = inlined_call_operand.hbm [shape: bf16[24,24], index: 15, kind: input, shape index: {}]
  %s16 = inlined_call_operand.vmem [shape: bf16[24,1024], index: 16, kind: input, shape index: {}]
  %s17 = inlined_call_operand.hbm [shape: f32[16,128], index: 17, kind: output, shape index: {}]
  %s18 = sld [smem:[#allocation0]]
  $region130: #{tpu_custom_call.1} parent=0
    _
  %s20 = ssub.s32 1, %s18
  %s21 = scalar_select 0, %s20, %s18
  $region1: #{tpu_custom_call.1} parent=0
    #allocation2 [shape = 'u8[1024]{0}', space=vmem, size = 0x400, scoped, tag = 'input window, operand 2, single buffered']
    #allocation3 [shape = 's32[1]{0}', space=sflag, size = 0x4, scoped, tag = 'scoped memory for tpu_custom_call.1']
    #allocation4 [shape = 's32[1]{0}', space=sflag, size = 0x4, scoped, tag = 'scoped memory for tpu_custom_call.1']
    #allocation5 [shape = 'u8[524288]{0}', space=vmem, size = 0x80000, scoped, tag = 'input window, operand 3, single buffered']
    #allocation6 [shape = 's32[1]{0}', space=sflag, size = 0x4, scoped, tag = 'scoped memory for tpu_custom_call.1']
    #allocation7 [shape = 'u8[4096]{0}', space=vmem, size = 0x1000, scoped, tag = 'input window, operand 4, single buffered']
    #allocation8 [shape = 'u8[8192]{0}', space=vmem, size = 0x2000, scoped, tag = 'input window, operand 5, single buffered']
    #allocation9 [shape = 's32[1]{0}', space=sflag, size = 0x4, scoped, tag = 'scoped memory for tpu_custom_call.1']
    #allocation10 [shape = 'u8[512]{0}', space=vmem, size = 0x400, scoped, tag = 'input window, operand 6, single buffered']
    #allocation11 [shape = 'u8[512]{0}', space=vmem, size = 0x400, scoped, tag = 'input window, operand 7, single buffered']
    #allocation12 [shape = 's32[1]{0}', space=sflag, size = 0x4, scoped, tag = 'scoped memory for tpu_custom_call.1']
    #allocation13 [shape = 'u8[8192]{0}', space=vmem, size = 0x2000, scoped, tag = 'input window, operand 8, single buffered']
    #allocation14 [shape = 'u8[65536]{0}', space=vmem, size = 0x10000, scoped, tag = 'input window, operand 9, single buffered']
    #allocation15 [shape = 's32[1]{0}', space=sflag, size = 0x4, scoped, tag = 'scoped memory for tpu_custom_call.1']
    #allocation16 [shape = 'u8[262144]{0}', space=vmem, size = 0x40000, scoped, tag = 'input window, operand 10, single buffered']
    #allocation17 [shape = 'u8[4096]{0}', space=vmem, size = 0x1000, scoped, tag = 'input window, operand 11, single buffered']
    #allocation18 [shape = 's32[1]{0}', space=sflag, size = 0x4, scoped, tag = 'scoped memory for tpu_custom_call.1']
    #allocation19 [shape = 'u8[512]{0}', space=vmem, size = 0x400, scoped, tag = 'input window, operand 13, single buffered']
    #allocation20 [shape = 'u8[512]{0}', space=vmem, size = 0x400, scoped, tag = 'input window, operand 14, single buffered']
    #allocation21 [shape = 's32[1]{0}', space=sflag, size = 0x4, scoped, tag = 'scoped memory for tpu_custom_call.1']
    #allocation22 [shape = 'u8[6144]{0}', space=vmem, size = 0x1800, scoped, tag = 'input window, operand 15, single buffered']
    #allocation23 [shape = 'u8[8192]{0}', space=vmem, size = 0x2000, scoped, tag = 'output window, operand 0, single buffered']
    %22 = vsyncpa [#allocation3], 0
    %23 = vsyncpa [#allocation6], 0
    %24 = vsyncpa [#allocation9], 0
    %25 = vsyncpa [#allocation12], 0
    %26 = vsyncpa [#allocation15], 0
    %27 = vsyncpa [#allocation18], 0
    %28 = vsyncpa [#allocation21], 0
    %29 = vsyncpa [#allocation4], 0
    // Predicated region
    $region2: #{tpu_custom_call.1} parent=1 // pred_check
      _
    $region3: #{tpu_custom_call.1} parent=1 // pred_check_branch
      %31 = sbr.rel (0) target = $region5
    $region4: #{tpu_custom_call.1} parent=1 // pred_region
      _
    $region5: #{tpu_custom_call.1} parent=1 // pred_fallthru
      _
    // Predicated region
    $region6: #{tpu_custom_call.1} parent=1 // pred_check
      _
    $region7: #{tpu_custom_call.1} parent=1 // pred_check_branch
      %33 = sbr.rel (0) target = $region9
    $region8: #{tpu_custom_call.1} parent=1 // pred_region
      _
    $region9: #{tpu_custom_call.1} parent=1 // pred_fallthru
      _
    // Predicated region
    $region10: #{tpu_custom_call.1} parent=1 // pred_check
      _
    $region11: #{tpu_custom_call.1} parent=1 // pred_check_branch
      %35 = sbr.rel (0) target = $region13
    $region12: #{tpu_custom_call.1} parent=1 // pred_region
      %s37 = ssub.s32 32, 32
      %38 = vsyncadd [#allocation3], %s37
      %s40 = sshll.u32 [#allocation2], 4
      %s41 = int_to_ptr.vmem [resolvable:$true] %s40
      %43 = dma.hbm_to_vmem [thread:$0]  %s2, 32, %s41, [#allocation3]
    $region13: #{tpu_custom_call.1} parent=1 // pred_fallthru
      _
    // Predicated region
    $region14: #{tpu_custom_call.1} parent=1 // pred_check
      _
    $region15: #{tpu_custom_call.1} parent=1 // pred_check_branch
      %45 = sbr.rel (0) target = $region17
    $region16: #{tpu_custom_call.1} parent=1 // pred_region
      %s47 = ssub.s32 16384, 16384
      %48 = vsyncadd [#allocation6], %s47
      %s49 = sshll.u32 [#allocation5], 4
      %s50 = int_to_ptr.vmem [resolvable:$true] %s49
      %55 = dma.hbm_to_vmem [thread:$0]  %s3, 16384, %s50, [#allocation6], 512, 512, 32
    $region17: #{tpu_custom_call.1} parent=1 // pred_fallthru
      _
    // Predicated region
    $region18: #{tpu_custom_call.1} parent=1 // pred_check
      _
    $region19: #{tpu_custom_call.1} parent=1 // pred_check_branch
      %57 = sbr.rel (0) target = $region21
    $region20: #{tpu_custom_call.1} parent=1 // pred_region
      %s59 = ssub.s32 128, 128
      %60 = vsyncadd [#allocation6], %s59
      %s62 = sshll.u32 [#allocation7], 4
      %s63 = int_to_ptr.vmem [resolvable:$true] %s62
      %65 = dma.hbm_to_vmem [thread:$0]  %s4, 128, %s63, [#allocation6]
    $region21: #{tpu_custom_call.1} parent=1 // pred_fallthru
      _
    // Predicated region
    $region22: #{tpu_custom_call.1} parent=1 // pred_check
      _
    $region23: #{tpu_custom_call.1} parent=1 // pred_check_branch
      %67 = sbr.rel (0) target = $region25
    $region24: #{tpu_custom_call.1} parent=1 // pred_region
      %s69 = ssub.s32 256, 256
      %70 = vsyncadd [#allocation9], %s69
      %s71 = sshll.u32 [#allocation8], 4
      %s72 = int_to_ptr.vmem [resolvable:$true] %s71
      %77 = dma.hbm_to_vmem [thread:$0]  %s5, 256, %s72, [#allocation9], 64, 64, 4
    $region25: #{tpu_custom_call.1} parent=1 // pred_fallthru
      _
    // Predicated region
    $region26: #{tpu_custom_call.1} parent=1 // pred_check
      _
    $region27: #{tpu_custom_call.1} parent=1 // pred_check_branch
      %79 = sbr.rel (0) target = $region29
    $region28: #{tpu_custom_call.1} parent=1 // pred_region
      %s81 = ssub.s32 16, 16
      %82 = vsyncadd [#allocation9], %s81
      %s84 = sshll.u32 [#allocation10], 4
      %s85 = int_to_ptr.vmem [resolvable:$true] %s84
      %87 = dma.hbm_to_vmem [thread:$0]  %s6, 16, %s85, [#allocation9]
    $region29: #{tpu_custom_call.1} parent=1 // pred_fallthru
      _
    // Predicated region
    $region30: #{tpu_custom_call.1} parent=1 // pred_check
      _
    $region31: #{tpu_custom_call.1} parent=1 // pred_check_branch
      %89 = sbr.rel (0) target = $region33
    $region32: #{tpu_custom_call.1} parent=1 // pred_region
      %s91 = ssub.s32 16, 16
      %92 = vsyncadd [#allocation12], %s91
      %s94 = sshll.u32 [#allocation11], 4
      %s95 = int_to_ptr.vmem [resolvable:$true] %s94
      %97 = dma.hbm_to_vmem [thread:$0]  %s7, 16, %s95, [#allocation12]
    $region33: #{tpu_custom_call.1} parent=1 // pred_fallthru
      _
    // Predicated region
    $region34: #{tpu_custom_call.1} parent=1 // pred_check
      _
    $region35: #{tpu_custom_call.1} parent=1 // pred_check_branch
      %99 = sbr.rel (0) target = $region37
    $region36: #{tpu_custom_call.1} parent=1 // pred_region
      %s101 = ssub.s32 256, 256
      %102 = vsyncadd [#allocation12], %s101
      %s103 = sshll.u32 [#allocation13], 4
      %s104 = int_to_ptr.vmem [resolvable:$true] %s103
      %109 = dma.hbm_to_vmem [thread:$0]  %s8, 256, %s104, [#allocation12], 64, 64, 4
    $region37: #{tpu_custom_call.1} parent=1 // pred_fallthru
      _
    // Predicated region
    $region38: #{tpu_custom_call.1} parent=1 // pred_check
      _
    $region39: #{tpu_custom_call.1} parent=1 // pred_check_branch
      %111 = sbr.rel (0) target = $region41
    $region40: #{tpu_custom_call.1} parent=1 // pred_region
      %s113 = ssub.s32 2048, 2048
      %114 = vsyncadd [#allocation15], %s113
      %s115 = sshll.u32 [#allocation14], 4
      %s116 = int_to_ptr.vmem [resolvable:$true] %s115
      %121 = dma.hbm_to_vmem [thread:$0]  %s9, 2048, %s116, [#allocation15], 512, 512, 32
    $region41: #{tpu_custom_call.1} parent=1 // pred_fallthru
      _
    // Predicated region
    $region42: #{tpu_custom_call.1} parent=1 // pred_check
      _
    $region43: #{tpu_custom_call.1} parent=1 // pred_check_branch
      %123 = sbr.rel (0) target = $region45
    $region44: #{tpu_custom_call.1} parent=1 // pred_region
      %s125 = ssub.s32 8192, 8192
      %126 = vsyncadd [#allocation15], %s125
      %s127 = sshll.u32 [#allocation16], 4
      %s128 = int_to_ptr.vmem [resolvable:$true] %s127
      %133 = dma.hbm_to_vmem [thread:$0]  %s10, 8192, %s128, [#allocation15], 512, 512, 32
    $region45: #{tpu_custom_call.1} parent=1 // pred_fallthru
      _
    // Predicated region
    $region46: #{tpu_custom_call.1} parent=1 // pred_check
      _
    $region47: #{tpu_custom_call.1} parent=1 // pred_check_branch
      %135 = sbr.rel (0) target = $region49
    $region48: #{tpu_custom_call.1} parent=1 // pred_region
      %s137 = ssub.s32 128, 128
      %138 = vsyncadd [#allocation18], %s137
      %s140 = sshll.u32 [#allocation17], 4
      %s141 = int_to_ptr.vmem [resolvable:$true] %s140
      %143 = dma.hbm_to_vmem [thread:$0]  %s11, 128, %s141, [#allocation18]
    $region49: #{tpu_custom_call.1} parent=1 // pred_fallthru
      _
    // Predicated region
    $region50: #{tpu_custom_call.1} parent=1 // pred_check
      _
    $region51: #{tpu_custom_call.1} parent=1 // pred_check_branch
      %145 = sbr.rel (0) target = $region53
    $region52: #{tpu_custom_call.1} parent=1 // pred_region
      _
    $region53: #{tpu_custom_call.1} parent=1 // pred_fallthru
      _
    // Predicated region
    $region54: #{tpu_custom_call.1} parent=1 // pred_check
      _
    $region55: #{tpu_custom_call.1} parent=1 // pred_check_branch
      %147 = sbr.rel (0) target = $region57
    $region56: #{tpu_custom_call.1} parent=1 // pred_region
      %s149 = ssub.s32 16, 16
      %150 = vsyncadd [#allocation18], %s149
      %s152 = sshll.u32 [#allocation19], 4
      %s153 = int_to_ptr.vmem [resolvable:$true] %s152
      %155 = dma.hbm_to_vmem [thread:$0]  %s13, 16, %s153, [#allocation18]
    $region57: #{tpu_custom_call.1} parent=1 // pred_fallthru
      _
    // Predicated region
    $region58: #{tpu_custom_call.1} parent=1 // pred_check
      _
    $region59: #{tpu_custom_call.1} parent=1 // pred_check_branch
      %157 = sbr.rel (0) target = $region61
    $region60: #{tpu_custom_call.1} parent=1 // pred_region
      %s159 = ssub.s32 16, 16
      %160 = vsyncadd [#allocation21], %s159
      %s162 = sshll.u32 [#allocation20], 4
      %s163 = int_to_ptr.vmem [resolvable:$true] %s162
      %165 = dma.hbm_to_vmem [thread:$0]  %s14, 16, %s163, [#allocation21]
    $region61: #{tpu_custom_call.1} parent=1 // pred_fallthru
      _
    // Predicated region
    $region62: #{tpu_custom_call.1} parent=1 // pred_check
      _
    $region63: #{tpu_custom_call.1} parent=1 // pred_check_branch
      %167 = sbr.rel (0) target = $region65
    $region64: #{tpu_custom_call.1} parent=1 // pred_region
      %s169 = ssub.s32 192, 192
      %170 = vsyncadd [#allocation21], %s169
      %s171 = sshll.u32 [#allocation22], 4
      %s172 = int_to_ptr.vmem [resolvable:$true] %s171
      %177 = dma.hbm_to_vmem [thread:$0]  %s15, 192, %s172, [#allocation21], 64, 64, 4
    $region65: #{tpu_custom_call.1} parent=1 // pred_fallthru
      _
    // Predicated region
    $region66: #{tpu_custom_call.1} parent=1 // pred_check
      _
    $region67: #{tpu_custom_call.1} parent=1 // pred_check_branch
      %179 = sbr.rel (0) target = $region69
    $region68: #{tpu_custom_call.1} parent=1 // pred_region
      _
    $region69: #{tpu_custom_call.1} parent=1 // pred_fallthru
      _
    // Predicated region
    $region70: #{tpu_custom_call.1} parent=1 // pred_check
      _
    $region71: #{tpu_custom_call.1} parent=1 // pred_check_branch
      %181 = sbr.rel (0) target = $region73
    $region72: #{tpu_custom_call.1} parent=1 // pred_region
      %182 = dma.done [#allocation3], 32
    $region73: #{tpu_custom_call.1} parent=1 // pred_fallthru
      _
    // Predicated region
    $region74: #{tpu_custom_call.1} parent=1 // pred_check
      _
    $region75: #{tpu_custom_call.1} parent=1 // pred_check_branch
      %184 = sbr.rel (0) target = $region77
    $region76: #{tpu_custom_call.1} parent=1 // pred_region
      %185 = dma.done [#allocation6], 16384
    $region77: #{tpu_custom_call.1} parent=1 // pred_fallthru
      _
    // Predicated region
    $region78: #{tpu_custom_call.1} parent=1 // pred_check
      _
    $region79: #{tpu_custom_call.1} parent=1 // pred_check_branch
      %187 = sbr.rel (0) target = $region81
    $region80: #{tpu_custom_call.1} parent=1 // pred_region
      %188 = dma.done [#allocation6], 128
    $region81: #{tpu_custom_call.1} parent=1 // pred_fallthru
      _
    // Predicated region
    $region82: #{tpu_custom_call.1} parent=1 // pred_check
      _
    $region83: #{tpu_custom_call.1} parent=1 // pred_check_branch
      %190 = sbr.rel (0) target = $region85
    $region84: #{tpu_custom_call.1} parent=1 // pred_region
      %191 = dma.done [#allocation9], 256
    $region85: #{tpu_custom_call.1} parent=1 // pred_fallthru
      _
    // Predicated region
    $region86: #{tpu_custom_call.1} parent=1 // pred_check
      _
    $region87: #{tpu_custom_call.1} parent=1 // pred_check_branch
      %193 = sbr.rel (0) target = $region89
    $region88: #{tpu_custom_call.1} parent=1 // pred_region
      %194 = dma.done [#allocation9], 16
    $region89: #{tpu_custom_call.1} parent=1 // pred_fallthru
      _
    // Predicated region
    $region90: #{tpu_custom_call.1} parent=1 // pred_check
      _
    $region91: #{tpu_custom_call.1} parent=1 // pred_check_branch
      %196 = sbr.rel (0) target = $region93
    $region92: #{tpu_custom_call.1} parent=1 // pred_region
      %197 = dma.done [#allocation12], 16
    $region93: #{tpu_custom_call.1} parent=1 // pred_fallthru
      _
    // Predicated region
    $region94: #{tpu_custom_call.1} parent=1 // pred_check
      _
    $region95: #{tpu_custom_call.1} parent=1 // pred_check_branch
      %199 = sbr.rel (0) target = $region97
    $region96: #{tpu_custom_call.1} parent=1 // pred_region
      %200 = dma.done [#allocation12], 256
    $region97: #{tpu_custom_call.1} parent=1 // pred_fallthru
      _
    // Predicated region
    $region98: #{tpu_custom_call.1} parent=1 // pred_check
      _
    $region99: #{tpu_custom_call.1} parent=1 // pred_check_branch
      %202 = sbr.rel (0) target = $region101
    $region100: #{tpu_custom_call.1} parent=1 // pred_region
      %203 = dma.done [#allocation15], 2048
    $region101: #{tpu_custom_call.1} parent=1 // pred_fallthru
      _
    // Predicated region
    $region102: #{tpu_custom_call.1} parent=1 // pred_check
      _
    $region103: #{tpu_custom_call.1} parent=1 // pred_check_branch
      %205 = sbr.rel (0) target = $region105
    $region104: #{tpu_custom_call.1} parent=1 // pred_region
      %206 = dma.done [#allocation15], 8192
    $region105: #{tpu_custom_call.1} parent=1 // pred_fallthru
      _
    // Predicated region
    $region106: #{tpu_custom_call.1} parent=1 // pred_check
      _
    $region107: #{tpu_custom_call.1} parent=1 // pred_check_branch
      %208 = sbr.rel (0) target = $region109
    $region108: #{tpu_custom_call.1} parent=1 // pred_region
      %209 = dma.done [#allocation18], 128
    $region109: #{tpu_custom_call.1} parent=1 // pred_fallthru
      _
    // Predicated region
    $region110: #{tpu_custom_call.1} parent=1 // pred_check
      _
    $region111: #{tpu_custom_call.1} parent=1 // pred_check_branch
      %211 = sbr.rel (0) target = $region113
    $region112: #{tpu_custom_call.1} parent=1 // pred_region
      %212 = dma.done [#allocation18], 16
    $region113: #{tpu_custom_call.1} parent=1 // pred_fallthru
      _
    // Predicated region
    $region114: #{tpu_custom_call.1} parent=1 // pred_check
      _
    $region115: #{tpu_custom_call.1} parent=1 // pred_check_branch
      %214 = sbr.rel (0) target = $region117
    $region116: #{tpu_custom_call.1} parent=1 // pred_region
      %215 = dma.done [#allocation21], 16
    $region117: #{tpu_custom_call.1} parent=1 // pred_fallthru
      _
    // Predicated region
    $region118: #{tpu_custom_call.1} parent=1 // pred_check
      _
    $region119: #{tpu_custom_call.1} parent=1 // pred_check_branch
      %217 = sbr.rel (0) target = $region121
    $region120: #{tpu_custom_call.1} parent=1 // pred_region
      %218 = dma.done [#allocation21], 192
    $region121: #{tpu_custom_call.1} parent=1 // pred_fallthru
      _
    %v220 = vld [vmem:[%s0] sm:$0xf]
    %v221 = vld [vmem:[%s0 + $0x4] sm:$0xf]
    %v222 = vld [vmem:[%s1] sm:$0xff]
    %v223 = vld [vmem:[%s1 + $0x8] sm:$0xff]
    %v224 = vld [vmem:[%s1 + $0x10] sm:$0xff]
    %v225 = vld [vmem:[%s1 + $0x18] sm:$0xff]
    %v226 = vld [vmem:[#allocation2] sm:$0x3]
    %v228 = vlaneseq
    %v229 = vshrl.u32 %v228, 7
    %v230 = vsub.s32 0, %v229
    %v231 = vrot.slane %v226, %v230
    %v232 = vlaneseq
    %v233 = vshrl.u32 %v232, 7
    %v234 = vsub.s32 1, %v233
    %v235 = vrot.slane %v226, %v234
    %v240 = vunpack.c.l.b16 %v220
    %v241 = vunpack.c.l.b16 %v221
    %v242 = vpack.c.b16 %v241, %v240
    %v247 = vunpack.c.l.b16 %v222
    %v248 = vunpack.c.h.b16 %v222
    %v249 = vunpack.c.l.b16 %v223
    %v250 = vunpack.c.h.b16 %v223
    %v251 = vunpack.c.l.b16 %v224
    %v252 = vunpack.c.h.b16 %v224
    %v253 = vunpack.c.l.b16 %v225
    %v254 = vunpack.c.h.b16 %v225
    %v255 = vpack.c.b16 %v249, %v247
    %v256 = vpack.c.b16 %v250, %v248
    %v257 = vpack.c.b16 %v253, %v251
    %v258 = vpack.c.b16 %v254, %v252
    %vm263 = vcmask 261120
    %v265 = vsel %vm263, %v242, 0
    %267 = vmatprep.subr.bf16.mxu0 %v256
    %268 = vmatpush1.bf16.msra.mxu0 %v255
    %269 = vmatprep.subr.bf16.mxu0 %v258
    %270 = vmatpush1.bf16.msra.mxu0 %v257
    %271 = vmatprep.subr.bf16.mxu0 0
    %272 = vmatpush1.bf16.msra.mxu0 0
    %273 = vmatprep.subr.bf16.mxu0 0
    %274 = vmatpush1.bf16.msra.mxu0 0
    %275 = vmatprep.subr.bf16.mxu0 0
    %276 = vmatpush1.bf16.msra.mxu0 0
    %277 = vmatprep.subr.bf16.mxu0 0
    %278 = vmatpush1.bf16.msra.mxu0 0
    %279 = vmatprep.subr.bf16.mxu0 0
    %280 = vmatpush1.bf16.msra.mxu0 0
    %281 = vmatprep.subr.bf16.mxu0 0
    %282 = vmatpush1.bf16.msra.mxu0 0
    %283 = vmatprep.subr.bf16.mxu0 0
    %284 = vmatpush1.bf16.msra.mxu0 0
    %285 = vmatprep.subr.bf16.mxu0 0
    %286 = vmatpush1.bf16.msra.mxu0 0
    %287 = vmatprep.subr.bf16.mxu0 0
    %288 = vmatpush1.bf16.msra.mxu0 0
    %289 = vmatprep.subr.bf16.mxu0 0
    %290 = vmatpush1.bf16.msra.mxu0 0
    %291 = vmatprep.subr.bf16.mxu0 0
    %292 = vmatpush1.bf16.msra.mxu0 0
    %293 = vmatprep.subr.bf16.mxu0 0
    %294 = vmatpush1.bf16.msra.mxu0 0
    %295 = vmatprep.subr.bf16.mxu0 0
    %296 = vmatpush1.bf16.msra.mxu0 0
    %297 = vmatprep.subr.bf16.mxu0 0
    %298 = vmatpush1.bf16.msra.mxu0 0
    %299 = vmatprep.mubr.bf16.mxu0 0
    %300 = vmatmul.mubr.bf16.gmra.mrb[0].mxu0 %v265
    %v301 = vpop.f32.mrb[0].mxu0
    %v302 = vadd.f32 %v231, %v301
    %v303 = vpop.f32.mrb[0].mxu0
    %v304 = vadd.f32 %v235, %v303
    %v305 = vpop.f32.mrb[0].mxu0
    %v306 = vadd.f32 %v231, %v305
    %v307 = vpop.f32.mrb[0].mxu0
    %v308 = vadd.f32 %v235, %v307
    %309 = vdwg.mxu0
    %v310 = vmax.f32 %v302, 0.0
    %v311 = vmax.f32 %v304, 0.0
    %v312 = vmax.f32 %v306, 0.0
    %v313 = vmax.f32 %v308, 0.0
    %v314 = vpack.c.bf16 %v312, %v310
    %v315 = vpack.c.bf16 %v313, %v311
    %v316 = vld [vmem:[#allocation5] sm:$0xff]
    %v317 = vld [vmem:[#allocation5 + $0x8] sm:$0xff]
    %v318 = vld [vmem:[#allocation5 + $0x10] sm:$0xff]
    %v319 = vld [vmem:[#allocation5 + $0x18] sm:$0xff]
    %v320 = vld [vmem:[#allocation5 + $0x20] sm:$0xff]
    %v321 = vld [vmem:[#allocation5 + $0x28] sm:$0xff]
    %v322 = vld [vmem:[#allocation5 + $0x30] sm:$0xff]
    %v323 = vld [vmem:[#allocation5 + $0x38] sm:$0xff]
    %v324 = vld [vmem:[#allocation5 + $0x40] sm:$0xff]
    %v325 = vld [vmem:[#allocation5 + $0x48] sm:$0xff]
    %v326 = vld [vmem:[#allocation5 + $0x50] sm:$0xff]
    %v327 = vld [vmem:[#allocation5 + $0x58] sm:$0xff]
    %v328 = vld [vmem:[#allocation5 + $0x60] sm:$0xff]
    %v329 = vld [vmem:[#allocation5 + $0x68] sm:$0xff]
    %v330 = vld [vmem:[#allocation5 + $0x70] sm:$0xff]
    %v331 = vld [vmem:[#allocation5 + $0x78] sm:$0xff]
    %v332 = vld [vmem:[#allocation5 + $0x80] sm:$0xff]
    %v333 = vld [vmem:[#allocation5 + $0x88] sm:$0xff]
    %v334 = vld [vmem:[#allocation5 + $0x90] sm:$0xff]
    %v335 = vld [vmem:[#allocation5 + $0x98] sm:$0xff]
    %v336 = vld [vmem:[#allocation5 + $0xa0] sm:$0xff]
    %v337 = vld [vmem:[#allocation5 + $0xa8] sm:$0xff]
    %v338 = vld [vmem:[#allocation5 + $0xb0] sm:$0xff]
    %v339 = vld [vmem:[#allocation5 + $0xb8] sm:$0xff]
    %v340 = vld [vmem:[#allocation5 + $0xc0] sm:$0xff]
    %v341 = vld [vmem:[#allocation5 + $0xc8] sm:$0xff]
    %v342 = vld [vmem:[#allocation5 + $0xd0] sm:$0xff]
    %v343 = vld [vmem:[#allocation5 + $0xd8] sm:$0xff]
    %v344 = vld [vmem:[#allocation5 + $0xe0] sm:$0xff]
    %v345 = vld [vmem:[#allocation5 + $0xe8] sm:$0xff]
    %v346 = vld [vmem:[#allocation5 + $0xf0] sm:$0xff]
    %v347 = vld [vmem:[#allocation5 + $0xf8] sm:$0xff]
    %v348 = vld [vmem:[#allocation5 + $0x100] sm:$0xff]
    %v349 = vld [vmem:[#allocation5 + $0x108] sm:$0xff]
    %v350 = vld [vmem:[#allocation5 + $0x110] sm:$0xff]
    %v351 = vld [vmem:[#allocation5 + $0x118] sm:$0xff]
    %v352 = vld [vmem:[#allocation5 + $0x120] sm:$0xff]
    %v353 = vld [vmem:[#allocation5 + $0x128] sm:$0xff]
    %v354 = vld [vmem:[#allocation5 + $0x130] sm:$0xff]
    %v355 = vld [vmem:[#allocation5 + $0x138] sm:$0xff]
    %v356 = vld [vmem:[#allocation5 + $0x140] sm:$0xff]
    %v357 = vld [vmem:[#allocation5 + $0x148] sm:$0xff]
    %v358 = vld [vmem:[#allocation5 + $0x150] sm:$0xff]
    %v359 = vld [vmem:[#allocation5 + $0x158] sm:$0xff]
    %v360 = vld [vmem:[#allocation5 + $0x160] sm:$0xff]
    %v361 = vld [vmem:[#allocation5 + $0x168] sm:$0xff]
    %v362 = vld [vmem:[#allocation5 + $0x170] sm:$0xff]
    %v363 = vld [vmem:[#allocation5 + $0x178] sm:$0xff]
    %v364 = vld [vmem:[#allocation5 + $0x180] sm:$0xff]
    %v365 = vld [vmem:[#allocation5 + $0x188] sm:$0xff]
    %v366 = vld [vmem:[#allocation5 + $0x190] sm:$0xff]
    %v367 = vld [vmem:[#allocation5 + $0x198] sm:$0xff]
    %v368 = vld [vmem:[#allocation5 + $0x1a0] sm:$0xff]
    %v369 = vld [vmem:[#allocation5 + $0x1a8] sm:$0xff]
    %v370 = vld [vmem:[#allocation5 + $0x1b0] sm:$0xff]
    %v371 = vld [vmem:[#allocation5 + $0x1b8] sm:$0xff]
    %v372 = vld [vmem:[#allocation5 + $0x1c0] sm:$0xff]
    %v373 = vld [vmem:[#allocation5 + $0x1c8] sm:$0xff]
    %v374 = vld [vmem:[#allocation5 + $0x1d0] sm:$0xff]
    %v375 = vld [vmem:[#allocation5 + $0x1d8] sm:$0xff]
    %v376 = vld [vmem:[#allocation5 + $0x1e0] sm:$0xff]
    %v377 = vld [vmem:[#allocation5 + $0x1e8] sm:$0xff]
    %v378 = vld [vmem:[#allocation5 + $0x1f0] sm:$0xff]
    %v379 = vld [vmem:[#allocation5 + $0x1f8] sm:$0xff]
    %v380 = vld [vmem:[#allocation5 + $0x200] sm:$0xff]
    %v381 = vld [vmem:[#allocation5 + $0x208] sm:$0xff]
    %v382 = vld [vmem:[#allocation5 + $0x210] sm:$0xff]
    %v383 = vld [vmem:[#allocation5 + $0x218] sm:$0xff]
    %v384 = vld [vmem:[#allocation5 + $0x220] sm:$0xff]
    %v385 = vld [vmem:[#allocation5 + $0x228] sm:$0xff]
    %v386 = vld [vmem:[#allocation5 + $0x230] sm:$0xff]
    %v387 = vld [vmem:[#allocation5 + $0x238] sm:$0xff]
    %v388 = vld [vmem:[#allocation5 + $0x240] sm:$0xff]
    %v389 = vld [vmem:[#allocation5 + $0x248] sm:$0xff]
    %v390 = vld [vmem:[#allocation5 + $0x250] sm:$0xff]
    %v391 = vld [vmem:[#allocation5 + $0x258] sm:$0xff]
    %v392 = vld [vmem:[#allocation5 + $0x260] sm:$0xff]
    %v393 = vld [vmem:[#allocation5 + $0x268] sm:$0xff]
    %v394 = vld [vmem:[#allocation5 + $0x270] sm:$0xff]
    %v395 = vld [vmem:[#allocation5 + $0x278] sm:$0xff]
    %v396 = vld [vmem:[#allocation5 + $0x280] sm:$0xff]
    %v397 = vld [vmem:[#allocation5 + $0x288] sm:$0xff]
    %v398 = vld [vmem:[#allocation5 + $0x290] sm:$0xff]
    %v399 = vld [vmem:[#allocation5 + $0x298] sm:$0xff]
    %v400 = vld [vmem:[#allocation5 + $0x2a0] sm:$0xff]
    %v401 = vld [vmem:[#allocation5 + $0x2a8] sm:$0xff]
    %v402 = vld [vmem:[#allocation5 + $0x2b0] sm:$0xff]
    %v403 = vld [vmem:[#allocation5 + $0x2b8] sm:$0xff]
    %v404 = vld [vmem:[#allocation5 + $0x2c0] sm:$0xff]
    %v405 = vld [vmem:[#allocation5 + $0x2c8] sm:$0xff]
    %v406 = vld [vmem:[#allocation5 + $0x2d0] sm:$0xff]
    %v407 = vld [vmem:[#allocation5 + $0x2d8] sm:$0xff]
    %v408 = vld [vmem:[#allocation5 + $0x2e0] sm:$0xff]
    %v409 = vld [vmem:[#allocation5 + $0x2e8] sm:$0xff]
    %v410 = vld [vmem:[#allocation5 + $0x2f0] sm:$0xff]
    %v411 = vld [vmem:[#allocation5 + $0x2f8] sm:$0xff]
    %v412 = vld [vmem:[#allocation5 + $0x300] sm:$0xff]
    %v413 = vld [vmem:[#allocation5 + $0x308] sm:$0xff]
    %v414 = vld [vmem:[#allocation5 + $0x310] sm:$0xff]
    %v415 = vld [vmem:[#allocation5 + $0x318] sm:$0xff]
    %v416 = vld [vmem:[#allocation5 + $0x320] sm:$0xff]
    %v417 = vld [vmem:[#allocation5 + $0x328] sm:$0xff]
    %v418 = vld [vmem:[#allocation5 + $0x330] sm:$0xff]
    %v419 = vld [vmem:[#allocation5 + $0x338] sm:$0xff]
    %v420 = vld [vmem:[#allocation5 + $0x340] sm:$0xff]
    %v421 = vld [vmem:[#allocation5 + $0x348] sm:$0xff]
    %v422 = vld [vmem:[#allocation5 + $0x350] sm:$0xff]
    %v423 = vld [vmem:[#allocation5 + $0x358] sm:$0xff]
    %v424 = vld [vmem:[#allocation5 + $0x360] sm:$0xff]
    %v425 = vld [vmem:[#allocation5 + $0x368] sm:$0xff]
    %v426 = vld [vmem:[#allocation5 + $0x370] sm:$0xff]
    %v427 = vld [vmem:[#allocation5 + $0x378] sm:$0xff]
    %v428 = vld [vmem:[#allocation5 + $0x380] sm:$0xff]
    %v429 = vld [vmem:[#allocation5 + $0x388] sm:$0xff]
    %v430 = vld [vmem:[#allocation5 + $0x390] sm:$0xff]
    %v431 = vld [vmem:[#allocation5 + $0x398] sm:$0xff]
    %v432 = vld [vmem:[#allocation5 + $0x3a0] sm:$0xff]
    %v433 = vld [vmem:[#allocation5 + $0x3a8] sm:$0xff]
    %v434 = vld [vmem:[#allocation5 + $0x3b0] sm:$0xff]
    %v435 = vld [vmem:[#allocation5 + $0x3b8] sm:$0xff]
    %v436 = vld [vmem:[#allocation5 + $0x3c0] sm:$0xff]
    %v437 = vld [vmem:[#allocation5 + $0x3c8] sm:$0xff]
    %v438 = vld [vmem:[#allocation5 + $0x3d0] sm:$0xff]
    %v439 = vld [vmem:[#allocation5 + $0x3d8] sm:$0xff]
    %v440 = vld [vmem:[#allocation5 + $0x3e0] sm:$0xff]
    %v441 = vld [vmem:[#allocation5 + $0x3e8] sm:$0xff]
    %v442 = vld [vmem:[#allocation5 + $0x3f0] sm:$0xff]
    %v443 = vld [vmem:[#allocation5 + $0x3f8] sm:$0xff]
    %v444 = vld [vmem:[#allocation7] sm:$0xff]
    %v446 = vlaneseq
    %v447 = vshrl.u32 %v446, 7
    %v448 = vsub.s32 0, %v447
    %v449 = vrot.slane %v444, %v448
    %v450 = vlaneseq
    %v451 = vshrl.u32 %v450, 7
    %v452 = vsub.s32 1, %v451
    %v453 = vrot.slane %v444, %v452
    %v454 = vlaneseq
    %v455 = vshrl.u32 %v454, 7
    %v456 = vsub.s32 2, %v455
    %v457 = vrot.slane %v444, %v456
    %v458 = vlaneseq
    %v459 = vshrl.u32 %v458, 7
    %v460 = vsub.s32 3, %v459
    %v461 = vrot.slane %v444, %v460
    %v462 = vlaneseq
    %v463 = vshrl.u32 %v462, 7
    %v464 = vsub.s32 4, %v463
    %v465 = vrot.slane %v444, %v464
    %v466 = vlaneseq
    %v467 = vshrl.u32 %v466, 7
    %v468 = vsub.s32 5, %v467
    %v469 = vrot.slane %v444, %v468
    %v470 = vlaneseq
    %v471 = vshrl.u32 %v470, 7
    %v472 = vsub.s32 6, %v471
    %v473 = vrot.slane %v444, %v472
    %v609 = vunpack.c.l.b16 %v316
    %v610 = vunpack.c.h.b16 %v316
    %v611 = vunpack.c.l.b16 %v317
    %v612 = vunpack.c.h.b16 %v317
    %v613 = vunpack.c.l.b16 %v318
    %v614 = vunpack.c.h.b16 %v318
    %v615 = vunpack.c.l.b16 %v319
    %v616 = vunpack.c.h.b16 %v319
    %v617 = vunpack.c.l.b16 %v320
    %v618 = vunpack.c.h.b16 %v320
    %v619 = vunpack.c.l.b16 %v321
    %v620 = vunpack.c.h.b16 %v321
    %v621 = vunpack.c.l.b16 %v322
    %v622 = vunpack.c.h.b16 %v322
    %v623 = vunpack.c.l.b16 %v323
    %v624 = vunpack.c.h.b16 %v323
    %v625 = vunpack.c.l.b16 %v324
    %v626 = vunpack.c.h.b16 %v324
    %v627 = vunpack.c.l.b16 %v325
    %v628 = vunpack.c.h.b16 %v325
    %v629 = vunpack.c.l.b16 %v326
    %v630 = vunpack.c.h.b16 %v326
    %v631 = vunpack.c.l.b16 %v327
    %v632 = vunpack.c.h.b16 %v327
    %v633 = vunpack.c.l.b16 %v328
    %v634 = vunpack.c.h.b16 %v328
    %v635 = vunpack.c.l.b16 %v329
    %v636 = vunpack.c.h.b16 %v329
    %v637 = vunpack.c.l.b16 %v330
    %v638 = vunpack.c.h.b16 %v330
    %v639 = vunpack.c.l.b16 %v331
    %v640 = vunpack.c.h.b16 %v331
    %v641 = vunpack.c.l.b16 %v332
    %v642 = vunpack.c.h.b16 %v332
    %v643 = vunpack.c.l.b16 %v333
    %v644 = vunpack.c.h.b16 %v333
    %v645 = vunpack.c.l.b16 %v334
    %v646 = vunpack.c.h.b16 %v334
    %v647 = vunpack.c.l.b16 %v335
    %v648 = vunpack.c.h.b16 %v335
    %v649 = vunpack.c.l.b16 %v336
    %v650 = vunpack.c.h.b16 %v336
    %v651 = vunpack.c.l.b16 %v337
    %v652 = vunpack.c.h.b16 %v337
    %v653 = vunpack.c.l.b16 %v338
    %v654 = vunpack.c.h.b16 %v338
    %v655 = vunpack.c.l.b16 %v339
    %v656 = vunpack.c.h.b16 %v339
    %v657 = vunpack.c.l.b16 %v340
    %v658 = vunpack.c.h.b16 %v340
    %v659 = vunpack.c.l.b16 %v341
    %v660 = vunpack.c.h.b16 %v341
    %v661 = vunpack.c.l.b16 %v342
    %v662 = vunpack.c.h.b16 %v342
    %v663 = vunpack.c.l.b16 %v343
    %v664 = vunpack.c.h.b16 %v343
    %v665 = vunpack.c.l.b16 %v344
    %v666 = vunpack.c.h.b16 %v344
    %v667 = vunpack.c.l.b16 %v345
    %v668 = vunpack.c.h.b16 %v345
    %v669 = vunpack.c.l.b16 %v346
    %v670 = vunpack.c.h.b16 %v346
    %v671 = vunpack.c.l.b16 %v347
    %v672 = vunpack.c.h.b16 %v347
    %v673 = vunpack.c.l.b16 %v348
    %v674 = vunpack.c.h.b16 %v348
    %v675 = vunpack.c.l.b16 %v349
    %v676 = vunpack.c.h.b16 %v349
    %v677 = vunpack.c.l.b16 %v350
    %v678 = vunpack.c.h.b16 %v350
    %v679 = vunpack.c.l.b16 %v351
    %v680 = vunpack.c.h.b16 %v351
    %v681 = vunpack.c.l.b16 %v352
    %v682 = vunpack.c.h.b16 %v352
    %v683 = vunpack.c.l.b16 %v353
    %v684 = vunpack.c.h.b16 %v353
    %v685 = vunpack.c.l.b16 %v354
    %v686 = vunpack.c.h.b16 %v354
    %v687 = vunpack.c.l.b16 %v355
    %v688 = vunpack.c.h.b16 %v355
    %v689 = vunpack.c.l.b16 %v356
    %v690 = vunpack.c.h.b16 %v356
    %v691 = vunpack.c.l.b16 %v357
    %v692 = vunpack.c.h.b16 %v357
    %v693 = vunpack.c.l.b16 %v358
    %v694 = vunpack.c.h.b16 %v358
    %v695 = vunpack.c.l.b16 %v359
    %v696 = vunpack.c.h.b16 %v359
    %v697 = vunpack.c.l.b16 %v360
    %v698 = vunpack.c.h.b16 %v360
    %v699 = vunpack.c.l.b16 %v361
    %v700 = vunpack.c.h.b16 %v361
    %v701 = vunpack.c.l.b16 %v362
    %v702 = vunpack.c.h.b16 %v362
    %v703 = vunpack.c.l.b16 %v363
    %v704 = vunpack.c.h.b16 %v363
    %v705 = vunpack.c.l.b16 %v364
    %v706 = vunpack.c.h.b16 %v364
    %v707 = vunpack.c.l.b16 %v365
    %v708 = vunpack.c.h.b16 %v365
    %v709 = vunpack.c.l.b16 %v366
    %v710 = vunpack.c.h.b16 %v366
    %v711 = vunpack.c.l.b16 %v367
    %v712 = vunpack.c.h.b16 %v367
    %v713 = vunpack.c.l.b16 %v368
    %v714 = vunpack.c.h.b16 %v368
    %v715 = vunpack.c.l.b16 %v369
    %v716 = vunpack.c.h.b16 %v369
    %v717 = vunpack.c.l.b16 %v370
    %v718 = vunpack.c.h.b16 %v370
    %v719 = vunpack.c.l.b16 %v371
    %v720 = vunpack.c.h.b16 %v371
    %v721 = vunpack.c.l.b16 %v372
    %v722 = vunpack.c.h.b16 %v372
    %v723 = vunpack.c.l.b16 %v373
    %v724 = vunpack.c.h.b16 %v373
    %v725 = vunpack.c.l.b16 %v374
    %v726 = vunpack.c.h.b16 %v374
    %v727 = vunpack.c.l.b16 %v375
    %v728 = vunpack.c.h.b16 %v375
    %v729 = vunpack.c.l.b16 %v376
    %v730 = vunpack.c.h.b16 %v376
    %v731 = vunpack.c.l.b16 %v377
    %v732 = vunpack.c.h.b16 %v377
    %v733 = vunpack.c.l.b16 %v378
    %v734 = vunpack.c.h.b16 %v378
    %v735 = vunpack.c.l.b16 %v379
    %v736 = vunpack.c.h.b16 %v379
    %v737 = vunpack.c.l.b16 %v380
    %v738 = vunpack.c.h.b16 %v380
    %v739 = vunpack.c.l.b16 %v381
    %v740 = vunpack.c.h.b16 %v381
    %v741 = vunpack.c.l.b16 %v382
    %v742 = vunpack.c.h.b16 %v382
    %v743 = vunpack.c.l.b16 %v383
    %v744 = vunpack.c.h.b16 %v383
    %v745 = vunpack.c.l.b16 %v384
    %v746 = vunpack.c.h.b16 %v384
    %v747 = vunpack.c.l.b16 %v385
    %v748 = vunpack.c.h.b16 %v385
    %v749 = vunpack.c.l.b16 %v386
    %v750 = vunpack.c.h.b16 %v386
    %v751 = vunpack.c.l.b16 %v387
    %v752 = vunpack.c.h.b16 %v387
    %v753 = vunpack.c.l.b16 %v388
    %v754 = vunpack.c.h.b16 %v388
    %v755 = vunpack.c.l.b16 %v389
    %v756 = vunpack.c.h.b16 %v389
    %v757 = vunpack.c.l.b16 %v390
    %v758 = vunpack.c.h.b16 %v390
    %v759 = vunpack.c.l.b16 %v391
    %v760 = vunpack.c.h.b16 %v391
    %v761 = vunpack.c.l.b16 %v392
    %v762 = vunpack.c.h.b16 %v392
    %v763 = vunpack.c.l.b16 %v393
    %v764 = vunpack.c.h.b16 %v393
    %v765 = vunpack.c.l.b16 %v394
    %v766 = vunpack.c.h.b16 %v394
    %v767 = vunpack.c.l.b16 %v395
    %v768 = vunpack.c.h.b16 %v395
    %v769 = vunpack.c.l.b16 %v396
    %v770 = vunpack.c.h.b16 %v396
    %v771 = vunpack.c.l.b16 %v397
    %v772 = vunpack.c.h.b16 %v397
    %v773 = vunpack.c.l.b16 %v398
    %v774 = vunpack.c.h.b16 %v398
    %v775 = vunpack.c.l.b16 %v399
    %v776 = vunpack.c.h.b16 %v399
    %v777 = vunpack.c.l.b16 %v400
    %v778 = vunpack.c.h.b16 %v400
    %v779 = vunpack.c.l.b16 %v401
    %v780 = vunpack.c.h.b16 %v401
    %v781 = vunpack.c.l.b16 %v402
    %v782 = vunpack.c.h.b16 %v402
    %v783 = vunpack.c.l.b16 %v403
    %v784 = vunpack.c.h.b16 %v403
    %v785 = vunpack.c.l.b16 %v404
    %v786 = vunpack.c.h.b16 %v404
    %v787 = vunpack.c.l.b16 %v405
    %v788 = vunpack.c.h.b16 %v405
    %v789 = vunpack.c.l.b16 %v406
    %v790 = vunpack.c.h.b16 %v406
    %v791 = vunpack.c.l.b16 %v407
    %v792 = vunpack.c.h.b16 %v407
    %v793 = vunpack.c.l.b16 %v408
    %v794 = vunpack.c.h.b16 %v408
    %v795 = vunpack.c.l.b16 %v409
    %v796 = vunpack.c.h.b16 %v409
    %v797 = vunpack.c.l.b16 %v410
    %v798 = vunpack.c.h.b16 %v410
    %v799 = vunpack.c.l.b16 %v411
    %v800 = vunpack.c.h.b16 %v411
    %v801 = vunpack.c.l.b16 %v412
    %v802 = vunpack.c.h.b16 %v412
    %v803 = vunpack.c.l.b16 %v413
    %v804 = vunpack.c.h.b16 %v413
    %v805 = vunpack.c.l.b16 %v414
    %v806 = vunpack.c.h.b16 %v414
    %v807 = vunpack.c.l.b16 %v415
    %v808 = vunpack.c.h.b16 %v415
    %v809 = vunpack.c.l.b16 %v416
    %v810 = vunpack.c.h.b16 %v416
    %v811 = vunpack.c.l.b16 %v417
    %v812 = vunpack.c.h.b16 %v417
    %v813 = vunpack.c.l.b16 %v418
    %v814 = vunpack.c.h.b16 %v418
    %v815 = vunpack.c.l.b16 %v419
    %v816 = vunpack.c.h.b16 %v419
    %v817 = vunpack.c.l.b16 %v420
    %v818 = vunpack.c.h.b16 %v420
    %v819 = vunpack.c.l.b16 %v421
    %v820 = vunpack.c.h.b16 %v421
    %v821 = vunpack.c.l.b16 %v422
    %v822 = vunpack.c.h.b16 %v422
    %v823 = vunpack.c.l.b16 %v423
    %v824 = vunpack.c.h.b16 %v423
    %v825 = vunpack.c.l.b16 %v424
    %v826 = vunpack.c.h.b16 %v424
    %v827 = vunpack.c.l.b16 %v425
    %v828 = vunpack.c.h.b16 %v425
    %v829 = vunpack.c.l.b16 %v426
    %v830 = vunpack.c.h.b16 %v426
    %v831 = vunpack.c.l.b16 %v427
    %v832 = vunpack.c.h.b16 %v427
    %v833 = vunpack.c.l.b16 %v428
    %v834 = vunpack.c.h.b16 %v428
    %v835 = vunpack.c.l.b16 %v429
    %v836 = vunpack.c.h.b16 %v429
    %v837 = vunpack.c.l.b16 %v430
    %v838 = vunpack.c.h.b16 %v430
    %v839 = vunpack.c.l.b16 %v431
    %v840 = vunpack.c.h.b16 %v431
    %v841 = vunpack.c.l.b16 %v432
    %v842 = vunpack.c.h.b16 %v432
    %v843 = vunpack.c.l.b16 %v433
    %v844 = vunpack.c.h.b16 %v433
    %v845 = vunpack.c.l.b16 %v434
    %v846 = vunpack.c.h.b16 %v434
    %v847 = vunpack.c.l.b16 %v435
    %v848 = vunpack.c.h.b16 %v435
    %v849 = vunpack.c.l.b16 %v436
    %v850 = vunpack.c.h.b16 %v436
    %v851 = vunpack.c.l.b16 %v437
    %v852 = vunpack.c.h.b16 %v437
    %v853 = vunpack.c.l.b16 %v438
    %v854 = vunpack.c.h.b16 %v438
    %v855 = vunpack.c.l.b16 %v439
    %v856 = vunpack.c.h.b16 %v439
    %v857 = vunpack.c.l.b16 %v440
    %v858 = vunpack.c.h.b16 %v440
    %v859 = vunpack.c.l.b16 %v441
    %v860 = vunpack.c.h.b16 %v441
    %v861 = vunpack.c.l.b16 %v442
    %v862 = vunpack.c.h.b16 %v442
    %v863 = vunpack.c.l.b16 %v443
    %v864 = vunpack.c.h.b16 %v443
    %v865 = vpack.c.b16 %v617, %v609
    %v866 = vpack.c.b16 %v618, %v610
    %v867 = vpack.c.b16 %v619, %v611
    %v868 = vpack.c.b16 %v620, %v612
    %v869 = vpack.c.b16 %v621, %v613
    %v870 = vpack.c.b16 %v622, %v614
    %v871 = vpack.c.b16 %v623, %v615
    %v872 = vpack.c.b16 %v624, %v616
    %v873 = vpack.c.b16 %v633, %v625
    %v874 = vpack.c.b16 %v634, %v626
    %v875 = vpack.c.b16 %v635, %v627
    %v876 = vpack.c.b16 %v636, %v628
    %v877 = vpack.c.b16 %v637, %v629
    %v878 = vpack.c.b16 %v638, %v630
    %v879 = vpack.c.b16 %v639, %v631
    %v880 = vpack.c.b16 %v640, %v632
    %v881 = vpack.c.b16 %v649, %v641
    %v882 = vpack.c.b16 %v650, %v642
    %v883 = vpack.c.b16 %v651, %v643
    %v884 = vpack.c.b16 %v652, %v644
    %v885 = vpack.c.b16 %v653, %v645
    %v886 = vpack.c.b16 %v654, %v646
    %v887 = vpack.c.b16 %v655, %v647
    %v888 = vpack.c.b16 %v656, %v648
    %v889 = vpack.c.b16 %v665, %v657
    %v890 = vpack.c.b16 %v666, %v658
    %v891 = vpack.c.b16 %v667, %v659
    %v892 = vpack.c.b16 %v668, %v660
    %v893 = vpack.c.b16 %v669, %v661
    %v894 = vpack.c.b16 %v670, %v662
    %v895 = vpack.c.b16 %v671, %v663
    %v896 = vpack.c.b16 %v672, %v664
    %v897 = vpack.c.b16 %v681, %v673
    %v898 = vpack.c.b16 %v682, %v674
    %v899 = vpack.c.b16 %v683, %v675
    %v900 = vpack.c.b16 %v684, %v676
    %v901 = vpack.c.b16 %v685, %v677
    %v902 = vpack.c.b16 %v686, %v678
    %v903 = vpack.c.b16 %v687, %v679
    %v904 = vpack.c.b16 %v688, %v680
    %v905 = vpack.c.b16 %v697, %v689
    %v906 = vpack.c.b16 %v698, %v690
    %v907 = vpack.c.b16 %v699, %v691
    %v908 = vpack.c.b16 %v700, %v692
    %v909 = vpack.c.b16 %v701, %v693
    %v910 = vpack.c.b16 %v702, %v694
    %v911 = vpack.c.b16 %v703, %v695
    %v912 = vpack.c.b16 %v704, %v696
    %v913 = vpack.c.b16 %v713, %v705
    %v914 = vpack.c.b16 %v714, %v706
    %v915 = vpack.c.b16 %v715, %v707
    %v916 = vpack.c.b16 %v716, %v708
    %v917 = vpack.c.b16 %v717, %v709
    %v918 = vpack.c.b16 %v718, %v710
    %v919 = vpack.c.b16 %v719, %v711
    %v920 = vpack.c.b16 %v720, %v712
    %v921 = vpack.c.b16 %v729, %v721
    %v922 = vpack.c.b16 %v730, %v722
    %v923 = vpack.c.b16 %v731, %v723
    %v924 = vpack.c.b16 %v732, %v724
    %v925 = vpack.c.b16 %v733, %v725
    %v926 = vpack.c.b16 %v734, %v726
    %v927 = vpack.c.b16 %v735, %v727
    %v928 = vpack.c.b16 %v736, %v728
    %v929 = vpack.c.b16 %v745, %v737
    %v930 = vpack.c.b16 %v746, %v738
    %v931 = vpack.c.b16 %v747, %v739
    %v932 = vpack.c.b16 %v748, %v740
    %v933 = vpack.c.b16 %v749, %v741
    %v934 = vpack.c.b16 %v750, %v742
    %v935 = vpack.c.b16 %v751, %v743
    %v936 = vpack.c.b16 %v752, %v744
    %v937 = vpack.c.b16 %v761, %v753
    %v938 = vpack.c.b16 %v762, %v754
    %v939 = vpack.c.b16 %v763, %v755
    %v940 = vpack.c.b16 %v764, %v756
    %v941 = vpack.c.b16 %v765, %v757
    %v942 = vpack.c.b16 %v766, %v758
    %v943 = vpack.c.b16 %v767, %v759
    %v944 = vpack.c.b16 %v768, %v760
    %v945 = vpack.c.b16 %v777, %v769
    %v946 = vpack.c.b16 %v778, %v770
    %v947 = vpack.c.b16 %v779, %v771
    %v948 = vpack.c.b16 %v780, %v772
    %v949 = vpack.c.b16 %v781, %v773
    %v950 = vpack.c.b16 %v782, %v774
    %v951 = vpack.c.b16 %v783, %v775
    %v952 = vpack.c.b16 %v784, %v776
    %v953 = vpack.c.b16 %v793, %v785
    %v954 = vpack.c.b16 %v794, %v786
    %v955 = vpack.c.b16 %v795, %v787
    %v956 = vpack.c.b16 %v796, %v788
    %v957 = vpack.c.b16 %v797, %v789
    %v958 = vpack.c.b16 %v798, %v790
    %v959 = vpack.c.b16 %v799, %v791
    %v960 = vpack.c.b16 %v800, %v792
    %v961 = vpack.c.b16 %v809, %v801
    %v962 = vpack.c.b16 %v810, %v802
    %v963 = vpack.c.b16 %v811, %v803
    %v964 = vpack.c.b16 %v812, %v804
    %v965 = vpack.c.b16 %v813, %v805
    %v966 = vpack.c.b16 %v814, %v806
    %v967 = vpack.c.b16 %v815, %v807
    %v968 = vpack.c.b16 %v816, %v808
    %v969 = vpack.c.b16 %v825, %v817
    %v970 = vpack.c.b16 %v826, %v818
    %v971 = vpack.c.b16 %v827, %v819
    %v972 = vpack.c.b16 %v828, %v820
    %v973 = vpack.c.b16 %v829, %v821
    %v974 = vpack.c.b16 %v830, %v822
    %v975 = vpack.c.b16 %v831, %v823
    %v976 = vpack.c.b16 %v832, %v824
    %v977 = vpack.c.b16 %v841, %v833
    %v978 = vpack.c.b16 %v842, %v834
    %v979 = vpack.c.b16 %v843, %v835
    %v980 = vpack.c.b16 %v844, %v836
    %v981 = vpack.c.b16 %v845, %v837
    %v982 = vpack.c.b16 %v846, %v838
    %v983 = vpack.c.b16 %v847, %v839
    %v984 = vpack.c.b16 %v848, %v840
    %v985 = vpack.c.b16 %v857, %v849
    %v986 = vpack.c.b16 %v858, %v850
    %v987 = vpack.c.b16 %v859, %v851
    %v988 = vpack.c.b16 %v860, %v852
    %v989 = vpack.c.b16 %v861, %v853
    %v990 = vpack.c.b16 %v862, %v854
    %v991 = vpack.c.b16 %v863, %v855
    %v992 = vpack.c.b16 %v864, %v856
    %1121 = vmatprep.subr.bf16.mxu0 %v866
    %1122 = vmatpush1.bf16.msra.mxu0 %v865
    %1123 = vmatprep.subr.bf16.mxu0 %v874
    %1124 = vmatpush1.bf16.msra.mxu0 %v873
    %1125 = vmatprep.subr.bf16.mxu0 %v882
    %1126 = vmatpush1.bf16.msra.mxu0 %v881
    %1127 = vmatprep.subr.bf16.mxu0 %v890
    %1128 = vmatpush1.bf16.msra.mxu0 %v889
    %1129 = vmatprep.subr.bf16.mxu0 %v898
    %1130 = vmatpush1.bf16.msra.mxu0 %v897
    %1131 = vmatprep.subr.bf16.mxu0 %v906
    %1132 = vmatpush1.bf16.msra.mxu0 %v905
    %1133 = vmatprep.subr.bf16.mxu0 %v914
    %1134 = vmatpush1.bf16.msra.mxu0 %v913
    %1135 = vmatprep.subr.bf16.mxu0 %v922
    %1136 = vmatpush1.bf16.msra.mxu0 %v921
    %1137 = vmatprep.subr.bf16.mxu0 %v930
    %1138 = vmatpush1.bf16.msra.mxu0 %v929
    %1139 = vmatprep.subr.bf16.mxu0 %v938
    %1140 = vmatpush1.bf16.msra.mxu0 %v937
    %1141 = vmatprep.subr.bf16.mxu0 %v946
    %1142 = vmatpush1.bf16.msra.mxu0 %v945
    %1143 = vmatprep.subr.bf16.mxu0 %v954
    %1144 = vmatpush1.bf16.msra.mxu0 %v953
    %1145 = vmatprep.subr.bf16.mxu0 %v962
    %1146 = vmatpush1.bf16.msra.mxu0 %v961
    %1147 = vmatprep.subr.bf16.mxu0 %v970
    %1148 = vmatpush1.bf16.msra.mxu0 %v969
    %1149 = vmatprep.subr.bf16.mxu0 %v978
    %1150 = vmatpush1.bf16.msra.mxu0 %v977
    %1151 = vmatprep.subr.bf16.mxu0 %v986
    %1152 = vmatpush1.bf16.msra.mxu0 %v985
    %1153 = vmatprep.mubr.bf16.mxu0 %v315
    %1154 = vmatmul.mubr.bf16.gmra.mrb[0].mxu0 %v314
    %v1155 = vpop.f32.mrb[0].mxu0
    %v1156 = vadd.f32 %v449, %v1155
    %v1157 = vpop.f32.mrb[0].mxu0
    %v1158 = vadd.f32 %v453, %v1157
    %v1159 = vpop.f32.mrb[0].mxu0
    %v1160 = vadd.f32 %v449, %v1159
    %v1161 = vpop.f32.mrb[0].mxu0
    %v1162 = vadd.f32 %v453, %v1161
    %1163 = vdwg.mxu0
    %1164 = vmatprep.subr.bf16.mxu0 %v868
    %1165 = vmatpush1.bf16.msra.mxu0 %v867
    %1166 = vmatprep.subr.bf16.mxu0 %v876
    %1167 = vmatpush1.bf16.msra.mxu0 %v875
    %1168 = vmatprep.subr.bf16.mxu0 %v884
    %1169 = vmatpush1.bf16.msra.mxu0 %v883
    %1170 = vmatprep.subr.bf16.mxu0 %v892
    %1171 = vmatpush1.bf16.msra.mxu0 %v891
    %1172 = vmatprep.subr.bf16.mxu0 %v900
    %1173 = vmatpush1.bf16.msra.mxu0 %v899
    %1174 = vmatprep.subr.bf16.mxu0 %v908
    %1175 = vmatpush1.bf16.msra.mxu0 %v907
    %1176 = vmatprep.subr.bf16.mxu0 %v916
    %1177 = vmatpush1.bf16.msra.mxu0 %v915
    %1178 = vmatprep.subr.bf16.mxu0 %v924
    %1179 = vmatpush1.bf16.msra.mxu0 %v923
    %1180 = vmatprep.subr.bf16.mxu0 %v932
    %1181 = vmatpush1.bf16.msra.mxu0 %v931
    %1182 = vmatprep.subr.bf16.mxu0 %v940
    %1183 = vmatpush1.bf16.msra.mxu0 %v939
    %1184 = vmatprep.subr.bf16.mxu0 %v948
    %1185 = vmatpush1.bf16.msra.mxu0 %v947
    %1186 = vmatprep.subr.bf16.mxu0 %v956
    %1187 = vmatpush1.bf16.msra.mxu0 %v955
    %1188 = vmatprep.subr.bf16.mxu0 %v964
    %1189 = vmatpush1.bf16.msra.mxu0 %v963
    %1190 = vmatprep.subr.bf16.mxu0 %v972
    %1191 = vmatpush1.bf16.msra.mxu0 %v971
    %1192 = vmatprep.subr.bf16.mxu0 %v980
    %1193 = vmatpush1.bf16.msra.mxu0 %v979
    %1194 = vmatprep.subr.bf16.mxu0 %v988
    %1195 = vmatpush1.bf16.msra.mxu0 %v987
    %1196 = vmatprep.mubr.bf16.mxu0 %v315
    %1197 = vmatmul.mubr.bf16.gmra.mrb[0].mxu0 %v314
    %v1198 = vpop.f32.mrb[0].mxu0
    %v1199 = vadd.f32 %v457, %v1198
    %v1200 = vpop.f32.mrb[0].mxu0
    %v1201 = vadd.f32 %v461, %v1200
    %v1202 = vpop.f32.mrb[0].mxu0
    %v1203 = vadd.f32 %v457, %v1202
    %v1204 = vpop.f32.mrb[0].mxu0
    %v1205 = vadd.f32 %v461, %v1204
    %1206 = vdwg.mxu0
    %1207 = vmatprep.subr.bf16.mxu0 %v870
    %1208 = vmatpush1.bf16.msra.mxu0 %v869
    %1209 = vmatprep.subr.bf16.mxu0 %v878
    %1210 = vmatpush1.bf16.msra.mxu0 %v877
    %1211 = vmatprep.subr.bf16.mxu0 %v886
    %1212 = vmatpush1.bf16.msra.mxu0 %v885
    %1213 = vmatprep.subr.bf16.mxu0 %v894
    %1214 = vmatpush1.bf16.msra.mxu0 %v893
    %1215 = vmatprep.subr.bf16.mxu0 %v902
    %1216 = vmatpush1.bf16.msra.mxu0 %v901
    %1217 = vmatprep.subr.bf16.mxu0 %v910
    %1218 = vmatpush1.bf16.msra.mxu0 %v909
    %1219 = vmatprep.subr.bf16.mxu0 %v918
    %1220 = vmatpush1.bf16.msra.mxu0 %v917
    %1221 = vmatprep.subr.bf16.mxu0 %v926
    %1222 = vmatpush1.bf16.msra.mxu0 %v925
    %1223 = vmatprep.subr.bf16.mxu0 %v934
    %1224 = vmatpush1.bf16.msra.mxu0 %v933
    %1225 = vmatprep.subr.bf16.mxu0 %v942
    %1226 = vmatpush1.bf16.msra.mxu0 %v941
    %1227 = vmatprep.subr.bf16.mxu0 %v950
    %1228 = vmatpush1.bf16.msra.mxu0 %v949
    %1229 = vmatprep.subr.bf16.mxu0 %v958
    %1230 = vmatpush1.bf16.msra.mxu0 %v957
    %1231 = vmatprep.subr.bf16.mxu0 %v966
    %1232 = vmatpush1.bf16.msra.mxu0 %v965
    %1233 = vmatprep.subr.bf16.mxu0 %v974
    %1234 = vmatpush1.bf16.msra.mxu0 %v973
    %1235 = vmatprep.subr.bf16.mxu0 %v982
    %1236 = vmatpush1.bf16.msra.mxu0 %v981
    %1237 = vmatprep.subr.bf16.mxu0 %v990
    %1238 = vmatpush1.bf16.msra.mxu0 %v989
    %1239 = vmatprep.mubr.bf16.mxu0 %v315
    %1240 = vmatmul.mubr.bf16.gmra.mrb[0].mxu0 %v314
    %v1241 = vpop.f32.mrb[0].mxu0
    %v1242 = vadd.f32 %v465, %v1241
    %v1243 = vpop.f32.mrb[0].mxu0
    %v1244 = vadd.f32 %v469, %v1243
    %v1245 = vpop.f32.mrb[0].mxu0
    %v1246 = vadd.f32 %v465, %v1245
    %v1247 = vpop.f32.mrb[0].mxu0
    %v1248 = vadd.f32 %v469, %v1247
    %1249 = vdwg.mxu0
    %1250 = vmatprep.subr.bf16.mxu0 %v872
    %1251 = vmatpush1.bf16.msra.mxu0 %v871
    %1252 = vmatprep.subr.bf16.mxu0 %v880
    %1253 = vmatpush1.bf16.msra.mxu0 %v879
    %1254 = vmatprep.subr.bf16.mxu0 %v888
    %1255 = vmatpush1.bf16.msra.mxu0 %v887
    %1256 = vmatprep.subr.bf16.mxu0 %v896
    %1257 = vmatpush1.bf16.msra.mxu0 %v895
    %1258 = vmatprep.subr.bf16.mxu0 %v904
    %1259 = vmatpush1.bf16.msra.mxu0 %v903
    %1260 = vmatprep.subr.bf16.mxu0 %v912
    %1261 = vmatpush1.bf16.msra.mxu0 %v911
    %1262 = vmatprep.subr.bf16.mxu0 %v920
    %1263 = vmatpush1.bf16.msra.mxu0 %v919
    %1264 = vmatprep.subr.bf16.mxu0 %v928
    %1265 = vmatpush1.bf16.msra.mxu0 %v927
    %1266 = vmatprep.subr.bf16.mxu0 %v936
    %1267 = vmatpush1.bf16.msra.mxu0 %v935
    %1268 = vmatprep.subr.bf16.mxu0 %v944
    %1269 = vmatpush1.bf16.msra.mxu0 %v943
    %1270 = vmatprep.subr.bf16.mxu0 %v952
    %1271 = vmatpush1.bf16.msra.mxu0 %v951
    %1272 = vmatprep.subr.bf16.mxu0 %v960
    %1273 = vmatpush1.bf16.msra.mxu0 %v959
    %1274 = vmatprep.subr.bf16.mxu0 %v968
    %1275 = vmatpush1.bf16.msra.mxu0 %v967
    %1276 = vmatprep.subr.bf16.mxu0 %v976
    %1277 = vmatpush1.bf16.msra.mxu0 %v975
    %1278 = vmatprep.subr.bf16.mxu0 %v984
    %1279 = vmatpush1.bf16.msra.mxu0 %v983
    %1280 = vmatprep.subr.bf16.mxu0 %v992
    %1281 = vmatpush1.bf16.msra.mxu0 %v991
    %1282 = vmatprep.mubr.bf16.mxu0 %v315
    %1283 = vmatmul.mubr.bf16.gmra.mrb[0].mxu0 %v314
    %v1284 = vpop.f32.mrb[0].mxu0
    %v1285 = vadd.f32 %v473, %v1284
    %v1286 = vpop.f32.mrb[0].mxu0
    %v1287 = vpop.f32.mrb[0].mxu0
    %v1288 = vadd.f32 %v473, %v1287
    %v1289 = vpop.f32.mrb[0].mxu0
    %1290 = vdwg.mxu0
    %v1291 = vmax.f32 %v1156, 0.0
    %v1292 = vmax.f32 %v1158, 0.0
    %v1293 = vmax.f32 %v1199, 0.0
    %v1294 = vmax.f32 %v1201, 0.0
    %v1295 = vmax.f32 %v1242, 0.0
    %v1296 = vmax.f32 %v1244, 0.0
    %v1297 = vmax.f32 %v1285, 0.0
    %v1298 = vmax.f32 %v1160, 0.0
    %v1299 = vmax.f32 %v1162, 0.0
    %v1300 = vmax.f32 %v1203, 0.0
    %v1301 = vmax.f32 %v1205, 0.0
    %v1302 = vmax.f32 %v1246, 0.0
    %v1303 = vmax.f32 %v1248, 0.0
    %v1304 = vmax.f32 %v1288, 0.0
    %v1305 = vld [vmem:[#allocation8] sm:$0xf]
    %v1306 = vld [vmem:[#allocation8 + $0x4] sm:$0xf]
    %v1307 = vld [vmem:[#allocation8 + $0x8] sm:$0xf]
    %v1308 = vld [vmem:[#allocation8 + $0xc] sm:$0xf]
    %v1309 = vld [vmem:[#allocation10] sm:$0x1]
    %v1311 = vlaneseq
    %v1312 = vshrl.u32 %v1311, 7
    %v1313 = vsub.s32 0, %v1312
    %v1314 = vrot.slane %v1309, %v1313
    %v1320 = vunpack.c.l.b16 %v1305
    %v1321 = vunpack.c.l.b16 %v1306
    %v1322 = vunpack.c.l.b16 %v1307
    %v1323 = vunpack.c.l.b16 %v1308
    %v1324 = vpack.c.b16 %v1321, %v1320
    %v1325 = vpack.c.b16 %v1323, %v1322
    %1328 = vmatprep.subr.bf16.mxu0 0
    %1329 = vmatpush1.bf16.msra.mxu0 %v1324
    %1330 = vmatprep.subr.bf16.mxu0 0
    %1331 = vmatpush1.bf16.msra.mxu0 %v1325
    %1332 = vmatprep.subr.bf16.mxu0 0
    %1333 = vmatpush1.bf16.msra.mxu0 0
    %1334 = vmatprep.subr.bf16.mxu0 0
    %1335 = vmatpush1.bf16.msra.mxu0 0
    %1336 = vmatprep.subr.bf16.mxu0 0
    %1337 = vmatpush1.bf16.msra.mxu0 0
    %1338 = vmatprep.subr.bf16.mxu0 0
    %1339 = vmatpush1.bf16.msra.mxu0 0
    %1340 = vmatprep.subr.bf16.mxu0 0
    %1341 = vmatpush1.bf16.msra.mxu0 0
    %1342 = vmatprep.subr.bf16.mxu0 0
    %1343 = vmatpush1.bf16.msra.mxu0 0
    %1344 = vmatprep.subr.bf16.mxu0 0
    %1345 = vmatpush1.bf16.msra.mxu0 0
    %1346 = vmatprep.subr.bf16.mxu0 0
    %1347 = vmatpush1.bf16.msra.mxu0 0
    %1348 = vmatprep.subr.bf16.mxu0 0
    %1349 = vmatpush1.bf16.msra.mxu0 0
    %1350 = vmatprep.subr.bf16.mxu0 0
    %1351 = vmatpush1.bf16.msra.mxu0 0
    %1352 = vmatprep.subr.bf16.mxu0 0
    %1353 = vmatpush1.bf16.msra.mxu0 0
    %1354 = vmatprep.subr.bf16.mxu0 0
    %1355 = vmatpush1.bf16.msra.mxu0 0
    %1356 = vmatprep.subr.bf16.mxu0 0
    %1357 = vmatpush1.bf16.msra.mxu0 0
    %1358 = vmatprep.subr.bf16.mxu0 0
    %1359 = vmatpush1.bf16.msra.mxu0 0
    %1360 = vmatprep.mubr.bf16.mxu0 0
    %1361 = vmatmul.mubr.bf16.gmra.mrb[0].mxu0 %v265
    %v1362 = vpop.f32.mrb[0].mxu0
    %v1363 = vadd.f32 %v1314, %v1362
    %v1364 = vpop.f32.mrb[0].mxu0
    %v1365 = vpop.f32.mrb[0].mxu0
    %v1366 = vadd.f32 %v1314, %v1365
    %v1367 = vpop.f32.mrb[0].mxu0
    %1368 = vdwg.mxu0
    %v1369 = vsel %vm263, %v1363, -inf
    %1370 = vmax.xlane.f32.xlu0 %v1369
    %v1371 = vpop.xlane.xlu0 %1370
    %v1372 = vsel %vm263, %v1366, -inf
    %1373 = vmax.xlane.f32.xlu0 %v1372
    %v1374 = vpop.xlane.xlu0 %1373
    %v1375 = vsub.f32 %v1363, %v1371
    %v1376 = vsub.f32 %v1366, %v1374
    %v1377 = vmul.f32 %v1375, 1.442695
    %v1378 = vpow.pop %v1377
    %v1379 = vmul.f32 %v1376, 1.442695
    %v1380 = vpow.pop %v1379
    %v1381 = vpack.c.bf16 %v1380, %v1378
    %v1382 = vld [vmem:[#allocation13] sm:$0xf]
    %v1383 = vld [vmem:[#allocation13 + $0x4] sm:$0xf]
    %v1384 = vld [vmem:[#allocation13 + $0x8] sm:$0xf]
    %v1385 = vld [vmem:[#allocation13 + $0xc] sm:$0xf]
    %v1390 = vunpack.c.l.b16 %v1382
    %v1391 = vunpack.c.l.b16 %v1383
    %v1392 = vunpack.c.l.b16 %v1384
    %v1393 = vunpack.c.l.b16 %v1385
    %v1394 = vpack.c.b16 %v1391, %v1390
    %v1395 = vpack.c.b16 %v1393, %v1392
    %v1399 = vsel %vm263, %v1381, 0
    %1401 = vmatprep.subr.bf16.mxu0 0
    %1402 = vmatpush1.bf16.msra.mxu0 %v1394
    %1403 = vmatprep.subr.bf16.mxu0 0
    %1404 = vmatpush1.bf16.msra.mxu0 %v1395
    %1405 = vmatprep.subr.bf16.mxu0 0
    %1406 = vmatpush1.bf16.msra.mxu0 0
    %1407 = vmatprep.subr.bf16.mxu0 0
    %1408 = vmatpush1.bf16.msra.mxu0 0
    %1409 = vmatprep.subr.bf16.mxu0 0
    %1410 = vmatpush1.bf16.msra.mxu0 0
    %1411 = vmatprep.subr.bf16.mxu0 0
    %1412 = vmatpush1.bf16.msra.mxu0 0
    %1413 = vmatprep.subr.bf16.mxu0 0
    %1414 = vmatpush1.bf16.msra.mxu0 0
    %1415 = vmatprep.subr.bf16.mxu0 0
    %1416 = vmatpush1.bf16.msra.mxu0 0
    %1417 = vmatprep.subr.bf16.mxu0 0
    %1418 = vmatpush1.bf16.msra.mxu0 0
    %1419 = vmatprep.subr.bf16.mxu0 0
    %1420 = vmatpush1.bf16.msra.mxu0 0
    %1421 = vmatprep.subr.bf16.mxu0 0
    %1422 = vmatpush1.bf16.msra.mxu0 0
    %1423 = vmatprep.subr.bf16.mxu0 0
    %1424 = vmatpush1.bf16.msra.mxu0 0
    %1425 = vmatprep.subr.bf16.mxu0 0
    %1426 = vmatpush1.bf16.msra.mxu0 0
    %1427 = vmatprep.subr.bf16.mxu0 0
    %1428 = vmatpush1.bf16.msra.mxu0 0
    %1429 = vmatprep.subr.bf16.mxu0 0
    %1430 = vmatpush1.bf16.msra.mxu0 0
    %1431 = vmatprep.subr.bf16.mxu0 0
    %1432 = vmatpush1.bf16.msra.mxu0 0
    %1433 = vmatprep.mubr.bf16.mxu0 0
    %1434 = vmatmul.mubr.bf16.gmra.mrb[0].mxu0 %v1399
    %v1435 = vpop.f32.mrb[0].mxu0
    %v1436 = vadd.f32 0.0, %v1435
    %v1437 = vpop.f32.mrb[0].mxu0
    %v1438 = vpop.f32.mrb[0].mxu0
    %v1439 = vadd.f32 0.0, %v1438
    %v1440 = vpop.f32.mrb[0].mxu0
    %1441 = vdwg.mxu0
    %v1442 = vmax.f32 %v1436, 1e-30
    %v1443 = vmax.f32 %v1439, 1e-30
    %v1444 = vrcp.pop %v1442
    %v1445 = vrcp.pop %v1443
    %v1446 = vmul.f32 %v1378, %v1444
    %v1447 = vmul.f32 %v1380, %v1445
    %v1448 = vld [vmem:[#allocation11] sm:$0x1]
    %v1450 = vlaneseq
    %v1451 = vshrl.u32 %v1450, 7
    %v1452 = vsub.s32 0, %v1451
    %v1453 = vrot.slane %v1448, %v1452
    %v1455 = vadd.f32 %v1446, %v1453
    %v1456 = vadd.f32 %v1447, %v1453
    %v1457 = vpack.c.bf16 %v1456, %v1455
    %v1458 = vld [vmem:[#allocation14] sm:$0xff]
    %v1459 = vld [vmem:[#allocation14 + $0x8] sm:$0xff]
    %v1460 = vld [vmem:[#allocation14 + $0x10] sm:$0xff]
    %v1461 = vld [vmem:[#allocation14 + $0x18] sm:$0xff]
    %v1462 = vld [vmem:[#allocation14 + $0x20] sm:$0xff]
    %v1463 = vld [vmem:[#allocation14 + $0x28] sm:$0xff]
    %v1464 = vld [vmem:[#allocation14 + $0x30] sm:$0xff]
    %v1465 = vld [vmem:[#allocation14 + $0x38] sm:$0xff]
    %v1466 = vld [vmem:[#allocation14 + $0x40] sm:$0xff]
    %v1467 = vld [vmem:[#allocation14 + $0x48] sm:$0xff]
    %v1468 = vld [vmem:[#allocation14 + $0x50] sm:$0xff]
    %v1469 = vld [vmem:[#allocation14 + $0x58] sm:$0xff]
    %v1470 = vld [vmem:[#allocation14 + $0x60] sm:$0xff]
    %v1471 = vld [vmem:[#allocation14 + $0x68] sm:$0xff]
    %v1472 = vld [vmem:[#allocation14 + $0x70] sm:$0xff]
    %v1473 = vld [vmem:[#allocation14 + $0x78] sm:$0xff]
    %v1490 = vunpack.c.l.b16 %v1458
    %v1491 = vunpack.c.h.b16 %v1458
    %v1492 = vunpack.c.l.b16 %v1459
    %v1493 = vunpack.c.h.b16 %v1459
    %v1494 = vunpack.c.l.b16 %v1460
    %v1495 = vunpack.c.h.b16 %v1460
    %v1496 = vunpack.c.l.b16 %v1461
    %v1497 = vunpack.c.h.b16 %v1461
    %v1498 = vunpack.c.l.b16 %v1462
    %v1499 = vunpack.c.h.b16 %v1462
    %v1500 = vunpack.c.l.b16 %v1463
    %v1501 = vunpack.c.h.b16 %v1463
    %v1502 = vunpack.c.l.b16 %v1464
    %v1503 = vunpack.c.h.b16 %v1464
    %v1504 = vunpack.c.l.b16 %v1465
    %v1505 = vunpack.c.h.b16 %v1465
    %v1506 = vunpack.c.l.b16 %v1466
    %v1507 = vunpack.c.h.b16 %v1466
    %v1508 = vunpack.c.l.b16 %v1467
    %v1509 = vunpack.c.h.b16 %v1467
    %v1510 = vunpack.c.l.b16 %v1468
    %v1511 = vunpack.c.h.b16 %v1468
    %v1512 = vunpack.c.l.b16 %v1469
    %v1513 = vunpack.c.h.b16 %v1469
    %v1514 = vunpack.c.l.b16 %v1470
    %v1515 = vunpack.c.h.b16 %v1470
    %v1516 = vunpack.c.l.b16 %v1471
    %v1517 = vunpack.c.h.b16 %v1471
    %v1518 = vunpack.c.l.b16 %v1472
    %v1519 = vunpack.c.h.b16 %v1472
    %v1520 = vunpack.c.l.b16 %v1473
    %v1521 = vunpack.c.h.b16 %v1473
    %v1522 = vpack.c.b16 %v1498, %v1490
    %v1523 = vpack.c.b16 %v1499, %v1491
    %v1524 = vpack.c.b16 %v1500, %v1492
    %v1525 = vpack.c.b16 %v1501, %v1493
    %v1526 = vpack.c.b16 %v1502, %v1494
    %v1527 = vpack.c.b16 %v1503, %v1495
    %v1528 = vpack.c.b16 %v1504, %v1496
    %v1529 = vpack.c.b16 %v1505, %v1497
    %v1530 = vpack.c.b16 %v1514, %v1506
    %v1531 = vpack.c.b16 %v1515, %v1507
    %v1532 = vpack.c.b16 %v1516, %v1508
    %v1533 = vpack.c.b16 %v1517, %v1509
    %v1534 = vpack.c.b16 %v1518, %v1510
    %v1535 = vpack.c.b16 %v1519, %v1511
    %v1536 = vpack.c.b16 %v1520, %v1512
    %v1537 = vpack.c.b16 %v1521, %v1513
    %v1555 = vsel %vm263, %v1457, 0
    %1557 = vmatprep.subr.bf16.mxu0 %v1523
    %1558 = vmatpush1.bf16.msra.mxu0 %v1522
    %1559 = vmatprep.subr.bf16.mxu0 %v1531
    %1560 = vmatpush1.bf16.msra.mxu0 %v1530
    %1561 = vmatprep.subr.bf16.mxu0 0
    %1562 = vmatpush1.bf16.msra.mxu0 0
    %1563 = vmatprep.subr.bf16.mxu0 0
    %1564 = vmatpush1.bf16.msra.mxu0 0
    %1565 = vmatprep.subr.bf16.mxu0 0
    %1566 = vmatpush1.bf16.msra.mxu0 0
    %1567 = vmatprep.subr.bf16.mxu0 0
    %1568 = vmatpush1.bf16.msra.mxu0 0
    %1569 = vmatprep.subr.bf16.mxu0 0
    %1570 = vmatpush1.bf16.msra.mxu0 0
    %1571 = vmatprep.subr.bf16.mxu0 0
    %1572 = vmatpush1.bf16.msra.mxu0 0
    %1573 = vmatprep.subr.bf16.mxu0 0
    %1574 = vmatpush1.bf16.msra.mxu0 0
    %1575 = vmatprep.subr.bf16.mxu0 0
    %1576 = vmatpush1.bf16.msra.mxu0 0
    %1577 = vmatprep.subr.bf16.mxu0 0
    %1578 = vmatpush1.bf16.msra.mxu0 0
    %1579 = vmatprep.subr.bf16.mxu0 0
    %1580 = vmatpush1.bf16.msra.mxu0 0
    %1581 = vmatprep.subr.bf16.mxu0 0
    %1582 = vmatpush1.bf16.msra.mxu0 0
    %1583 = vmatprep.subr.bf16.mxu0 0
    %1584 = vmatpush1.bf16.msra.mxu0 0
    %1585 = vmatprep.subr.bf16.mxu0 0
    %1586 = vmatpush1.bf16.msra.mxu0 0
    %1587 = vmatprep.subr.bf16.mxu0 0
    %1588 = vmatpush1.bf16.msra.mxu0 0
    %1589 = vmatprep.mubr.bf16.mxu0 0
    %1590 = vmatmul.mubr.bf16.gmra.mrb[0].mxu0 %v1555
    %v1591 = vpop.f32.mrb[0].mxu0
    %v1592 = vadd.f32 0.0, %v1591
    %v1593 = vpop.f32.mrb[0].mxu0
    %v1594 = vadd.f32 0.0, %v1593
    %v1595 = vpop.f32.mrb[0].mxu0
    %v1596 = vadd.f32 0.0, %v1595
    %v1597 = vpop.f32.mrb[0].mxu0
    %v1598 = vadd.f32 0.0, %v1597
    %1599 = vdwg.mxu0
    %1600 = vmatprep.subr.bf16.mxu0 %v1525
    %1601 = vmatpush1.bf16.msra.mxu0 %v1524
    %1602 = vmatprep.subr.bf16.mxu0 %v1533
    %1603 = vmatpush1.bf16.msra.mxu0 %v1532
    %1604 = vmatprep.subr.bf16.mxu0 0
    %1605 = vmatpush1.bf16.msra.mxu0 0
    %1606 = vmatprep.subr.bf16.mxu0 0
    %1607 = vmatpush1.bf16.msra.mxu0 0
    %1608 = vmatprep.subr.bf16.mxu0 0
    %1609 = vmatpush1.bf16.msra.mxu0 0
    %1610 = vmatprep.subr.bf16.mxu0 0
    %1611 = vmatpush1.bf16.msra.mxu0 0
    %1612 = vmatprep.subr.bf16.mxu0 0
    %1613 = vmatpush1.bf16.msra.mxu0 0
    %1614 = vmatprep.subr.bf16.mxu0 0
    %1615 = vmatpush1.bf16.msra.mxu0 0
    %1616 = vmatprep.subr.bf16.mxu0 0
    %1617 = vmatpush1.bf16.msra.mxu0 0
    %1618 = vmatprep.subr.bf16.mxu0 0
    %1619 = vmatpush1.bf16.msra.mxu0 0
    %1620 = vmatprep.subr.bf16.mxu0 0
    %1621 = vmatpush1.bf16.msra.mxu0 0
    %1622 = vmatprep.subr.bf16.mxu0 0
    %1623 = vmatpush1.bf16.msra.mxu0 0
    %1624 = vmatprep.subr.bf16.mxu0 0
    %1625 = vmatpush1.bf16.msra.mxu0 0
    %1626 = vmatprep.subr.bf16.mxu0 0
    %1627 = vmatpush1.bf16.msra.mxu0 0
    %1628 = vmatprep.subr.bf16.mxu0 0
    %1629 = vmatpush1.bf16.msra.mxu0 0
    %1630 = vmatprep.subr.bf16.mxu0 0
    %1631 = vmatpush1.bf16.msra.mxu0 0
    %1632 = vmatprep.mubr.bf16.mxu0 0
    %1633 = vmatmul.mubr.bf16.gmra.mrb[0].mxu0 %v1555
    %v1634 = vpop.f32.mrb[0].mxu0
    %v1635 = vadd.f32 0.0, %v1634
    %v1636 = vpop.f32.mrb[0].mxu0
    %v1637 = vadd.f32 0.0, %v1636
    %v1638 = vpop.f32.mrb[0].mxu0
    %v1639 = vadd.f32 0.0, %v1638
    %v1640 = vpop.f32.mrb[0].mxu0
    %v1641 = vadd.f32 0.0, %v1640
    %1642 = vdwg.mxu0
    %1643 = vmatprep.subr.bf16.mxu0 %v1527
    %1644 = vmatpush1.bf16.msra.mxu0 %v1526
    %1645 = vmatprep.subr.bf16.mxu0 %v1535
    %1646 = vmatpush1.bf16.msra.mxu0 %v1534
    %1647 = vmatprep.subr.bf16.mxu0 0
    %1648 = vmatpush1.bf16.msra.mxu0 0
    %1649 = vmatprep.subr.bf16.mxu0 0
    %1650 = vmatpush1.bf16.msra.mxu0 0
    %1651 = vmatprep.subr.bf16.mxu0 0
    %1652 = vmatpush1.bf16.msra.mxu0 0
    %1653 = vmatprep.subr.bf16.mxu0 0
    %1654 = vmatpush1.bf16.msra.mxu0 0
    %1655 = vmatprep.subr.bf16.mxu0 0
    %1656 = vmatpush1.bf16.msra.mxu0 0
    %1657 = vmatprep.subr.bf16.mxu0 0
    %1658 = vmatpush1.bf16.msra.mxu0 0
    %1659 = vmatprep.subr.bf16.mxu0 0
    %1660 = vmatpush1.bf16.msra.mxu0 0
    %1661 = vmatprep.subr.bf16.mxu0 0
    %1662 = vmatpush1.bf16.msra.mxu0 0
    %1663 = vmatprep.subr.bf16.mxu0 0
    %1664 = vmatpush1.bf16.msra.mxu0 0
    %1665 = vmatprep.subr.bf16.mxu0 0
    %1666 = vmatpush1.bf16.msra.mxu0 0
    %1667 = vmatprep.subr.bf16.mxu0 0
    %1668 = vmatpush1.bf16.msra.mxu0 0
    %1669 = vmatprep.subr.bf16.mxu0 0
    %1670 = vmatpush1.bf16.msra.mxu0 0
    %1671 = vmatprep.subr.bf16.mxu0 0
    %1672 = vmatpush1.bf16.msra.mxu0 0
    %1673 = vmatprep.subr.bf16.mxu0 0
    %1674 = vmatpush1.bf16.msra.mxu0 0
    %1675 = vmatprep.mubr.bf16.mxu0 0
    %1676 = vmatmul.mubr.bf16.gmra.mrb[0].mxu0 %v1555
    %v1677 = vpop.f32.mrb[0].mxu0
    %v1678 = vadd.f32 0.0, %v1677
    %v1679 = vpop.f32.mrb[0].mxu0
    %v1680 = vadd.f32 0.0, %v1679
    %v1681 = vpop.f32.mrb[0].mxu0
    %v1682 = vadd.f32 0.0, %v1681
    %v1683 = vpop.f32.mrb[0].mxu0
    %v1684 = vadd.f32 0.0, %v1683
    %1685 = vdwg.mxu0
    %1686 = vmatprep.subr.bf16.mxu0 %v1529
    %1687 = vmatpush1.bf16.msra.mxu0 %v1528
    %1688 = vmatprep.subr.bf16.mxu0 %v1537
    %1689 = vmatpush1.bf16.msra.mxu0 %v1536
    %1690 = vmatprep.subr.bf16.mxu0 0
    %1691 = vmatpush1.bf16.msra.mxu0 0
    %1692 = vmatprep.subr.bf16.mxu0 0
    %1693 = vmatpush1.bf16.msra.mxu0 0
    %1694 = vmatprep.subr.bf16.mxu0 0
    %1695 = vmatpush1.bf16.msra.mxu0 0
    %1696 = vmatprep.subr.bf16.mxu0 0
    %1697 = vmatpush1.bf16.msra.mxu0 0
    %1698 = vmatprep.subr.bf16.mxu0 0
    %1699 = vmatpush1.bf16.msra.mxu0 0
    %1700 = vmatprep.subr.bf16.mxu0 0
    %1701 = vmatpush1.bf16.msra.mxu0 0
    %1702 = vmatprep.subr.bf16.mxu0 0
    %1703 = vmatpush1.bf16.msra.mxu0 0
    %1704 = vmatprep.subr.bf16.mxu0 0
    %1705 = vmatpush1.bf16.msra.mxu0 0
    %1706 = vmatprep.subr.bf16.mxu0 0
    %1707 = vmatpush1.bf16.msra.mxu0 0
    %1708 = vmatprep.subr.bf16.mxu0 0
    %1709 = vmatpush1.bf16.msra.mxu0 0
    %1710 = vmatprep.subr.bf16.mxu0 0
    %1711 = vmatpush1.bf16.msra.mxu0 0
    %1712 = vmatprep.subr.bf16.mxu0 0
    %1713 = vmatpush1.bf16.msra.mxu0 0
    %1714 = vmatprep.subr.bf16.mxu0 0
    %1715 = vmatpush1.bf16.msra.mxu0 0
    %1716 = vmatprep.subr.bf16.mxu0 0
    %1717 = vmatpush1.bf16.msra.mxu0 0
    %1718 = vmatprep.mubr.bf16.mxu0 0
    %1719 = vmatmul.mubr.bf16.gmra.mrb[0].mxu0 %v1555
    %v1720 = vpop.f32.mrb[0].mxu0
    %v1721 = vadd.f32 0.0, %v1720
    %v1722 = vpop.f32.mrb[0].mxu0
    %v1723 = vpop.f32.mrb[0].mxu0
    %v1724 = vadd.f32 0.0, %v1723
    %v1725 = vpop.f32.mrb[0].mxu0
    %1726 = vdwg.mxu0
    %v1727 = vmul.f32 %v1592, %v1291
    %v1728 = vmul.f32 %v1594, %v1292
    %v1729 = vmul.f32 %v1635, %v1293
    %v1730 = vmul.f32 %v1637, %v1294
    %v1731 = vmul.f32 %v1678, %v1295
    %v1732 = vmul.f32 %v1680, %v1296
    %v1733 = vmul.f32 %v1721, %v1297
    %v1734 = vmul.f32 %v1596, %v1298
    %v1735 = vmul.f32 %v1598, %v1299
    %v1736 = vmul.f32 %v1639, %v1300
    %v1737 = vmul.f32 %v1641, %v1301
    %v1738 = vmul.f32 %v1682, %v1302
    %v1739 = vmul.f32 %v1684, %v1303
    %v1740 = vmul.f32 %v1724, %v1304
    %v1741 = vadd.f32 %v1727, %v1728
    %v1742 = vadd.f32 %v1734, %v1735
    %v1743 = vadd.f32 %v1729, %v1730
    %v1744 = vadd.f32 %v1736, %v1737
    %v1745 = vadd.f32 %v1731, %v1732
    %v1746 = vadd.f32 %v1738, %v1739
    %v1747 = vadd.f32 %v1741, %v1743
    %v1748 = vadd.f32 %v1742, %v1744
    %v1749 = vadd.f32 %v1745, %v1733
    %v1750 = vadd.f32 %v1746, %v1740
    %v1751 = vadd.f32 %v1747, %v1749
    %v1752 = vadd.f32 %v1748, %v1750
    %v1753 = vpack.c.bf16 %v1752, %v1751
    %v1754 = vld [vmem:[#allocation16] sm:$0xff]
    %v1755 = vld [vmem:[#allocation16 + $0x8] sm:$0xff]
    %v1756 = vld [vmem:[#allocation16 + $0x10] sm:$0xff]
    %v1757 = vld [vmem:[#allocation16 + $0x18] sm:$0xff]
    %v1758 = vld [vmem:[#allocation16 + $0x20] sm:$0xff]
    %v1759 = vld [vmem:[#allocation16 + $0x28] sm:$0xff]
    %v1760 = vld [vmem:[#allocation16 + $0x30] sm:$0xff]
    %v1761 = vld [vmem:[#allocation16 + $0x38] sm:$0xff]
    %v1762 = vld [vmem:[#allocation16 + $0x40] sm:$0xff]
    %v1763 = vld [vmem:[#allocation16 + $0x48] sm:$0xff]
    %v1764 = vld [vmem:[#allocation16 + $0x50] sm:$0xff]
    %v1765 = vld [vmem:[#allocation16 + $0x58] sm:$0xff]
    %v1766 = vld [vmem:[#allocation16 + $0x60] sm:$0xff]
    %v1767 = vld [vmem:[#allocation16 + $0x68] sm:$0xff]
    %v1768 = vld [vmem:[#allocation16 + $0x70] sm:$0xff]
    %v1769 = vld [vmem:[#allocation16 + $0x78] sm:$0xff]
    %v1770 = vld [vmem:[#allocation16 + $0x80] sm:$0xff]
    %v1771 = vld [vmem:[#allocation16 + $0x88] sm:$0xff]
    %v1772 = vld [vmem:[#allocation16 + $0x90] sm:$0xff]
    %v1773 = vld [vmem:[#allocation16 + $0x98] sm:$0xff]
    %v1774 = vld [vmem:[#allocation16 + $0xa0] sm:$0xff]
    %v1775 = vld [vmem:[#allocation16 + $0xa8] sm:$0xff]
    %v1776 = vld [vmem:[#allocation16 + $0xb0] sm:$0xff]
    %v1777 = vld [vmem:[#allocation16 + $0xb8] sm:$0xff]
    %v1778 = vld [vmem:[#allocation16 + $0xc0] sm:$0xff]
    %v1779 = vld [vmem:[#allocation16 + $0xc8] sm:$0xff]
    %v1780 = vld [vmem:[#allocation16 + $0xd0] sm:$0xff]
    %v1781 = vld [vmem:[#allocation16 + $0xd8] sm:$0xff]
    %v1782 = vld [vmem:[#allocation16 + $0xe0] sm:$0xff]
    %v1783 = vld [vmem:[#allocation16 + $0xe8] sm:$0xff]
    %v1784 = vld [vmem:[#allocation16 + $0xf0] sm:$0xff]
    %v1785 = vld [vmem:[#allocation16 + $0xf8] sm:$0xff]
    %v1786 = vld [vmem:[#allocation16 + $0x100] sm:$0xff]
    %v1787 = vld [vmem:[#allocation16 + $0x108] sm:$0xff]
    %v1788 = vld [vmem:[#allocation16 + $0x110] sm:$0xff]
    %v1789 = vld [vmem:[#allocation16 + $0x118] sm:$0xff]
    %v1790 = vld [vmem:[#allocation16 + $0x120] sm:$0xff]
    %v1791 = vld [vmem:[#allocation16 + $0x128] sm:$0xff]
    %v1792 = vld [vmem:[#allocation16 + $0x130] sm:$0xff]
    %v1793 = vld [vmem:[#allocation16 + $0x138] sm:$0xff]
    %v1794 = vld [vmem:[#allocation16 + $0x140] sm:$0xff]
    %v1795 = vld [vmem:[#allocation16 + $0x148] sm:$0xff]
    %v1796 = vld [vmem:[#allocation16 + $0x150] sm:$0xff]
    %v1797 = vld [vmem:[#allocation16 + $0x158] sm:$0xff]
    %v1798 = vld [vmem:[#allocation16 + $0x160] sm:$0xff]
    %v1799 = vld [vmem:[#allocation16 + $0x168] sm:$0xff]
    %v1800 = vld [vmem:[#allocation16 + $0x170] sm:$0xff]
    %v1801 = vld [vmem:[#allocation16 + $0x178] sm:$0xff]
    %v1802 = vld [vmem:[#allocation16 + $0x180] sm:$0xff]
    %v1803 = vld [vmem:[#allocation16 + $0x188] sm:$0xff]
    %v1804 = vld [vmem:[#allocation16 + $0x190] sm:$0xff]
    %v1805 = vld [vmem:[#allocation16 + $0x198] sm:$0xff]
    %v1806 = vld [vmem:[#allocation16 + $0x1a0] sm:$0xff]
    %v1807 = vld [vmem:[#allocation16 + $0x1a8] sm:$0xff]
    %v1808 = vld [vmem:[#allocation16 + $0x1b0] sm:$0xff]
    %v1809 = vld [vmem:[#allocation16 + $0x1b8] sm:$0xff]
    %v1810 = vld [vmem:[#allocation16 + $0x1c0] sm:$0xff]
    %v1811 = vld [vmem:[#allocation16 + $0x1c8] sm:$0xff]
    %v1812 = vld [vmem:[#allocation16 + $0x1d0] sm:$0xff]
    %v1813 = vld [vmem:[#allocation16 + $0x1d8] sm:$0xff]
    %v1814 = vld [vmem:[#allocation16 + $0x1e0] sm:$0xff]
    %v1815 = vld [vmem:[#allocation16 + $0x1e8] sm:$0xff]
    %v1816 = vld [vmem:[#allocation16 + $0x1f0] sm:$0xff]
    %v1817 = vld [vmem:[#allocation16 + $0x1f8] sm:$0xff]
    %v1818 = vld [vmem:[#allocation17] sm:$0xff]
    %v1820 = vlaneseq
    %v1821 = vshrl.u32 %v1820, 7
    %v1822 = vsub.s32 0, %v1821
    %v1823 = vrot.slane %v1818, %v1822
    %v1824 = vlaneseq
    %v1825 = vshrl.u32 %v1824, 7
    %v1826 = vsub.s32 1, %v1825
    %v1827 = vrot.slane %v1818, %v1826
    %v1828 = vlaneseq
    %v1829 = vshrl.u32 %v1828, 7
    %v1830 = vsub.s32 2, %v1829
    %v1831 = vrot.slane %v1818, %v1830
    %v1832 = vlaneseq
    %v1833 = vshrl.u32 %v1832, 7
    %v1834 = vsub.s32 3, %v1833
    %v1835 = vrot.slane %v1818, %v1834
    %v1836 = vlaneseq
    %v1837 = vshrl.u32 %v1836, 7
    %v1838 = vsub.s32 4, %v1837
    %v1839 = vrot.slane %v1818, %v1838
    %v1840 = vlaneseq
    %v1841 = vshrl.u32 %v1840, 7
    %v1842 = vsub.s32 5, %v1841
    %v1843 = vrot.slane %v1818, %v1842
    %v1844 = vlaneseq
    %v1845 = vshrl.u32 %v1844, 7
    %v1846 = vsub.s32 6, %v1845
    %v1847 = vrot.slane %v1818, %v1846
    %v1919 = vunpack.c.l.b16 %v1754
    %v1920 = vunpack.c.h.b16 %v1754
    %v1921 = vunpack.c.l.b16 %v1755
    %v1922 = vunpack.c.h.b16 %v1755
    %v1923 = vunpack.c.l.b16 %v1756
    %v1924 = vunpack.c.h.b16 %v1756
    %v1925 = vunpack.c.l.b16 %v1757
    %v1926 = vunpack.c.h.b16 %v1757
    %v1927 = vunpack.c.l.b16 %v1758
    %v1928 = vunpack.c.h.b16 %v1758
    %v1929 = vunpack.c.l.b16 %v1759
    %v1930 = vunpack.c.h.b16 %v1759
    %v1931 = vunpack.c.l.b16 %v1760
    %v1932 = vunpack.c.h.b16 %v1760
    %v1933 = vunpack.c.l.b16 %v1761
    %v1934 = vunpack.c.h.b16 %v1761
    %v1935 = vunpack.c.l.b16 %v1762
    %v1936 = vunpack.c.h.b16 %v1762
    %v1937 = vunpack.c.l.b16 %v1763
    %v1938 = vunpack.c.h.b16 %v1763
    %v1939 = vunpack.c.l.b16 %v1764
    %v1940 = vunpack.c.h.b16 %v1764
    %v1941 = vunpack.c.l.b16 %v1765
    %v1942 = vunpack.c.h.b16 %v1765
    %v1943 = vunpack.c.l.b16 %v1766
    %v1944 = vunpack.c.h.b16 %v1766
    %v1945 = vunpack.c.l.b16 %v1767
    %v1946 = vunpack.c.h.b16 %v1767
    %v1947 = vunpack.c.l.b16 %v1768
    %v1948 = vunpack.c.h.b16 %v1768
    %v1949 = vunpack.c.l.b16 %v1769
    %v1950 = vunpack.c.h.b16 %v1769
    %v1951 = vunpack.c.l.b16 %v1770
    %v1952 = vunpack.c.h.b16 %v1770
    %v1953 = vunpack.c.l.b16 %v1771
    %v1954 = vunpack.c.h.b16 %v1771
    %v1955 = vunpack.c.l.b16 %v1772
    %v1956 = vunpack.c.h.b16 %v1772
    %v1957 = vunpack.c.l.b16 %v1773
    %v1958 = vunpack.c.h.b16 %v1773
    %v1959 = vunpack.c.l.b16 %v1774
    %v1960 = vunpack.c.h.b16 %v1774
    %v1961 = vunpack.c.l.b16 %v1775
    %v1962 = vunpack.c.h.b16 %v1775
    %v1963 = vunpack.c.l.b16 %v1776
    %v1964 = vunpack.c.h.b16 %v1776
    %v1965 = vunpack.c.l.b16 %v1777
    %v1966 = vunpack.c.h.b16 %v1777
    %v1967 = vunpack.c.l.b16 %v1778
    %v1968 = vunpack.c.h.b16 %v1778
    %v1969 = vunpack.c.l.b16 %v1779
    %v1970 = vunpack.c.h.b16 %v1779
    %v1971 = vunpack.c.l.b16 %v1780
    %v1972 = vunpack.c.h.b16 %v1780
    %v1973 = vunpack.c.l.b16 %v1781
    %v1974 = vunpack.c.h.b16 %v1781
    %v1975 = vunpack.c.l.b16 %v1782
    %v1976 = vunpack.c.h.b16 %v1782
    %v1977 = vunpack.c.l.b16 %v1783
    %v1978 = vunpack.c.h.b16 %v1783
    %v1979 = vunpack.c.l.b16 %v1784
    %v1980 = vunpack.c.h.b16 %v1784
    %v1981 = vunpack.c.l.b16 %v1785
    %v1982 = vunpack.c.h.b16 %v1785
    %v1983 = vunpack.c.l.b16 %v1786
    %v1984 = vunpack.c.h.b16 %v1786
    %v1985 = vunpack.c.l.b16 %v1787
    %v1986 = vunpack.c.h.b16 %v1787
    %v1987 = vunpack.c.l.b16 %v1788
    %v1988 = vunpack.c.h.b16 %v1788
    %v1989 = vunpack.c.l.b16 %v1789
    %v1990 = vunpack.c.h.b16 %v1789
    %v1991 = vunpack.c.l.b16 %v1790
    %v1992 = vunpack.c.h.b16 %v1790
    %v1993 = vunpack.c.l.b16 %v1791
    %v1994 = vunpack.c.h.b16 %v1791
    %v1995 = vunpack.c.l.b16 %v1792
    %v1996 = vunpack.c.h.b16 %v1792
    %v1997 = vunpack.c.l.b16 %v1793
    %v1998 = vunpack.c.h.b16 %v1793
    %v1999 = vunpack.c.l.b16 %v1794
    %v2000 = vunpack.c.h.b16 %v1794
    %v2001 = vunpack.c.l.b16 %v1795
    %v2002 = vunpack.c.h.b16 %v1795
    %v2003 = vunpack.c.l.b16 %v1796
    %v2004 = vunpack.c.h.b16 %v1796
    %v2005 = vunpack.c.l.b16 %v1797
    %v2006 = vunpack.c.h.b16 %v1797
    %v2007 = vunpack.c.l.b16 %v1798
    %v2008 = vunpack.c.h.b16 %v1798
    %v2009 = vunpack.c.l.b16 %v1799
    %v2010 = vunpack.c.h.b16 %v1799
    %v2011 = vunpack.c.l.b16 %v1800
    %v2012 = vunpack.c.h.b16 %v1800
    %v2013 = vunpack.c.l.b16 %v1801
    %v2014 = vunpack.c.h.b16 %v1801
    %v2015 = vunpack.c.l.b16 %v1802
    %v2016 = vunpack.c.h.b16 %v1802
    %v2017 = vunpack.c.l.b16 %v1803
    %v2018 = vunpack.c.h.b16 %v1803
    %v2019 = vunpack.c.l.b16 %v1804
    %v2020 = vunpack.c.h.b16 %v1804
    %v2021 = vunpack.c.l.b16 %v1805
    %v2022 = vunpack.c.h.b16 %v1805
    %v2023 = vunpack.c.l.b16 %v1806
    %v2024 = vunpack.c.h.b16 %v1806
    %v2025 = vunpack.c.l.b16 %v1807
    %v2026 = vunpack.c.h.b16 %v1807
    %v2027 = vunpack.c.l.b16 %v1808
    %v2028 = vunpack.c.h.b16 %v1808
    %v2029 = vunpack.c.l.b16 %v1809
    %v2030 = vunpack.c.h.b16 %v1809
    %v2031 = vunpack.c.l.b16 %v1810
    %v2032 = vunpack.c.h.b16 %v1810
    %v2033 = vunpack.c.l.b16 %v1811
    %v2034 = vunpack.c.h.b16 %v1811
    %v2035 = vunpack.c.l.b16 %v1812
    %v2036 = vunpack.c.h.b16 %v1812
    %v2037 = vunpack.c.l.b16 %v1813
    %v2038 = vunpack.c.h.b16 %v1813
    %v2039 = vunpack.c.l.b16 %v1814
    %v2040 = vunpack.c.h.b16 %v1814
    %v2041 = vunpack.c.l.b16 %v1815
    %v2042 = vunpack.c.h.b16 %v1815
    %v2043 = vunpack.c.l.b16 %v1816
    %v2044 = vunpack.c.h.b16 %v1816
    %v2045 = vunpack.c.l.b16 %v1817
    %v2046 = vunpack.c.h.b16 %v1817
    %v2047 = vpack.c.b16 %v1927, %v1919
    %v2048 = vpack.c.b16 %v1928, %v1920
    %v2049 = vpack.c.b16 %v1929, %v1921
    %v2050 = vpack.c.b16 %v1930, %v1922
    %v2051 = vpack.c.b16 %v1931, %v1923
    %v2052 = vpack.c.b16 %v1932, %v1924
    %v2053 = vpack.c.b16 %v1933, %v1925
    %v2054 = vpack.c.b16 %v1934, %v1926
    %v2055 = vpack.c.b16 %v1943, %v1935
    %v2056 = vpack.c.b16 %v1944, %v1936
    %v2057 = vpack.c.b16 %v1945, %v1937
    %v2058 = vpack.c.b16 %v1946, %v1938
    %v2059 = vpack.c.b16 %v1947, %v1939
    %v2060 = vpack.c.b16 %v1948, %v1940
    %v2061 = vpack.c.b16 %v1949, %v1941
    %v2062 = vpack.c.b16 %v1950, %v1942
    %v2063 = vpack.c.b16 %v1959, %v1951
    %v2064 = vpack.c.b16 %v1960, %v1952
    %v2065 = vpack.c.b16 %v1961, %v1953
    %v2066 = vpack.c.b16 %v1962, %v1954
    %v2067 = vpack.c.b16 %v1963, %v1955
    %v2068 = vpack.c.b16 %v1964, %v1956
    %v2069 = vpack.c.b16 %v1965, %v1957
    %v2070 = vpack.c.b16 %v1966, %v1958
    %v2071 = vpack.c.b16 %v1975, %v1967
    %v2072 = vpack.c.b16 %v1976, %v1968
    %v2073 = vpack.c.b16 %v1977, %v1969
    %v2074 = vpack.c.b16 %v1978, %v1970
    %v2075 = vpack.c.b16 %v1979, %v1971
    %v2076 = vpack.c.b16 %v1980, %v1972
    %v2077 = vpack.c.b16 %v1981, %v1973
    %v2078 = vpack.c.b16 %v1982, %v1974
    %v2079 = vpack.c.b16 %v1991, %v1983
    %v2080 = vpack.c.b16 %v1992, %v1984
    %v2081 = vpack.c.b16 %v1993, %v1985
    %v2082 = vpack.c.b16 %v1994, %v1986
    %v2083 = vpack.c.b16 %v1995, %v1987
    %v2084 = vpack.c.b16 %v1996, %v1988
    %v2085 = vpack.c.b16 %v1997, %v1989
    %v2086 = vpack.c.b16 %v1998, %v1990
    %v2087 = vpack.c.b16 %v2007, %v1999
    %v2088 = vpack.c.b16 %v2008, %v2000
    %v2089 = vpack.c.b16 %v2009, %v2001
    %v2090 = vpack.c.b16 %v2010, %v2002
    %v2091 = vpack.c.b16 %v2011, %v2003
    %v2092 = vpack.c.b16 %v2012, %v2004
    %v2093 = vpack.c.b16 %v2013, %v2005
    %v2094 = vpack.c.b16 %v2014, %v2006
    %v2095 = vpack.c.b16 %v2023, %v2015
    %v2096 = vpack.c.b16 %v2024, %v2016
    %v2097 = vpack.c.b16 %v2025, %v2017
    %v2098 = vpack.c.b16 %v2026, %v2018
    %v2099 = vpack.c.b16 %v2027, %v2019
    %v2100 = vpack.c.b16 %v2028, %v2020
    %v2101 = vpack.c.b16 %v2029, %v2021
    %v2102 = vpack.c.b16 %v2030, %v2022
    %v2103 = vpack.c.b16 %v2039, %v2031
    %v2104 = vpack.c.b16 %v2040, %v2032
    %v2105 = vpack.c.b16 %v2041, %v2033
    %v2106 = vpack.c.b16 %v2042, %v2034
    %v2107 = vpack.c.b16 %v2043, %v2035
    %v2108 = vpack.c.b16 %v2044, %v2036
    %v2109 = vpack.c.b16 %v2045, %v2037
    %v2110 = vpack.c.b16 %v2046, %v2038
    %2175 = vmatprep.subr.bf16.mxu0 %v2048
    %2176 = vmatpush1.bf16.msra.mxu0 %v2047
    %2177 = vmatprep.subr.bf16.mxu0 %v2056
    %2178 = vmatpush1.bf16.msra.mxu0 %v2055
    %2179 = vmatprep.subr.bf16.mxu0 %v2064
    %2180 = vmatpush1.bf16.msra.mxu0 %v2063
    %2181 = vmatprep.subr.bf16.mxu0 %v2072
    %2182 = vmatpush1.bf16.msra.mxu0 %v2071
    %2183 = vmatprep.subr.bf16.mxu0 %v2080
    %2184 = vmatpush1.bf16.msra.mxu0 %v2079
    %2185 = vmatprep.subr.bf16.mxu0 %v2088
    %2186 = vmatpush1.bf16.msra.mxu0 %v2087
    %2187 = vmatprep.subr.bf16.mxu0 %v2096
    %2188 = vmatpush1.bf16.msra.mxu0 %v2095
    %2189 = vmatprep.subr.bf16.mxu0 %v2104
    %2190 = vmatpush1.bf16.msra.mxu0 %v2103
    %2191 = vmatprep.subr.bf16.mxu0 0
    %2192 = vmatpush1.bf16.msra.mxu0 0
    %2193 = vmatprep.subr.bf16.mxu0 0
    %2194 = vmatpush1.bf16.msra.mxu0 0
    %2195 = vmatprep.subr.bf16.mxu0 0
    %2196 = vmatpush1.bf16.msra.mxu0 0
    %2197 = vmatprep.subr.bf16.mxu0 0
    %2198 = vmatpush1.bf16.msra.mxu0 0
    %2199 = vmatprep.subr.bf16.mxu0 0
    %2200 = vmatpush1.bf16.msra.mxu0 0
    %2201 = vmatprep.subr.bf16.mxu0 0
    %2202 = vmatpush1.bf16.msra.mxu0 0
    %2203 = vmatprep.subr.bf16.mxu0 0
    %2204 = vmatpush1.bf16.msra.mxu0 0
    %2205 = vmatprep.subr.bf16.mxu0 0
    %2206 = vmatpush1.bf16.msra.mxu0 0
    %2207 = vmatprep.mubr.bf16.mxu0 0
    %2208 = vmatmul.mubr.bf16.gmra.mrb[0].mxu0 %v1753
    %v2209 = vpop.f32.mrb[0].mxu0
    %v2210 = vadd.f32 %v1823, %v2209
    %v2211 = vpop.f32.mrb[0].mxu0
    %v2212 = vadd.f32 %v1827, %v2211
    %v2213 = vpop.f32.mrb[0].mxu0
    %v2214 = vadd.f32 %v1823, %v2213
    %v2215 = vpop.f32.mrb[0].mxu0
    %v2216 = vadd.f32 %v1827, %v2215
    %2217 = vdwg.mxu0
    %2218 = vmatprep.subr.bf16.mxu0 %v2050
    %2219 = vmatpush1.bf16.msra.mxu0 %v2049
    %2220 = vmatprep.subr.bf16.mxu0 %v2058
    %2221 = vmatpush1.bf16.msra.mxu0 %v2057
    %2222 = vmatprep.subr.bf16.mxu0 %v2066
    %2223 = vmatpush1.bf16.msra.mxu0 %v2065
    %2224 = vmatprep.subr.bf16.mxu0 %v2074
    %2225 = vmatpush1.bf16.msra.mxu0 %v2073
    %2226 = vmatprep.subr.bf16.mxu0 %v2082
    %2227 = vmatpush1.bf16.msra.mxu0 %v2081
    %2228 = vmatprep.subr.bf16.mxu0 %v2090
    %2229 = vmatpush1.bf16.msra.mxu0 %v2089
    %2230 = vmatprep.subr.bf16.mxu0 %v2098
    %2231 = vmatpush1.bf16.msra.mxu0 %v2097
    %2232 = vmatprep.subr.bf16.mxu0 %v2106
    %2233 = vmatpush1.bf16.msra.mxu0 %v2105
    %2234 = vmatprep.subr.bf16.mxu0 0
    %2235 = vmatpush1.bf16.msra.mxu0 0
    %2236 = vmatprep.subr.bf16.mxu0 0
    %2237 = vmatpush1.bf16.msra.mxu0 0
    %2238 = vmatprep.subr.bf16.mxu0 0
    %2239 = vmatpush1.bf16.msra.mxu0 0
    %2240 = vmatprep.subr.bf16.mxu0 0
    %2241 = vmatpush1.bf16.msra.mxu0 0
    %2242 = vmatprep.subr.bf16.mxu0 0
    %2243 = vmatpush1.bf16.msra.mxu0 0
    %2244 = vmatprep.subr.bf16.mxu0 0
    %2245 = vmatpush1.bf16.msra.mxu0 0
    %2246 = vmatprep.subr.bf16.mxu0 0
    %2247 = vmatpush1.bf16.msra.mxu0 0
    %2248 = vmatprep.subr.bf16.mxu0 0
    %2249 = vmatpush1.bf16.msra.mxu0 0
    %2250 = vmatprep.mubr.bf16.mxu0 0
    %2251 = vmatmul.mubr.bf16.gmra.mrb[0].mxu0 %v1753
    %v2252 = vpop.f32.mrb[0].mxu0
    %v2253 = vadd.f32 %v1831, %v2252
    %v2254 = vpop.f32.mrb[0].mxu0
    %v2255 = vadd.f32 %v1835, %v2254
    %v2256 = vpop.f32.mrb[0].mxu0
    %v2257 = vadd.f32 %v1831, %v2256
    %v2258 = vpop.f32.mrb[0].mxu0
    %v2259 = vadd.f32 %v1835, %v2258
    %2260 = vdwg.mxu0
    %2261 = vmatprep.subr.bf16.mxu0 %v2052
    %2262 = vmatpush1.bf16.msra.mxu0 %v2051
    %2263 = vmatprep.subr.bf16.mxu0 %v2060
    %2264 = vmatpush1.bf16.msra.mxu0 %v2059
    %2265 = vmatprep.subr.bf16.mxu0 %v2068
    %2266 = vmatpush1.bf16.msra.mxu0 %v2067
    %2267 = vmatprep.subr.bf16.mxu0 %v2076
    %2268 = vmatpush1.bf16.msra.mxu0 %v2075
    %2269 = vmatprep.subr.bf16.mxu0 %v2084
    %2270 = vmatpush1.bf16.msra.mxu0 %v2083
    %2271 = vmatprep.subr.bf16.mxu0 %v2092
    %2272 = vmatpush1.bf16.msra.mxu0 %v2091
    %2273 = vmatprep.subr.bf16.mxu0 %v2100
    %2274 = vmatpush1.bf16.msra.mxu0 %v2099
    %2275 = vmatprep.subr.bf16.mxu0 %v2108
    %2276 = vmatpush1.bf16.msra.mxu0 %v2107
    %2277 = vmatprep.subr.bf16.mxu0 0
    %2278 = vmatpush1.bf16.msra.mxu0 0
    %2279 = vmatprep.subr.bf16.mxu0 0
    %2280 = vmatpush1.bf16.msra.mxu0 0
    %2281 = vmatprep.subr.bf16.mxu0 0
    %2282 = vmatpush1.bf16.msra.mxu0 0
    %2283 = vmatprep.subr.bf16.mxu0 0
    %2284 = vmatpush1.bf16.msra.mxu0 0
    %2285 = vmatprep.subr.bf16.mxu0 0
    %2286 = vmatpush1.bf16.msra.mxu0 0
    %2287 = vmatprep.subr.bf16.mxu0 0
    %2288 = vmatpush1.bf16.msra.mxu0 0
    %2289 = vmatprep.subr.bf16.mxu0 0
    %2290 = vmatpush1.bf16.msra.mxu0 0
    %2291 = vmatprep.subr.bf16.mxu0 0
    %2292 = vmatpush1.bf16.msra.mxu0 0
    %2293 = vmatprep.mubr.bf16.mxu0 0
    %2294 = vmatmul.mubr.bf16.gmra.mrb[0].mxu0 %v1753
    %v2295 = vpop.f32.mrb[0].mxu0
    %v2296 = vadd.f32 %v1839, %v2295
    %v2297 = vpop.f32.mrb[0].mxu0
    %v2298 = vadd.f32 %v1843, %v2297
    %v2299 = vpop.f32.mrb[0].mxu0
    %v2300 = vadd.f32 %v1839, %v2299
    %v2301 = vpop.f32.mrb[0].mxu0
    %v2302 = vadd.f32 %v1843, %v2301
    %2303 = vdwg.mxu0
    %2304 = vmatprep.subr.bf16.mxu0 %v2054
    %2305 = vmatpush1.bf16.msra.mxu0 %v2053
    %2306 = vmatprep.subr.bf16.mxu0 %v2062
    %2307 = vmatpush1.bf16.msra.mxu0 %v2061
    %2308 = vmatprep.subr.bf16.mxu0 %v2070
    %2309 = vmatpush1.bf16.msra.mxu0 %v2069
    %2310 = vmatprep.subr.bf16.mxu0 %v2078
    %2311 = vmatpush1.bf16.msra.mxu0 %v2077
    %2312 = vmatprep.subr.bf16.mxu0 %v2086
    %2313 = vmatpush1.bf16.msra.mxu0 %v2085
    %2314 = vmatprep.subr.bf16.mxu0 %v2094
    %2315 = vmatpush1.bf16.msra.mxu0 %v2093
    %2316 = vmatprep.subr.bf16.mxu0 %v2102
    %2317 = vmatpush1.bf16.msra.mxu0 %v2101
    %2318 = vmatprep.subr.bf16.mxu0 %v2110
    %2319 = vmatpush1.bf16.msra.mxu0 %v2109
    %2320 = vmatprep.subr.bf16.mxu0 0
    %2321 = vmatpush1.bf16.msra.mxu0 0
    %2322 = vmatprep.subr.bf16.mxu0 0
    %2323 = vmatpush1.bf16.msra.mxu0 0
    %2324 = vmatprep.subr.bf16.mxu0 0
    %2325 = vmatpush1.bf16.msra.mxu0 0
    %2326 = vmatprep.subr.bf16.mxu0 0
    %2327 = vmatpush1.bf16.msra.mxu0 0
    %2328 = vmatprep.subr.bf16.mxu0 0
    %2329 = vmatpush1.bf16.msra.mxu0 0
    %2330 = vmatprep.subr.bf16.mxu0 0
    %2331 = vmatpush1.bf16.msra.mxu0 0
    %2332 = vmatprep.subr.bf16.mxu0 0
    %2333 = vmatpush1.bf16.msra.mxu0 0
    %2334 = vmatprep.subr.bf16.mxu0 0
    %2335 = vmatpush1.bf16.msra.mxu0 0
    %2336 = vmatprep.mubr.bf16.mxu0 0
    %2337 = vmatmul.mubr.bf16.gmra.mrb[0].mxu0 %v1753
    %v2338 = vpop.f32.mrb[0].mxu0
    %v2339 = vadd.f32 %v1847, %v2338
    %v2340 = vpop.f32.mrb[0].mxu0
    %v2341 = vpop.f32.mrb[0].mxu0
    %v2342 = vadd.f32 %v1847, %v2341
    %v2343 = vpop.f32.mrb[0].mxu0
    %2344 = vdwg.mxu0
    %v2345 = vmax.f32 %v2210, 0.0
    %v2346 = vmax.f32 %v2212, 0.0
    %v2347 = vmax.f32 %v2253, 0.0
    %v2348 = vmax.f32 %v2255, 0.0
    %v2349 = vmax.f32 %v2296, 0.0
    %v2350 = vmax.f32 %v2298, 0.0
    %v2351 = vmax.f32 %v2339, 0.0
    %v2352 = vmax.f32 %v2214, 0.0
    %v2353 = vmax.f32 %v2216, 0.0
    %v2354 = vmax.f32 %v2257, 0.0
    %v2355 = vmax.f32 %v2259, 0.0
    %v2356 = vmax.f32 %v2300, 0.0
    %v2357 = vmax.f32 %v2302, 0.0
    %v2358 = vmax.f32 %v2342, 0.0
    %v2359 = vld [vmem:[%s12] sm:$0xf]
    %v2360 = vld [vmem:[%s12 + $0x4] sm:$0xf]
    %v2361 = vld [vmem:[%s12 + $0x8] sm:$0xf]
    %v2362 = vld [vmem:[%s12 + $0xc] sm:$0xf]
    %v2363 = vld [vmem:[%s12 + $0x10] sm:$0xf]
    %v2364 = vld [vmem:[%s12 + $0x14] sm:$0xf]
    %v2365 = vld [vmem:[%s12 + $0x18] sm:$0xf]
    %v2366 = vld [vmem:[%s12 + $0x1c] sm:$0xf]
    %v2367 = vld [vmem:[%s12 + $0x20] sm:$0xf]
    %v2368 = vld [vmem:[%s12 + $0x24] sm:$0xf]
    %v2369 = vld [vmem:[%s12 + $0x28] sm:$0xf]
    %v2370 = vld [vmem:[%s12 + $0x2c] sm:$0xf]
    %v2371 = vld [vmem:[%s12 + $0x30] sm:$0xf]
    %v2372 = vld [vmem:[%s12 + $0x34] sm:$0xf]
    %v2373 = vld [vmem:[%s12 + $0x38] sm:$0xf]
    %v2374 = vld [vmem:[%s12 + $0x3c] sm:$0xf]
    %v2375 = vld [vmem:[#allocation19] sm:$0x1]
    %v2377 = vlaneseq
    %v2378 = vshrl.u32 %v2377, 7
    %v2379 = vsub.s32 0, %v2378
    %v2380 = vrot.slane %v2375, %v2379
    %v2398 = vunpack.c.l.b16 %v2359
    %v2399 = vunpack.c.l.b16 %v2360
    %v2400 = vunpack.c.l.b16 %v2361
    %v2401 = vunpack.c.l.b16 %v2362
    %v2402 = vunpack.c.l.b16 %v2363
    %v2403 = vunpack.c.l.b16 %v2364
    %v2404 = vunpack.c.l.b16 %v2365
    %v2405 = vunpack.c.l.b16 %v2366
    %v2406 = vunpack.c.l.b16 %v2367
    %v2407 = vunpack.c.l.b16 %v2368
    %v2408 = vunpack.c.l.b16 %v2369
    %v2409 = vunpack.c.l.b16 %v2370
    %v2410 = vunpack.c.l.b16 %v2371
    %v2411 = vunpack.c.l.b16 %v2372
    %v2412 = vunpack.c.l.b16 %v2373
    %v2413 = vunpack.c.l.b16 %v2374
    %v2414 = vpack.c.b16 %v2399, %v2398
    %v2415 = vpack.c.b16 %v2401, %v2400
    %v2416 = vpack.c.b16 %v2403, %v2402
    %v2417 = vpack.c.b16 %v2405, %v2404
    %v2418 = vpack.c.b16 %v2407, %v2406
    %v2419 = vpack.c.b16 %v2409, %v2408
    %v2420 = vpack.c.b16 %v2411, %v2410
    %v2421 = vpack.c.b16 %v2413, %v2412
    %2430 = vmatprep.subr.bf16.mxu0 0
    %2431 = vmatpush1.bf16.msra.mxu0 %v2414
    %2432 = vmatprep.subr.bf16.mxu0 0
    %2433 = vmatpush1.bf16.msra.mxu0 %v2415
    %2434 = vmatprep.subr.bf16.mxu0 0
    %2435 = vmatpush1.bf16.msra.mxu0 %v2416
    %2436 = vmatprep.subr.bf16.mxu0 0
    %2437 = vmatpush1.bf16.msra.mxu0 %v2417
    %2438 = vmatprep.subr.bf16.mxu0 0
    %2439 = vmatpush1.bf16.msra.mxu0 %v2418
    %2440 = vmatprep.subr.bf16.mxu0 0
    %2441 = vmatpush1.bf16.msra.mxu0 %v2419
    %2442 = vmatprep.subr.bf16.mxu0 0
    %2443 = vmatpush1.bf16.msra.mxu0 %v2420
    %2444 = vmatprep.subr.bf16.mxu0 0
    %2445 = vmatpush1.bf16.msra.mxu0 %v2421
    %2446 = vmatprep.subr.bf16.mxu0 0
    %2447 = vmatpush1.bf16.msra.mxu0 0
    %2448 = vmatprep.subr.bf16.mxu0 0
    %2449 = vmatpush1.bf16.msra.mxu0 0
    %2450 = vmatprep.subr.bf16.mxu0 0
    %2451 = vmatpush1.bf16.msra.mxu0 0
    %2452 = vmatprep.subr.bf16.mxu0 0
    %2453 = vmatpush1.bf16.msra.mxu0 0
    %2454 = vmatprep.subr.bf16.mxu0 0
    %2455 = vmatpush1.bf16.msra.mxu0 0
    %2456 = vmatprep.subr.bf16.mxu0 0
    %2457 = vmatpush1.bf16.msra.mxu0 0
    %2458 = vmatprep.subr.bf16.mxu0 0
    %2459 = vmatpush1.bf16.msra.mxu0 0
    %2460 = vmatprep.subr.bf16.mxu0 0
    %2461 = vmatpush1.bf16.msra.mxu0 0
    %2462 = vmatprep.mubr.bf16.mxu0 0
    %2463 = vmatmul.mubr.bf16.gmra.mrb[0].mxu0 %v1753
    %v2464 = vpop.f32.mrb[0].mxu0
    %v2465 = vadd.f32 %v2380, %v2464
    %v2466 = vpop.f32.mrb[0].mxu0
    %v2467 = vpop.f32.mrb[0].mxu0
    %v2468 = vadd.f32 %v2380, %v2467
    %v2469 = vpop.f32.mrb[0].mxu0
    %2470 = vdwg.mxu0
    %vm2471 = vcmask 195584
    %v2472 = vsel %vm2471, %v2465, -inf
    %2473 = vmax.xlane.f32.xlu0 %v2472
    %v2474 = vpop.xlane.xlu0 %2473
    %v2475 = vsel %vm2471, %v2468, -inf
    %2476 = vmax.xlane.f32.xlu0 %v2475
    %v2477 = vpop.xlane.xlu0 %2476
    %v2478 = vsub.f32 %v2465, %v2474
    %v2479 = vsub.f32 %v2468, %v2477
    %v2480 = vmul.f32 %v2478, 1.442695
    %v2481 = vpow.pop %v2480
    %v2482 = vmul.f32 %v2479, 1.442695
    %v2483 = vpow.pop %v2482
    %v2484 = vpack.c.bf16 %v2483, %v2481
    %v2485 = vld [vmem:[#allocation22] sm:$0xf]
    %v2486 = vld [vmem:[#allocation22 + $0x4] sm:$0xf]
    %v2487 = vld [vmem:[#allocation22 + $0x8] sm:$0xf]
    %v2491 = vunpack.c.l.b16 %v2485
    %v2492 = vunpack.c.l.b16 %v2486
    %v2493 = vunpack.c.l.b16 %v2487
    %v2494 = vpack.c.b16 %v2492, %v2491
    %v2495 = vpack.c.b16 %v2493, %v2493
    %v2498 = vsel %vm2471, %v2484, 0
    %vm2500 = vcmask 1043456
    %v2502 = vsel %vm2500, %v2495, 0
    %2504 = vmatprep.subr.bf16.mxu0 0
    %2505 = vmatpush1.bf16.msra.mxu0 %v2494
    %2506 = vmatprep.subr.bf16.mxu0 0
    %2507 = vmatpush1.bf16.msra.mxu0 %v2502
    %2508 = vmatprep.subr.bf16.mxu0 0
    %2509 = vmatpush1.bf16.msra.mxu0 0
    %2510 = vmatprep.subr.bf16.mxu0 0
    %2511 = vmatpush1.bf16.msra.mxu0 0
    %2512 = vmatprep.subr.bf16.mxu0 0
    %2513 = vmatpush1.bf16.msra.mxu0 0
    %2514 = vmatprep.subr.bf16.mxu0 0
    %2515 = vmatpush1.bf16.msra.mxu0 0
    %2516 = vmatprep.subr.bf16.mxu0 0
    %2517 = vmatpush1.bf16.msra.mxu0 0
    %2518 = vmatprep.subr.bf16.mxu0 0
    %2519 = vmatpush1.bf16.msra.mxu0 0
    %2520 = vmatprep.subr.bf16.mxu0 0
    %2521 = vmatpush1.bf16.msra.mxu0 0
    %2522 = vmatprep.subr.bf16.mxu0 0
    %2523 = vmatpush1.bf16.msra.mxu0 0
    %2524 = vmatprep.subr.bf16.mxu0 0
    %2525 = vmatpush1.bf16.msra.mxu0 0
    %2526 = vmatprep.subr.bf16.mxu0 0
    %2527 = vmatpush1.bf16.msra.mxu0 0
    %2528 = vmatprep.subr.bf16.mxu0 0
    %2529 = vmatpush1.bf16.msra.mxu0 0
    %2530 = vmatprep.subr.bf16.mxu0 0
    %2531 = vmatpush1.bf16.msra.mxu0 0
    %2532 = vmatprep.subr.bf16.mxu0 0
    %2533 = vmatpush1.bf16.msra.mxu0 0
    %2534 = vmatprep.subr.bf16.mxu0 0
    %2535 = vmatpush1.bf16.msra.mxu0 0
    %2536 = vmatprep.mubr.bf16.mxu0 0
    %2537 = vmatmul.mubr.bf16.gmra.mrb[0].mxu0 %v2498
    %v2538 = vpop.f32.mrb[0].mxu0
    %v2539 = vadd.f32 0.0, %v2538
    %v2540 = vpop.f32.mrb[0].mxu0
    %v2541 = vpop.f32.mrb[0].mxu0
    %v2542 = vadd.f32 0.0, %v2541
    %v2543 = vpop.f32.mrb[0].mxu0
    %2544 = vdwg.mxu0
    %v2545 = vmax.f32 %v2539, 1e-30
    %v2546 = vmax.f32 %v2542, 1e-30
    %v2547 = vrcp.pop %v2545
    %v2548 = vrcp.pop %v2546
    %v2549 = vmul.f32 %v2481, %v2547
    %v2550 = vmul.f32 %v2483, %v2548
    %v2551 = vld [vmem:[#allocation20] sm:$0x1]
    %v2553 = vlaneseq
    %v2554 = vshrl.u32 %v2553, 7
    %v2555 = vsub.s32 0, %v2554
    %v2556 = vrot.slane %v2551, %v2555
    %v2558 = vadd.f32 %v2549, %v2556
    %v2559 = vadd.f32 %v2550, %v2556
    %v2560 = vpack.c.bf16 %v2559, %v2558
    %v2561 = vld [vmem:[%s16] sm:$0xff]
    %v2562 = vld [vmem:[%s16 + $0x8] sm:$0xff]
    %v2563 = vld [vmem:[%s16 + $0x10] sm:$0xff]
    %v2564 = vld [vmem:[%s16 + $0x18] sm:$0xff]
    %v2565 = vld [vmem:[%s16 + $0x20] sm:$0xff]
    %v2566 = vld [vmem:[%s16 + $0x28] sm:$0xff]
    %v2567 = vld [vmem:[%s16 + $0x30] sm:$0xff]
    %v2568 = vld [vmem:[%s16 + $0x38] sm:$0xff]
    %v2569 = vld [vmem:[%s16 + $0x40] sm:$0xff]
    %v2570 = vld [vmem:[%s16 + $0x48] sm:$0xff]
    %v2571 = vld [vmem:[%s16 + $0x50] sm:$0xff]
    %v2572 = vld [vmem:[%s16 + $0x58] sm:$0xff]
    %v2585 = vunpack.c.l.b16 %v2561
    %v2586 = vunpack.c.h.b16 %v2561
    %v2587 = vunpack.c.l.b16 %v2562
    %v2588 = vunpack.c.h.b16 %v2562
    %v2589 = vunpack.c.l.b16 %v2563
    %v2590 = vunpack.c.h.b16 %v2563
    %v2591 = vunpack.c.l.b16 %v2564
    %v2592 = vunpack.c.h.b16 %v2564
    %v2593 = vunpack.c.l.b16 %v2565
    %v2594 = vunpack.c.h.b16 %v2565
    %v2595 = vunpack.c.l.b16 %v2566
    %v2596 = vunpack.c.h.b16 %v2566
    %v2597 = vunpack.c.l.b16 %v2567
    %v2598 = vunpack.c.h.b16 %v2567
    %v2599 = vunpack.c.l.b16 %v2568
    %v2600 = vunpack.c.h.b16 %v2568
    %v2601 = vunpack.c.l.b16 %v2569
    %v2602 = vunpack.c.h.b16 %v2569
    %v2603 = vunpack.c.l.b16 %v2570
    %v2604 = vunpack.c.h.b16 %v2570
    %v2605 = vunpack.c.l.b16 %v2571
    %v2606 = vunpack.c.h.b16 %v2571
    %v2607 = vunpack.c.l.b16 %v2572
    %v2608 = vunpack.c.h.b16 %v2572
    %v2609 = vpack.c.b16 %v2593, %v2585
    %v2610 = vpack.c.b16 %v2594, %v2586
    %v2611 = vpack.c.b16 %v2595, %v2587
    %v2612 = vpack.c.b16 %v2596, %v2588
    %v2613 = vpack.c.b16 %v2597, %v2589
    %v2614 = vpack.c.b16 %v2598, %v2590
    %v2615 = vpack.c.b16 %v2599, %v2591
    %v2616 = vpack.c.b16 %v2600, %v2592
    %v2617 = vpack.c.b16 %v2601, %v2601
    %v2618 = vpack.c.b16 %v2602, %v2602
    %v2619 = vpack.c.b16 %v2603, %v2603
    %v2620 = vpack.c.b16 %v2604, %v2604
    %v2621 = vpack.c.b16 %v2605, %v2605
    %v2622 = vpack.c.b16 %v2606, %v2606
    %v2623 = vpack.c.b16 %v2607, %v2607
    %v2624 = vpack.c.b16 %v2608, %v2608
    %v2634 = vsel %vm2471, %v2560, 0
    %v2637 = vsel %vm2500, %v2617, 0
    %v2640 = vsel %vm2500, %v2618, 0
    %v2643 = vsel %vm2500, %v2619, 0
    %v2646 = vsel %vm2500, %v2620, 0
    %v2649 = vsel %vm2500, %v2621, 0
    %v2652 = vsel %vm2500, %v2622, 0
    %v2655 = vsel %vm2500, %v2623, 0
    %v2658 = vsel %vm2500, %v2624, 0
    %2660 = vmatprep.subr.bf16.mxu0 %v2610
    %2661 = vmatpush1.bf16.msra.mxu0 %v2609
    %2662 = vmatprep.subr.bf16.mxu0 %v2640
    %2663 = vmatpush1.bf16.msra.mxu0 %v2637
    %2664 = vmatprep.subr.bf16.mxu0 0
    %2665 = vmatpush1.bf16.msra.mxu0 0
    %2666 = vmatprep.subr.bf16.mxu0 0
    %2667 = vmatpush1.bf16.msra.mxu0 0
    %2668 = vmatprep.subr.bf16.mxu0 0
    %2669 = vmatpush1.bf16.msra.mxu0 0
    %2670 = vmatprep.subr.bf16.mxu0 0
    %2671 = vmatpush1.bf16.msra.mxu0 0
    %2672 = vmatprep.subr.bf16.mxu0 0
    %2673 = vmatpush1.bf16.msra.mxu0 0
    %2674 = vmatprep.subr.bf16.mxu0 0
    %2675 = vmatpush1.bf16.msra.mxu0 0
    %2676 = vmatprep.subr.bf16.mxu0 0
    %2677 = vmatpush1.bf16.msra.mxu0 0
    %2678 = vmatprep.subr.bf16.mxu0 0
    %2679 = vmatpush1.bf16.msra.mxu0 0
    %2680 = vmatprep.subr.bf16.mxu0 0
    %2681 = vmatpush1.bf16.msra.mxu0 0
    %2682 = vmatprep.subr.bf16.mxu0 0
    %2683 = vmatpush1.bf16.msra.mxu0 0
    %2684 = vmatprep.subr.bf16.mxu0 0
    %2685 = vmatpush1.bf16.msra.mxu0 0
    %2686 = vmatprep.subr.bf16.mxu0 0
    %2687 = vmatpush1.bf16.msra.mxu0 0
    %2688 = vmatprep.subr.bf16.mxu0 0
    %2689 = vmatpush1.bf16.msra.mxu0 0
    %2690 = vmatprep.subr.bf16.mxu0 0
    %2691 = vmatpush1.bf16.msra.mxu0 0
    %2692 = vmatprep.mubr.bf16.mxu0 0
    %2693 = vmatmul.mubr.bf16.gmra.mrb[0].mxu0 %v2634
    %v2694 = vpop.f32.mrb[0].mxu0
    %v2695 = vadd.f32 0.0, %v2694
    %v2696 = vpop.f32.mrb[0].mxu0
    %v2697 = vadd.f32 0.0, %v2696
    %v2698 = vpop.f32.mrb[0].mxu0
    %v2699 = vadd.f32 0.0, %v2698
    %v2700 = vpop.f32.mrb[0].mxu0
    %v2701 = vadd.f32 0.0, %v2700
    %2702 = vdwg.mxu0
    %2703 = vmatprep.subr.bf16.mxu0 %v2612
    %2704 = vmatpush1.bf16.msra.mxu0 %v2611
    %2705 = vmatprep.subr.bf16.mxu0 %v2646
    %2706 = vmatpush1.bf16.msra.mxu0 %v2643
    %2707 = vmatprep.subr.bf16.mxu0 0
    %2708 = vmatpush1.bf16.msra.mxu0 0
    %2709 = vmatprep.subr.bf16.mxu0 0
    %2710 = vmatpush1.bf16.msra.mxu0 0
    %2711 = vmatprep.subr.bf16.mxu0 0
    %2712 = vmatpush1.bf16.msra.mxu0 0
    %2713 = vmatprep.subr.bf16.mxu0 0
    %2714 = vmatpush1.bf16.msra.mxu0 0
    %2715 = vmatprep.subr.bf16.mxu0 0
    %2716 = vmatpush1.bf16.msra.mxu0 0
    %2717 = vmatprep.subr.bf16.mxu0 0
    %2718 = vmatpush1.bf16.msra.mxu0 0
    %2719 = vmatprep.subr.bf16.mxu0 0
    %2720 = vmatpush1.bf16.msra.mxu0 0
    %2721 = vmatprep.subr.bf16.mxu0 0
    %2722 = vmatpush1.bf16.msra.mxu0 0
    %2723 = vmatprep.subr.bf16.mxu0 0
    %2724 = vmatpush1.bf16.msra.mxu0 0
    %2725 = vmatprep.subr.bf16.mxu0 0
    %2726 = vmatpush1.bf16.msra.mxu0 0
    %2727 = vmatprep.subr.bf16.mxu0 0
    %2728 = vmatpush1.bf16.msra.mxu0 0
    %2729 = vmatprep.subr.bf16.mxu0 0
    %2730 = vmatpush1.bf16.msra.mxu0 0
    %2731 = vmatprep.subr.bf16.mxu0 0
    %2732 = vmatpush1.bf16.msra.mxu0 0
    %2733 = vmatprep.subr.bf16.mxu0 0
    %2734 = vmatpush1.bf16.msra.mxu0 0
    %2735 = vmatprep.mubr.bf16.mxu0 0
    %2736 = vmatmul.mubr.bf16.gmra.mrb[0].mxu0 %v2634
    %v2737 = vpop.f32.mrb[0].mxu0
    %v2738 = vadd.f32 0.0, %v2737
    %v2739 = vpop.f32.mrb[0].mxu0
    %v2740 = vadd.f32 0.0, %v2739
    %v2741 = vpop.f32.mrb[0].mxu0
    %v2742 = vadd.f32 0.0, %v2741
    %v2743 = vpop.f32.mrb[0].mxu0
    %v2744 = vadd.f32 0.0, %v2743
    %2745 = vdwg.mxu0
    %2746 = vmatprep.subr.bf16.mxu0 %v2614
    %2747 = vmatpush1.bf16.msra.mxu0 %v2613
    %2748 = vmatprep.subr.bf16.mxu0 %v2652
    %2749 = vmatpush1.bf16.msra.mxu0 %v2649
    %2750 = vmatprep.subr.bf16.mxu0 0
    %2751 = vmatpush1.bf16.msra.mxu0 0
    %2752 = vmatprep.subr.bf16.mxu0 0
    %2753 = vmatpush1.bf16.msra.mxu0 0
    %2754 = vmatprep.subr.bf16.mxu0 0
    %2755 = vmatpush1.bf16.msra.mxu0 0
    %2756 = vmatprep.subr.bf16.mxu0 0
    %2757 = vmatpush1.bf16.msra.mxu0 0
    %2758 = vmatprep.subr.bf16.mxu0 0
    %2759 = vmatpush1.bf16.msra.mxu0 0
    %2760 = vmatprep.subr.bf16.mxu0 0
    %2761 = vmatpush1.bf16.msra.mxu0 0
    %2762 = vmatprep.subr.bf16.mxu0 0
    %2763 = vmatpush1.bf16.msra.mxu0 0
    %2764 = vmatprep.subr.bf16.mxu0 0
    %2765 = vmatpush1.bf16.msra.mxu0 0
    %2766 = vmatprep.subr.bf16.mxu0 0
    %2767 = vmatpush1.bf16.msra.mxu0 0
    %2768 = vmatprep.subr.bf16.mxu0 0
    %2769 = vmatpush1.bf16.msra.mxu0 0
    %2770 = vmatprep.subr.bf16.mxu0 0
    %2771 = vmatpush1.bf16.msra.mxu0 0
    %2772 = vmatprep.subr.bf16.mxu0 0
    %2773 = vmatpush1.bf16.msra.mxu0 0
    %2774 = vmatprep.subr.bf16.mxu0 0
    %2775 = vmatpush1.bf16.msra.mxu0 0
    %2776 = vmatprep.subr.bf16.mxu0 0
    %2777 = vmatpush1.bf16.msra.mxu0 0
    %2778 = vmatprep.mubr.bf16.mxu0 0
    %2779 = vmatmul.mubr.bf16.gmra.mrb[0].mxu0 %v2634
    %v2780 = vpop.f32.mrb[0].mxu0
    %v2781 = vadd.f32 0.0, %v2780
    %v2782 = vpop.f32.mrb[0].mxu0
    %v2783 = vadd.f32 0.0, %v2782
    %v2784 = vpop.f32.mrb[0].mxu0
    %v2785 = vadd.f32 0.0, %v2784
    %v2786 = vpop.f32.mrb[0].mxu0
    %v2787 = vadd.f32 0.0, %v2786
    %2788 = vdwg.mxu0
    %2789 = vmatprep.subr.bf16.mxu0 %v2616
    %2790 = vmatpush1.bf16.msra.mxu0 %v2615
    %2791 = vmatprep.subr.bf16.mxu0 %v2658
    %2792 = vmatpush1.bf16.msra.mxu0 %v2655
    %2793 = vmatprep.subr.bf16.mxu0 0
    %2794 = vmatpush1.bf16.msra.mxu0 0
    %2795 = vmatprep.subr.bf16.mxu0 0
    %2796 = vmatpush1.bf16.msra.mxu0 0
    %2797 = vmatprep.subr.bf16.mxu0 0
    %2798 = vmatpush1.bf16.msra.mxu0 0
    %2799 = vmatprep.subr.bf16.mxu0 0
    %2800 = vmatpush1.bf16.msra.mxu0 0
    %2801 = vmatprep.subr.bf16.mxu0 0
    %2802 = vmatpush1.bf16.msra.mxu0 0
    %2803 = vmatprep.subr.bf16.mxu0 0
    %2804 = vmatpush1.bf16.msra.mxu0 0
    %2805 = vmatprep.subr.bf16.mxu0 0
    %2806 = vmatpush1.bf16.msra.mxu0 0
    %2807 = vmatprep.subr.bf16.mxu0 0
    %2808 = vmatpush1.bf16.msra.mxu0 0
    %2809 = vmatprep.subr.bf16.mxu0 0
    %2810 = vmatpush1.bf16.msra.mxu0 0
    %2811 = vmatprep.subr.bf16.mxu0 0
    %2812 = vmatpush1.bf16.msra.mxu0 0
    %2813 = vmatprep.subr.bf16.mxu0 0
    %2814 = vmatpush1.bf16.msra.mxu0 0
    %2815 = vmatprep.subr.bf16.mxu0 0
    %2816 = vmatpush1.bf16.msra.mxu0 0
    %2817 = vmatprep.subr.bf16.mxu0 0
    %2818 = vmatpush1.bf16.msra.mxu0 0
    %2819 = vmatprep.subr.bf16.mxu0 0
    %2820 = vmatpush1.bf16.msra.mxu0 0
    %2821 = vmatprep.mubr.bf16.mxu0 0
    %2822 = vmatmul.mubr.bf16.gmra.mrb[0].mxu0 %v2634
    %v2823 = vpop.f32.mrb[0].mxu0
    %v2824 = vadd.f32 0.0, %v2823
    %v2825 = vpop.f32.mrb[0].mxu0
    %v2826 = vpop.f32.mrb[0].mxu0
    %v2827 = vadd.f32 0.0, %v2826
    %v2828 = vpop.f32.mrb[0].mxu0
    %2829 = vdwg.mxu0
    %v2830 = vmul.f32 %v2695, %v2345
    %v2831 = vmul.f32 %v2697, %v2346
    %v2832 = vmul.f32 %v2738, %v2347
    %v2833 = vmul.f32 %v2740, %v2348
    %v2834 = vmul.f32 %v2781, %v2349
    %v2835 = vmul.f32 %v2783, %v2350
    %v2836 = vmul.f32 %v2824, %v2351
    %v2837 = vmul.f32 %v2699, %v2352
    %v2838 = vmul.f32 %v2701, %v2353
    %v2839 = vmul.f32 %v2742, %v2354
    %v2840 = vmul.f32 %v2744, %v2355
    %v2841 = vmul.f32 %v2785, %v2356
    %v2842 = vmul.f32 %v2787, %v2357
    %v2843 = vmul.f32 %v2827, %v2358
    %v2844 = vadd.f32 %v2830, %v2831
    %v2845 = vadd.f32 %v2837, %v2838
    %v2846 = vadd.f32 %v2832, %v2833
    %v2847 = vadd.f32 %v2839, %v2840
    %v2848 = vadd.f32 %v2834, %v2835
    %v2849 = vadd.f32 %v2841, %v2842
    %v2850 = vadd.f32 %v2844, %v2846
    %v2851 = vadd.f32 %v2845, %v2847
    %v2852 = vadd.f32 %v2848, %v2836
    %v2853 = vadd.f32 %v2849, %v2843
    %v2854 = vadd.f32 %v2850, %v2852
    %v2855 = vadd.f32 %v2851, %v2853
    %2856 = vst [vmem:[#allocation23] sm:$0xff] %v2854
    %2857 = vst [vmem:[#allocation23 + $0x8] sm:$0xff] %v2855
    // Predicated region
    $region122: #{tpu_custom_call.1} parent=1 // pred_check
      _
    $region123: #{tpu_custom_call.1} parent=1 // pred_check_branch
      %2859 = sbr.rel (0) target = $region125
    $region124: #{tpu_custom_call.1} parent=1 // pred_region
      %s2861 = ssub.s32 256, 256
      %2862 = vsyncadd [#allocation4], %s2861
      %s2863 = sshll.u32 [#allocation23], 4
      %s2864 = int_to_ptr.vmem [resolvable:$true] %s2863
      %2869 = dma.vmem_to_hbm [thread:$0]  %s2864, 256, %s17, [#allocation4], 128, 128, 8
    $region125: #{tpu_custom_call.1} parent=1 // pred_fallthru
      _
    // Predicated region
    $region126: #{tpu_custom_call.1} parent=1 // pred_check
      _
    $region127: #{tpu_custom_call.1} parent=1 // pred_check_branch
      %2871 = sbr.rel (0) target = $region129
    $region128: #{tpu_custom_call.1} parent=1 // pred_region
      %2872 = dma.done [#allocation4], 256
    $region129: #{tpu_custom_call.1} parent=1 // pred_fallthru
      _
    %2873 = vsyncpa [#allocation3], 1
    %2874 = vsyncpa [#allocation6], 1
    %2875 = vsyncpa [#allocation9], 1
    %2876 = vsyncpa [#allocation12], 1
    %2877 = vsyncpa [#allocation15], 1
    %2878 = vsyncpa [#allocation18], 1
    %2879 = vsyncpa [#allocation21], 1
    %2880 = vsyncpa [#allocation4], 1

</llo_original>
